<compile_context>
chip_gen: v7x
topology: tpu7x:2x2x1
jax: 0.10.0
libtpu: 0.0.40
codegen_flags: <defaults>
</compile_context>

<pallas_src>
import functools

import jax
import jax.numpy as jnp
from jax import lax
from jax.experimental import pallas as pl
from jax.experimental.pallas import tpu as pltpu

# ---------------- config (mirrors the pointer-generator `config`) ----------------
HIDDEN_DIM = 32
EMB_DIM = 32
VOCAB_SIZE = 50
TRUNC_NORM_INIT_STD = 1e-4
RAND_UNIF_INIT_MAG = 0.02
POINTER_GEN = True          # kernel implements the pointer-gen path
IS_COVERAGE = True          # kernel implements the coverage path
# TODO(synk): eval-mode (not training, step==0) pre-attention branch not implemented;
#             training-mode forward semantics are reproduced.
# NOTE: like the PyTorch original, an all-zero enc_padding_mask row divides by zero.


def _round_up(x, m):
    return (x + m - 1) // m * m


def _packed_layout(vext, h, t):
    """Lane offsets of the per-step packed output slab (last dim multiple of 128)."""
    off_final = 0
    off_h = vext
    off_c = off_h + h
    off_ct = off_c + h
    off_attn = off_ct + 2 * h
    off_pgen = off_attn + t
    off_cov = off_pgen + 1
    off_end = off_cov + t
    pack = _round_up(off_end, 128)
    return off_final, off_h, off_c, off_ct, off_attn, off_pgen, off_cov, off_end, pack


# =============================== Pallas kernel ===================================
def _decoder_seq_kernel(
    vext,                               # static int (bound via functools.partial)
    # ---- data inputs ----
    y_ref,                              # (1, B, 1) int32  token ids for this step
    h0_ref, c0_ref,                     # (B, H)           initial LSTM state
    ct1_0_ref,                          # (B, 2H)          initial context vector
    cov0_ref,                           # (B, T)           initial coverage
    enc_out_ref,                        # (B, T, 2H)       encoder_outputs
    enc_feat_ref,                       # (B, T, 2H)       encoder_feature (W_h enc)
    mask_ref,                           # (B, T)           enc_padding_mask (0/1)
    scat1h_ref,                         # (B, T, VEXT) f32 precomputed scatter one-hot
    # ---- parameters (pre-split / folded, (in, out) layout) ----
    emb_ref,                            # (V, Emb)
    wxc_c_ref, wxc_e_ref, bxc_ref,      # (2H,Emb), (Emb,Emb), (1,Emb)    x_context
    wih_ref, whh_ref, blstm_ref,        # (Emb,4H), (H,4H), (1,4H)  LSTM (bih+bhh folded)
    wdp_h_ref, wdp_c_ref, bdp_ref,      # (H,2H), (H,2H), (1,2H)    decode_proj
    wc_ref,                             # (1,2H)                    W_c (coverage)
    wv_ref,                             # (1,2H)                    v
    wpg_ct_ref, wpg_h_ref, wpg_c_ref, wpg_x_ref, bpg_ref,  # p_gen_linear (split)
    wo1_h_ref, wo1_ct_ref, bo1_ref,     # (H,H), (2H,H), (1,H)      out1 (split)
    wo2_ref, bo2_ref,                   # (H,V), (1,V)              out2
    # ---- output ----
    packed_ref,                         # (1, B, PACK) lane-dense slab
    # ---- scratch: decoder state, resident in VMEM across grid steps ----
    h_st, c_st, ct1_st, cov_st,
):
    f32 = jnp.float32
    B, T, H2 = enc_out_ref.shape
    H = H2 // 2
    V = emb_ref.shape[0]
    VEXT = vext
    n_extra = VEXT - V
    (_, off_h, off_c, off_ct, off_attn, off_pgen, off_cov, off_end,
     pack) = _packed_layout(VEXT, H, T)
    step = pl.program_id(0)

    # ---- seed state into VMEM scratch on the first step only ----
    @pl.when(step == 0)
    def _():
        h_st[...] = h0_ref[...]
        c_st[...] = c0_ref[...]
        ct1_st[...] = ct1_0_ref[...]
        cov_st[...] = cov0_ref[...]

    h_prev = h_st[...]
    c_prev = c_st[...]
    ct1 = ct1_st[...]
    cov = cov_st[...]

    # ---- embedding lookup as one-hot matmul (V is tiny; MXU handles it) ----
    y = y_ref[0]                                                    # (B, 1) int32
    iota_v = lax.broadcasted_iota(jnp.int32, (B, V), 1)
    onehot = (y == iota_v).astype(f32)                              # (B, V)
    y_embd = jnp.dot(onehot, emb_ref[...], preferred_element_type=f32)   # (B, Emb)

    # ---- x_context: Linear on cat(c_t_1, emb) with pre-split weights ----
    x = (jnp.dot(ct1, wxc_c_ref[...], preferred_element_type=f32)
         + jnp.dot(y_embd, wxc_e_ref[...], preferred_element_type=f32)
         + bxc_ref[...])                                            # (B, Emb)

    # ---- single LSTM step (gate order i, f, g, o), folded bias ----
    gates = (jnp.dot(x, wih_ref[...], preferred_element_type=f32)
             + jnp.dot(h_prev, whh_ref[...], preferred_element_type=f32)
             + blstm_ref[...])                                      # (B, 4H)
    i_g = jax.nn.sigmoid(gates[:, 0:H])
    f_g = jax.nn.sigmoid(gates[:, H:2 * H])
    g_g = jnp.tanh(gates[:, 2 * H:3 * H])
    o_g = jax.nn.sigmoid(gates[:, 3 * H:4 * H])
    c_new = f_g * c_prev + i_g * g_g
    h_new = o_g * jnp.tanh(c_new)                                   # lstm_out

    # ---- attention with coverage; decode_proj split over (h, c) -> no concat ----
    dec_fea = (jnp.dot(h_new, wdp_h_ref[...], preferred_element_type=f32)
               + jnp.dot(c_new, wdp_c_ref[...], preferred_element_type=f32)
               + bdp_ref[...])                                      # (B, 2H)
    att = enc_feat_ref[...] + dec_fea[:, None, :]                   # (B, T, 2H)
    att = att + cov[:, :, None] * wc_ref[...].reshape(1, 1, H2)     # coverage feature
    e = jnp.tanh(att)
    # scores kept as mul + lane reduce (tiny at T=8; avoids a lane<->sublane relayout)
    scores = jnp.sum(e * wv_ref[...].reshape(1, 1, H2), axis=-1)    # (B, T)

    # masked softmax, fused (identical to softmax*mask/renorm for a 0/1 mask)
    m = jnp.max(scores, axis=-1, keepdims=True)
    p = jnp.exp(scores - m) * mask_ref[...]
    attn = p * pl.reciprocal(jnp.sum(p, axis=-1, keepdims=True), approx=True)  # (B,T)

    # c_t = bmm(attn, encoder_outputs) on the MXU (batched dot_general)
    c_t = lax.dot_general(attn[:, None, :], enc_out_ref[...],
                          dimension_numbers=(((2,), (1,)), ((0,), (0,))),
                          preferred_element_type=f32)[:, 0, :]      # (B, 2H)
    cov_next = cov + attn

    # ---- p_gen = sigmoid(cat(c_t, s_t_hat, x) @ Wpg + b) with split weights ----
    p_gen = jax.nn.sigmoid(
        jnp.dot(c_t, wpg_ct_ref[...], preferred_element_type=f32)
        + jnp.dot(h_new, wpg_h_ref[...], preferred_element_type=f32)
        + jnp.dot(c_new, wpg_c_ref[...], preferred_element_type=f32)
        + jnp.dot(x, wpg_x_ref[...], preferred_element_type=f32)
        + bpg_ref[...])                                             # (B, 1)

    # ---- output projection (out1 split over h / c_t) + vocab softmax ----
    out = (jnp.dot(h_new, wo1_h_ref[...], preferred_element_type=f32)
           + jnp.dot(c_t, wo1_ct_ref[...], preferred_element_type=f32)
           + bo1_ref[...])                                          # (B, H)
    logits = jnp.dot(out, wo2_ref[...], preferred_element_type=f32) + bo2_ref[...]
    lm = jnp.max(logits, axis=-1, keepdims=True)
    le = jnp.exp(logits - lm)
    vocab_dist = le * pl.reciprocal(jnp.sum(le, axis=-1, keepdims=True), approx=True)

    # ---- pointer mixture + scatter_add via precomputed one-hot matmul (MXU) ----
    vocab_dist_ = p_gen * vocab_dist                                # (B, V)
    attn_dist_ = (1.0 - p_gen) * attn                               # (B, T)
    scat = lax.dot_general(attn_dist_[:, None, :], scat1h_ref[...],
                           dimension_numbers=(((2,), (1,)), ((0,), (0,))),
                           preferred_element_type=f32)[:, 0, :]     # (B, VEXT)

    # ---- write everything into the single lane-dense output slab ----
    packed_ref[0, :, 0:V] = scat[:, 0:V] + vocab_dist_              # final_dist[:V]
    if n_extra > 0:
        packed_ref[0, :, V:VEXT] = scat[:, V:VEXT]                  # final_dist[V:]
    packed_ref[0, :, off_h:off_c] = h_new
    packed_ref[0, :, off_c:off_ct] = c_new
    packed_ref[0, :, off_ct:off_attn] = c_t
    packed_ref[0, :, off_attn:off_pgen] = attn
    packed_ref[0, :, off_pgen:off_cov] = p_gen
    packed_ref[0, :, off_cov:off_end] = cov_next
    if off_end < pack:
        packed_ref[0, :, off_end:pack] = jnp.zeros((B, pack - off_end), f32)

    # ---- carry state to the next grid step (stays in VMEM) ----
    h_st[...] = h_new
    c_st[...] = c_new
    ct1_st[...] = c_t
    cov_st[...] = cov_next


# =============================== wrappers =========================================
def decoder_decode_sequence(kparams, y_tokens, s_t_1, encoder_outputs,
                            encoder_feature, enc_padding_mask, c_t_1, extra_zeros,
                            enc_batch_extend_vocab, coverage):
    """Runs S teacher-forced decoder steps in a single pallas_call.

    Returns per-step sequences:
      (final_dist, h, c, c_t, attn_dist, p_gen, coverage_next), each with a
      leading step axis of length S.
    """
    h0, c0 = s_t_1
    B, T, H2 = encoder_outputs.shape
    H = H2 // 2
    V = kparams['emb'].shape[0]
    E = 0 if extra_zeros is None else extra_zeros.shape[1]
    VEXT = V + E
    S = y_tokens.shape[0]
    (_, off_h, off_c, off_ct, off_attn, off_pgen, off_cov, _,
     PACK) = _packed_layout(VEXT, H, T)

    y3 = y_tokens.reshape(S, B, 1).astype(jnp.int32)
    enc_feat3 = encoder_feature.reshape(B, T, H2)

    # Step-invariant scatter one-hot (B, T, VEXT), computed once outside the kernel.
    scat_onehot = (enc_batch_extend_vocab.astype(jnp.int32)[:, :, None]
                   == jnp.arange(VEXT, dtype=jnp.int32)[None, None, :]
                   ).astype(jnp.float32)

    data_inputs = (
        y3, h0.reshape(B, H), c0.reshape(B, H), c_t_1, coverage,
        encoder_outputs, enc_feat3, enc_padding_mask, scat_onehot,
    )
    param_inputs = (
        kparams['emb'],
        kparams['wxc_c'], kparams['wxc_e'], kparams['bxc'],
        kparams['wih'], kparams['whh'], kparams['blstm'],
        kparams['wdp_h'], kparams['wdp_c'], kparams['bdp'],
        kparams['wc'], kparams['wv'],
        kparams['wpg_ct'], kparams['wpg_h'], kparams['wpg_c'],
        kparams['wpg_x'], kparams['bpg'],
        kparams['wo1_h'], kparams['wo1_ct'], kparams['bo1'],
        kparams['wo2'], kparams['bo2'],
    )

    const2 = lambda s: (0, 0)
    const3 = lambda s: (0, 0, 0)
    data_specs = [
        pl.BlockSpec((1, B, 1), lambda s: (s, 0, 0)),   # token ids: varies per step
        pl.BlockSpec((B, H), const2),                   # h0
        pl.BlockSpec((B, H), const2),                   # c0
        pl.BlockSpec((B, H2), const2),                  # c_t_1
        pl.BlockSpec((B, T), const2),                   # coverage
        pl.BlockSpec((B, T, H2), const3),               # encoder_outputs
        pl.BlockSpec((B, T, H2), const3),               # encoder_feature
        pl.BlockSpec((B, T), const2),                   # enc_padding_mask
        pl.BlockSpec((B, T, VEXT), const3),             # scatter one-hot
    ]
    param_specs = [pl.BlockSpec(p.shape, const2) for p in param_inputs]

    grid_spec = pltpu.PrefetchScalarGridSpec(
        num_scalar_prefetch=0,
        grid=(S,),
        in_specs=data_specs + param_specs,
        out_specs=pl.BlockSpec((1, B, PACK), lambda s: (s, 0, 0)),
        scratch_shapes=[
            pltpu.VMEM((B, H), jnp.float32),    # h state
            pltpu.VMEM((B, H), jnp.float32),    # c state
            pltpu.VMEM((B, H2), jnp.float32),   # c_t_1 state
            pltpu.VMEM((B, T), jnp.float32),    # coverage state
        ],
    )

    packed = pl.pallas_call(
        functools.partial(_decoder_seq_kernel, VEXT),
        out_shape=jax.ShapeDtypeStruct((S, B, PACK), jnp.float32),
        grid_spec=grid_spec,
        compiler_params=pltpu.CompilerParams(dimension_semantics=("arbitrary",)),
    )(*data_inputs, *param_inputs)

    final_seq = packed[:, :, 0:VEXT]
    h_seq = packed[:, :, off_h:off_h + H]
    c_seq = packed[:, :, off_c:off_c + H]
    ct_seq = packed[:, :, off_ct:off_ct + H2]
    attn_seq = packed[:, :, off_attn:off_attn + T]
    pgen_seq = packed[:, :, off_pgen:off_pgen + 1]
    cov_seq = packed[:, :, off_cov:off_cov + T]
    return final_seq, h_seq, c_seq, ct_seq, attn_seq, pgen_seq, cov_seq


def decoder_step(kparams, y_t_1, s_t_1, encoder_outputs, encoder_feature,
                 enc_padding_mask, c_t_1, extra_zeros, enc_batch_extend_vocab,
                 coverage, step):
    """Single-step API matching Decoder.forward (training-mode semantics)."""
    B = encoder_outputs.shape[0]
    H = encoder_outputs.shape[2] // 2
    y_tok = jnp.asarray(y_t_1).reshape(1, B)
    (final_seq, h_seq, c_seq, ct_seq, attn_seq, pgen_seq,
     cov_seq) = decoder_decode_sequence(kparams, y_tok, s_t_1, encoder_outputs,
                                        encoder_feature, enc_padding_mask, c_t_1,
                                        extra_zeros, enc_batch_extend_vocab, coverage)
    s_t = (h_seq[0].reshape(1, B, H), c_seq[0].reshape(1, B, H))
    return final_seq[0], s_t, ct_seq[0], attn_seq[0], pgen_seq[0], cov_seq[0]


# ====================== pure-JAX reference (for sanity check) ====================
def decoder_step_ref(params, y_t_1, s_t_1, encoder_outputs, encoder_feature,
                     enc_padding_mask, c_t_1, extra_zeros, enc_batch_extend_vocab,
                     coverage):
    H = HIDDEN_DIM
    h0, c0 = s_t_1
    B, T, H2 = encoder_outputs.shape
    h_prev = h0.reshape(B, H)
    c_prev = c0.reshape(B, H)
    y_embd = params['emb'][y_t_1]
    x = jnp.concatenate([c_t_1, y_embd], 1) @ params['wxc'] + params['bxc']
    gates = (x @ params['wih'] + params['bih']
             + h_prev @ params['whh'] + params['bhh'])
    i_g = jax.nn.sigmoid(gates[:, :H]); f_g = jax.nn.sigmoid(gates[:, H:2 * H])
    g_g = jnp.tanh(gates[:, 2 * H:3 * H]); o_g = jax.nn.sigmoid(gates[:, 3 * H:])
    c_new = f_g * c_prev + i_g * g_g
    h_new = o_g * jnp.tanh(c_new)
    s_t_hat = jnp.concatenate([h_new, c_new], 1)
    dec_fea = s_t_hat @ params['wdp'] + params['bdp']
    att = encoder_feature.reshape(B, T, H2) + dec_fea[:, None, :]
    att = att + coverage[:, :, None] * params['wc'].reshape(1, 1, H2)
    scores = jnp.sum(jnp.tanh(att) * params['wv'].reshape(1, 1, H2), axis=-1)
    sm = jax.nn.softmax(scores, axis=1) * enc_padding_mask
    attn = sm / jnp.sum(sm, axis=1, keepdims=True)
    c_t = jnp.einsum('bt,btn->bn', attn, encoder_outputs)
    cov_next = coverage + attn
    pg_in = jnp.concatenate([c_t, s_t_hat, x], 1)
    p_gen = jax.nn.sigmoid(pg_in @ params['wpg'] + params['bpg'])
    out = jnp.concatenate([h_new, c_t], 1) @ params['wo1'] + params['bo1']
    logits = out @ params['wo2'] + params['bo2']
    vocab_dist = jax.nn.softmax(logits, axis=1)
    vocab_dist_ = p_gen * vocab_dist
    attn_dist_ = (1.0 - p_gen) * attn
    ext = jnp.concatenate([vocab_dist_, extra_zeros], 1)
    final = ext.at[jnp.arange(B)[:, None], enc_batch_extend_vocab].add(attn_dist_)
    return final, (h_new, c_new), c_t, attn, p_gen, cov_next


# =============================== param init ======================================
def init_params(key):
    H, Emb, V = HIDDEN_DIM, EMB_DIM, VOCAB_SIZE
    std = TRUNC_NORM_INIT_STD
    mag = RAND_UNIF_INIT_MAG
    ks = jax.random.split(key, 16)

    def normal(k, shape, s):
        return (s * jax.random.normal(k, shape)).astype(jnp.float32)

    def uniform(k, shape, m):
        return jax.random.uniform(k, shape, jnp.float32, -m, m)

    # LSTM bias: zeros, forget-gate quarter [H:2H] set to 1 (init_lstm_wt)
    b_lstm = jnp.zeros((1, 4 * H), jnp.float32).at[:, H:2 * H].set(1.0)

    return dict(
        emb=normal(ks[0], (V, Emb), std),                 # init_wt_normal
        wxc=normal(ks[1], (2 * H + Emb, Emb), 0.05),
        bxc=normal(ks[2], (1, Emb), 0.05),
        wih=uniform(ks[3], (Emb, 4 * H), mag),            # init_lstm_wt
        bih=b_lstm,
        whh=uniform(ks[4], (H, 4 * H), mag),
        bhh=b_lstm,
        wc=uniform(ks[5], (1, 2 * H), 0.1),               # Attention.W_c (no bias)
        wdp=normal(ks[6], (2 * H, 2 * H), 0.05),          # Attention.decode_proj
        bdp=normal(ks[7], (1, 2 * H), 0.05),
        wv=normal(ks[8], (1, 2 * H), 0.05),               # Attention.v (no bias)
        wpg=normal(ks[9], (4 * H + Emb, 1), 0.05),        # p_gen_linear
        bpg=normal(ks[10], (1, 1), 0.05),
        wo1=normal(ks[11], (3 * H, H), 0.05),             # out1
        bo1=normal(ks[12], (1, H), 0.05),
        wo2=normal(ks[13], (H, V), std),                  # out2 (init_linear_wt)
        bo2=normal(ks[14], (1, V), std),
    )


def prepare_kernel_params(params):
    """Pre-split / fold weights so the kernel never concatenates activations."""
    H = HIDDEN_DIM
    return dict(
        emb=params['emb'],
        wxc_c=params['wxc'][:2 * H], wxc_e=params['wxc'][2 * H:], bxc=params['bxc'],
        wih=params['wih'], whh=params['whh'],
        blstm=params['bih'] + params['bhh'],              # folded LSTM biases
        wdp_h=params['wdp'][:H], wdp_c=params['wdp'][H:], bdp=params['bdp'],
        wc=params['wc'], wv=params['wv'],
        wpg_ct=params['wpg'][:2 * H], wpg_h=params['wpg'][2 * H:3 * H],
        wpg_c=params['wpg'][3 * H:4 * H], wpg_x=params['wpg'][4 * H:],
        bpg=params['bpg'],
        wo1_h=params['wo1'][:H], wo1_ct=params['wo1'][H:], bo1=params['bo1'],
        wo2=params['wo2'], bo2=params['bo2'],
    )


# =============================== main =============================================
if __name__ == "__main__":
    key = jax.random.PRNGKey(0)
    kp, kd = jax.random.split(key)
    params = init_params(kp)
    kparams = prepare_kernel_params(params)

    B, T, S = 2, 8, 4
    H, Emb, V = HIDDEN_DIM, EMB_DIM, VOCAB_SIZE
    E = 6                        # number of extra (OOV) vocab slots
    ks = jax.random.split(kd, 8)

    y_tokens = jax.random.randint(ks[0], (S, B), 0, V)              # teacher-forced ids
    h0 = 0.1 * jax.random.normal(ks[1], (1, B, H), jnp.float32)
    c0 = 0.1 * jax.random.normal(ks[2], (1, B, H), jnp.float32)
    encoder_outputs = jax.random.normal(ks[3], (B, T, 2 * H), jnp.float32)
    encoder_feature = jax.random.normal(ks[4], (B * T, 2 * H), jnp.float32)
    enc_padding_mask = jnp.concatenate(
        [jnp.ones((B, T - 2), jnp.float32), jnp.zeros((B, 2), jnp.float32)], axis=1)
    c_t_1 = 0.1 * jax.random.normal(ks[5], (B, 2 * H), jnp.float32)
    extra_zeros = jnp.zeros((B, E), jnp.float32)
    enc_batch_extend_vocab = jax.random.randint(ks[6], (B, T), 0, V + E)
    coverage = jnp.zeros((B, T), jnp.float32)

    # ---- fused multi-step decode: ONE pallas_call, state resident in VMEM ----
    outs = decoder_decode_sequence(kparams, y_tokens, (h0, c0), encoder_outputs,
                                   encoder_feature, enc_padding_mask, c_t_1,
                                   extra_zeros, enc_batch_extend_vocab, coverage)
    outs = jax.block_until_ready(outs)
    final_seq, h_seq, c_seq, ct_seq, attn_seq, pgen_seq, cov_seq = outs

    def check(name, a, b, atol=2e-3, rtol=2e-2):
        if not jnp.allclose(a, b, atol=atol, rtol=rtol):
            raise AssertionError(f"mismatch in {name}: max abs diff "
                                 f"{float(jnp.max(jnp.abs(a - b)))}")

    # ---- reference: python loop of pure-JAX single steps (teacher forcing) ----
    h_r, c_r = h0.reshape(B, H), c0.reshape(B, H)
    ct1_r, cov_r = c_t_1, coverage
    for s in range(S):
        (f_r, (h_r, c_r), ct_r, a_r, pg_r, cov_nr) = decoder_step_ref(
            params, y_tokens[s], (h_r, c_r), encoder_outputs, encoder_feature,
            enc_padding_mask, ct1_r, extra_zeros, enc_batch_extend_vocab, cov_r)
        check(f"final_dist[{s}]", final_seq[s], f_r)
        check(f"h_new[{s}]", h_seq[s], h_r)
        check(f"c_new[{s}]", c_seq[s], c_r)
        check(f"c_t[{s}]", ct_seq[s], ct_r)
        check(f"attn_dist[{s}]", attn_seq[s], a_r)
        check(f"p_gen[{s}]", pgen_seq[s], pg_r)
        check(f"coverage[{s}]", cov_seq[s], cov_nr)
        ct1_r, cov_r = ct_r, cov_nr

    # ---- single-step API (matches Decoder.forward) also checked ----
    step_outs = decoder_step(kparams, y_tokens[0], (h0, c0), encoder_outputs,
                             encoder_feature, enc_padding_mask, c_t_1, extra_zeros,
                             enc_batch_extend_vocab, coverage, step=1)
    step_outs = jax.block_until_ready(step_outs)
    f1, (h1, c1), ct1_out, a1, pg1, cov1 = step_outs
    (fr, (hr, cr), ctr, ar, pgr, covr) = decoder_step_ref(
        params, y_tokens[0], (h0, c0), encoder_outputs, encoder_feature,
        enc_padding_mask, c_t_1, extra_zeros, enc_batch_extend_vocab, coverage)
    check("step.final_dist", f1, fr)
    check("step.h_new", h1.reshape(B, H), hr)
    check("step.c_new", c1.reshape(B, H), cr)
    check("step.c_t", ct1_out, ctr)
    check("step.attn_dist", a1, ar)
    check("step.p_gen", pg1, pgr)
    check("step.coverage", cov1, covr)

    print("KERNEL_OK")
</pallas_src>

<mosaic_0001>
module attributes {stable_mosaic.version = 11 : i64} {
  func.func @_decoder_seq_kernel(%arg0: i32, %arg1: memref<1x2x1xi32, #tpu.memory_space<vmem>>, %arg2: memref<2x32xf32, #tpu.memory_space<vmem>>, %arg3: memref<2x32xf32, #tpu.memory_space<vmem>>, %arg4: memref<2x64xf32, #tpu.memory_space<vmem>>, %arg5: memref<2x8xf32, #tpu.memory_space<vmem>>, %arg6: memref<2x8x64xf32, #tpu.memory_space<vmem>>, %arg7: memref<2x8x64xf32, #tpu.memory_space<vmem>>, %arg8: memref<2x8xf32, #tpu.memory_space<vmem>>, %arg9: memref<2x8x56xf32, #tpu.memory_space<vmem>>, %arg10: memref<50x32xf32, #tpu.memory_space<vmem>>, %arg11: memref<64x32xf32, #tpu.memory_space<vmem>>, %arg12: memref<32x32xf32, #tpu.memory_space<vmem>>, %arg13: memref<1x32xf32, #tpu.memory_space<vmem>>, %arg14: memref<32x128xf32, #tpu.memory_space<vmem>>, %arg15: memref<32x128xf32, #tpu.memory_space<vmem>>, %arg16: memref<1x128xf32, #tpu.memory_space<vmem>>, %arg17: memref<32x64xf32, #tpu.memory_space<vmem>>, %arg18: memref<32x64xf32, #tpu.memory_space<vmem>>, %arg19: memref<1x64xf32, #tpu.memory_space<vmem>>, %arg20: memref<1x64xf32, #tpu.memory_space<vmem>>, %arg21: memref<1x64xf32, #tpu.memory_space<vmem>>, %arg22: memref<64x1xf32, #tpu.memory_space<vmem>>, %arg23: memref<32x1xf32, #tpu.memory_space<vmem>>, %arg24: memref<32x1xf32, #tpu.memory_space<vmem>>, %arg25: memref<32x1xf32, #tpu.memory_space<vmem>>, %arg26: memref<1x1xf32, #tpu.memory_space<vmem>>, %arg27: memref<32x32xf32, #tpu.memory_space<vmem>>, %arg28: memref<64x32xf32, #tpu.memory_space<vmem>>, %arg29: memref<1x32xf32, #tpu.memory_space<vmem>>, %arg30: memref<32x50xf32, #tpu.memory_space<vmem>>, %arg31: memref<1x50xf32, #tpu.memory_space<vmem>>, %arg32: memref<1x2x256xf32, #tpu.memory_space<vmem>>, %arg33: memref<2x32xf32, #tpu.memory_space<vmem>>, %arg34: memref<2x32xf32, #tpu.memory_space<vmem>>, %arg35: memref<2x64xf32, #tpu.memory_space<vmem>>, %arg36: memref<2x8xf32, #tpu.memory_space<vmem>>) attributes {dimension_semantics = [#tpu.dimension_semantics<arbitrary>], iteration_bounds = array<i64: 4>, scalar_prefetch = 0 : i64, scratch_operands = 4 : i64, tpu.core_type = #tpu.core_type<tc>, window_params = [{transform_indices = @transform_0, window_bounds = array<i64: 1, 2, 1>}, {pipeline_mode = #tpu.pipeline_mode<synchronous>, transform_indices = @transform_1, window_bounds = array<i64: 2, 32>}, {pipeline_mode = #tpu.pipeline_mode<synchronous>, transform_indices = @transform_2, window_bounds = array<i64: 2, 32>}, {pipeline_mode = #tpu.pipeline_mode<synchronous>, transform_indices = @transform_3, window_bounds = array<i64: 2, 64>}, {pipeline_mode = #tpu.pipeline_mode<synchronous>, transform_indices = @transform_4, window_bounds = array<i64: 2, 8>}, {pipeline_mode = #tpu.pipeline_mode<synchronous>, transform_indices = @transform_5, window_bounds = array<i64: 2, 8, 64>}, {pipeline_mode = #tpu.pipeline_mode<synchronous>, transform_indices = @transform_6, window_bounds = array<i64: 2, 8, 64>}, {pipeline_mode = #tpu.pipeline_mode<synchronous>, transform_indices = @transform_7, window_bounds = array<i64: 2, 8>}, {pipeline_mode = #tpu.pipeline_mode<synchronous>, transform_indices = @transform_8, window_bounds = array<i64: 2, 8, 56>}, {pipeline_mode = #tpu.pipeline_mode<synchronous>, transform_indices = @transform_9, window_bounds = array<i64: 50, 32>}, {pipeline_mode = #tpu.pipeline_mode<synchronous>, transform_indices = @transform_10, window_bounds = array<i64: 64, 32>}, {pipeline_mode = #tpu.pipeline_mode<synchronous>, transform_indices = @transform_11, window_bounds = array<i64: 32, 32>}, {pipeline_mode = #tpu.pipeline_mode<synchronous>, transform_indices = @transform_12, window_bounds = array<i64: 1, 32>}, {pipeline_mode = #tpu.pipeline_mode<synchronous>, transform_indices = @transform_13, window_bounds = array<i64: 32, 128>}, {pipeline_mode = #tpu.pipeline_mode<synchronous>, transform_indices = @transform_14, window_bounds = array<i64: 32, 128>}, {pipeline_mode = #tpu.pipeline_mode<synchronous>, transform_indices = @transform_15, window_bounds = array<i64: 1, 128>}, {pipeline_mode = #tpu.pipeline_mode<synchronous>, transform_indices = @transform_16, window_bounds = array<i64: 32, 64>}, {pipeline_mode = #tpu.pipeline_mode<synchronous>, transform_indices = @transform_17, window_bounds = array<i64: 32, 64>}, {pipeline_mode = #tpu.pipeline_mode<synchronous>, transform_indices = @transform_18, window_bounds = array<i64: 1, 64>}, {pipeline_mode = #tpu.pipeline_mode<synchronous>, transform_indices = @transform_19, window_bounds = array<i64: 1, 64>}, {pipeline_mode = #tpu.pipeline_mode<synchronous>, transform_indices = @transform_20, window_bounds = array<i64: 1, 64>}, {pipeline_mode = #tpu.pipeline_mode<synchronous>, transform_indices = @transform_21, window_bounds = array<i64: 64, 1>}, {pipeline_mode = #tpu.pipeline_mode<synchronous>, transform_indices = @transform_22, window_bounds = array<i64: 32, 1>}, {pipeline_mode = #tpu.pipeline_mode<synchronous>, transform_indices = @transform_23, window_bounds = array<i64: 32, 1>}, {pipeline_mode = #tpu.pipeline_mode<synchronous>, transform_indices = @transform_24, window_bounds = array<i64: 32, 1>}, {pipeline_mode = #tpu.pipeline_mode<synchronous>, transform_indices = @transform_25, window_bounds = array<i64: 1, 1>}, {pipeline_mode = #tpu.pipeline_mode<synchronous>, transform_indices = @transform_26, window_bounds = array<i64: 32, 32>}, {pipeline_mode = #tpu.pipeline_mode<synchronous>, transform_indices = @transform_27, window_bounds = array<i64: 64, 32>}, {pipeline_mode = #tpu.pipeline_mode<synchronous>, transform_indices = @transform_28, window_bounds = array<i64: 1, 32>}, {pipeline_mode = #tpu.pipeline_mode<synchronous>, transform_indices = @transform_29, window_bounds = array<i64: 32, 50>}, {pipeline_mode = #tpu.pipeline_mode<synchronous>, transform_indices = @transform_30, window_bounds = array<i64: 1, 50>}, {transform_indices = @transform_31, window_bounds = array<i64: 1, 2, 256>}]} {
    %c0_i32 = arith.constant 0 : i32
    %0 = arith.cmpi eq, %arg0, %c0_i32 : i32
    %1 = arith.extui %0 : i1 to i32
    %c0_i32_0 = arith.constant 0 : i32
    %2 = arith.cmpi ne, %1, %c0_i32_0 : i32
    scf.if %2 {
      %c0_119 = arith.constant 0 : index
      %c0_120 = arith.constant 0 : index
      %186 = vector.load %arg2[%c0_119, %c0_120] : memref<2x32xf32, #tpu.memory_space<vmem>>, vector<2x32xf32>
      %c0_121 = arith.constant 0 : index
      %c0_122 = arith.constant 0 : index
      %187 = vector.load %arg33[%c0_121, %c0_122] : memref<2x32xf32, #tpu.memory_space<vmem>>, vector<2x32xf32>
      tpu.vector_store %arg33[%c0_121, %c0_122], %186 {strides = array<i32>} : memref<2x32xf32, #tpu.memory_space<vmem>>, vector<2x32xf32>,
      %c0_123 = arith.constant 0 : index
      %c0_124 = arith.constant 0 : index
      %188 = vector.load %arg3[%c0_123, %c0_124] : memref<2x32xf32, #tpu.memory_space<vmem>>, vector<2x32xf32>
      %c0_125 = arith.constant 0 : index
      %c0_126 = arith.constant 0 : index
      %189 = vector.load %arg34[%c0_125, %c0_126] : memref<2x32xf32, #tpu.memory_space<vmem>>, vector<2x32xf32>
      tpu.vector_store %arg34[%c0_125, %c0_126], %188 {strides = array<i32>} : memref<2x32xf32, #tpu.memory_space<vmem>>, vector<2x32xf32>,
      %c0_127 = arith.constant 0 : index
      %c0_128 = arith.constant 0 : index
      %190 = vector.load %arg4[%c0_127, %c0_128] : memref<2x64xf32, #tpu.memory_space<vmem>>, vector<2x64xf32>
      %c0_129 = arith.constant 0 : index
      %c0_130 = arith.constant 0 : index
      %191 = vector.load %arg35[%c0_129, %c0_130] : memref<2x64xf32, #tpu.memory_space<vmem>>, vector<2x64xf32>
      tpu.vector_store %arg35[%c0_129, %c0_130], %190 {strides = array<i32>} : memref<2x64xf32, #tpu.memory_space<vmem>>, vector<2x64xf32>,
      %c0_131 = arith.constant 0 : index
      %c0_132 = arith.constant 0 : index
      %192 = vector.load %arg5[%c0_131, %c0_132] : memref<2x8xf32, #tpu.memory_space<vmem>>, vector<2x8xf32>
      %c0_133 = arith.constant 0 : index
      %c0_134 = arith.constant 0 : index
      %193 = vector.load %arg36[%c0_133, %c0_134] : memref<2x8xf32, #tpu.memory_space<vmem>>, vector<2x8xf32>
      tpu.vector_store %arg36[%c0_133, %c0_134], %192 {strides = array<i32>} : memref<2x8xf32, #tpu.memory_space<vmem>>, vector<2x8xf32>,
    } else {
    }
    %c0 = arith.constant 0 : index
    %c0_1 = arith.constant 0 : index
    %3 = vector.load %arg33[%c0, %c0_1] : memref<2x32xf32, #tpu.memory_space<vmem>>, vector<2x32xf32>
    %c0_2 = arith.constant 0 : index
    %c0_3 = arith.constant 0 : index
    %4 = vector.load %arg34[%c0_2, %c0_3] : memref<2x32xf32, #tpu.memory_space<vmem>>, vector<2x32xf32>
    %c0_4 = arith.constant 0 : index
    %c0_5 = arith.constant 0 : index
    %5 = vector.load %arg35[%c0_4, %c0_5] : memref<2x64xf32, #tpu.memory_space<vmem>>, vector<2x64xf32>
    %c0_6 = arith.constant 0 : index
    %c0_7 = arith.constant 0 : index
    %6 = vector.load %arg36[%c0_6, %c0_7] : memref<2x8xf32, #tpu.memory_space<vmem>>, vector<2x8xf32>
    %c0_8 = arith.constant 0 : index
    %c0_9 = arith.constant 0 : index
    %c0_10 = arith.constant 0 : index
    %7 = vector.load %arg1[%c0_8, %c0_9, %c0_10] : memref<1x2x1xi32, #tpu.memory_space<vmem>>, vector<1x2x1xi32>
    %8 = vector.shape_cast %7 : vector<1x2x1xi32> to vector<2x1xi32>
    %9 = tpu.iota {dimensions = array<i32: 1>} : vector<2x50xi32>
    %10 = vector.broadcast %8 : vector<2x1xi32> to vector<2x50xi32>
    %11 = arith.cmpi eq, %10, %9 : vector<2x50xi32>
    %12 = arith.extui %11 : vector<2x50xi1> to vector<2x50xi32>
    %13 = arith.sitofp %12 : vector<2x50xi32> to vector<2x50xf32>
    %c0_11 = arith.constant 0 : index
    %c0_12 = arith.constant 0 : index
    %14 = vector.load %arg10[%c0_11, %c0_12] : memref<50x32xf32, #tpu.memory_space<vmem>>, vector<50x32xf32>
    %cst = arith.constant dense<0.000000e+00> : vector<2x32xf32>
    %15 = tpu.matmul %13, %14, %cst {dimension_numbers = #tpu.dot_dimension_numbers<[1], [0], [0], [1], [0, 0, 1, 1], [], []>} : vector<2x50xf32>, vector<50x32xf32>, vector<2x32xf32> -> vector<2x32xf32>
    %c0_13 = arith.constant 0 : index
    %c0_14 = arith.constant 0 : index
    %16 = vector.load %arg11[%c0_13, %c0_14] : memref<64x32xf32, #tpu.memory_space<vmem>>, vector<64x32xf32>
    %cst_15 = arith.constant dense<0.000000e+00> : vector<2x32xf32>
    %17 = tpu.matmul %5, %16, %cst_15 {dimension_numbers = #tpu.dot_dimension_numbers<[1], [0], [0], [1], [0, 0, 1, 1], [], []>} : vector<2x64xf32>, vector<64x32xf32>, vector<2x32xf32> -> vector<2x32xf32>
    %c0_16 = arith.constant 0 : index
    %c0_17 = arith.constant 0 : index
    %18 = vector.load %arg12[%c0_16, %c0_17] : memref<32x32xf32, #tpu.memory_space<vmem>>, vector<32x32xf32>
    %cst_18 = arith.constant dense<0.000000e+00> : vector<2x32xf32>
    %19 = tpu.matmul %15, %18, %cst_18 {dimension_numbers = #tpu.dot_dimension_numbers<[1], [0], [0], [1], [0, 0, 1, 1], [], []>} : vector<2x32xf32>, vector<32x32xf32>, vector<2x32xf32> -> vector<2x32xf32>
    %20 = arith.addf %17, %19 : vector<2x32xf32>
    %c0_19 = arith.constant 0 : index
    %c0_20 = arith.constant 0 : index
    %21 = vector.load %arg13[%c0_19, %c0_20] : memref<1x32xf32, #tpu.memory_space<vmem>>, vector<1x32xf32>
    %22 = vector.broadcast %21 : vector<1x32xf32> to vector<2x32xf32>
    %23 = arith.addf %20, %22 : vector<2x32xf32>
    %c0_21 = arith.constant 0 : index
    %c0_22 = arith.constant 0 : index
    %24 = vector.load %arg14[%c0_21, %c0_22] : memref<32x128xf32, #tpu.memory_space<vmem>>, vector<32x128xf32>
    %cst_23 = arith.constant dense<0.000000e+00> : vector<2x128xf32>
    %25 = tpu.matmul %23, %24, %cst_23 {dimension_numbers = #tpu.dot_dimension_numbers<[1], [0], [0], [1], [0, 0, 1, 1], [], []>} : vector<2x32xf32>, vector<32x128xf32>, vector<2x128xf32> -> vector<2x128xf32>
    %c0_24 = arith.constant 0 : index
    %c0_25 = arith.constant 0 : index
    %26 = vector.load %arg15[%c0_24, %c0_25] : memref<32x128xf32, #tpu.memory_space<vmem>>, vector<32x128xf32>
    %cst_26 = arith.constant dense<0.000000e+00> : vector<2x128xf32>
    %27 = tpu.matmul %3, %26, %cst_26 {dimension_numbers = #tpu.dot_dimension_numbers<[1], [0], [0], [1], [0, 0, 1, 1], [], []>} : vector<2x32xf32>, vector<32x128xf32>, vector<2x128xf32> -> vector<2x128xf32>
    %28 = arith.addf %25, %27 : vector<2x128xf32>
    %c0_27 = arith.constant 0 : index
    %c0_28 = arith.constant 0 : index
    %29 = vector.load %arg16[%c0_27, %c0_28] : memref<1x128xf32, #tpu.memory_space<vmem>>, vector<1x128xf32>
    %30 = vector.broadcast %29 : vector<1x128xf32> to vector<2x128xf32>
    %31 = arith.addf %28, %30 : vector<2x128xf32>
    %32 = vector.extract_strided_slice %31 {offsets = [0, 0], sizes = [2, 32], strides = [1, 1]} : vector<2x128xf32> to vector<2x32xf32>
    %33 = arith.negf %32 : vector<2x32xf32>
    %34 = math.exp %33 : vector<2x32xf32>
    %cst_29 = arith.constant 1.000000e+00 : f32
    %35 = vector.broadcast %cst_29 : f32 to vector<2x32xf32>
    %36 = arith.addf %35, %34 : vector<2x32xf32>
    %37 = arith.divf %35, %36 : vector<2x32xf32>
    %38 = vector.extract_strided_slice %31 {offsets = [0, 32], sizes = [2, 32], strides = [1, 1]} : vector<2x128xf32> to vector<2x32xf32>
    %39 = arith.negf %38 : vector<2x32xf32>
    %40 = math.exp %39 : vector<2x32xf32>
    %cst_30 = arith.constant 1.000000e+00 : f32
    %41 = vector.broadcast %cst_30 : f32 to vector<2x32xf32>
    %42 = arith.addf %41, %40 : vector<2x32xf32>
    %43 = arith.divf %41, %42 : vector<2x32xf32>
    %44 = vector.extract_strided_slice %31 {offsets = [0, 64], sizes = [2, 32], strides = [1, 1]} : vector<2x128xf32> to vector<2x32xf32>
    %45 = math.tanh %44 : vector<2x32xf32>
    %46 = vector.extract_strided_slice %31 {offsets = [0, 96], sizes = [2, 32], strides = [1, 1]} : vector<2x128xf32> to vector<2x32xf32>
    %47 = arith.negf %46 : vector<2x32xf32>
    %48 = math.exp %47 : vector<2x32xf32>
    %cst_31 = arith.constant 1.000000e+00 : f32
    %49 = vector.broadcast %cst_31 : f32 to vector<2x32xf32>
    %50 = arith.addf %49, %48 : vector<2x32xf32>
    %51 = arith.divf %49, %50 : vector<2x32xf32>
    %52 = arith.mulf %43, %4 : vector<2x32xf32>
    %53 = arith.mulf %37, %45 : vector<2x32xf32>
    %54 = arith.addf %52, %53 : vector<2x32xf32>
    %55 = math.tanh %54 : vector<2x32xf32>
    %56 = arith.mulf %51, %55 : vector<2x32xf32>
    %c0_32 = arith.constant 0 : index
    %c0_33 = arith.constant 0 : index
    %57 = vector.load %arg17[%c0_32, %c0_33] : memref<32x64xf32, #tpu.memory_space<vmem>>, vector<32x64xf32>
    %cst_34 = arith.constant dense<0.000000e+00> : vector<2x64xf32>
    %58 = tpu.matmul %56, %57, %cst_34 {dimension_numbers = #tpu.dot_dimension_numbers<[1], [0], [0], [1], [0, 0, 1, 1], [], []>} : vector<2x32xf32>, vector<32x64xf32>, vector<2x64xf32> -> vector<2x64xf32>
    %c0_35 = arith.constant 0 : index
    %c0_36 = arith.constant 0 : index
    %59 = vector.load %arg18[%c0_35, %c0_36] : memref<32x64xf32, #tpu.memory_space<vmem>>, vector<32x64xf32>
    %cst_37 = arith.constant dense<0.000000e+00> : vector<2x64xf32>
    %60 = tpu.matmul %54, %59, %cst_37 {dimension_numbers = #tpu.dot_dimension_numbers<[1], [0], [0], [1], [0, 0, 1, 1], [], []>} : vector<2x32xf32>, vector<32x64xf32>, vector<2x64xf32> -> vector<2x64xf32>
    %61 = arith.addf %58, %60 : vector<2x64xf32>
    %c0_38 = arith.constant 0 : index
    %c0_39 = arith.constant 0 : index
    %62 = vector.load %arg19[%c0_38, %c0_39] : memref<1x64xf32, #tpu.memory_space<vmem>>, vector<1x64xf32>
    %63 = vector.broadcast %62 : vector<1x64xf32> to vector<2x64xf32>
    %64 = arith.addf %61, %63 : vector<2x64xf32>
    %c0_40 = arith.constant 0 : index
    %c0_41 = arith.constant 0 : index
    %c0_42 = arith.constant 0 : index
    %65 = vector.load %arg7[%c0_40, %c0_41, %c0_42] : memref<2x8x64xf32, #tpu.memory_space<vmem>>, vector<2x8x64xf32>
    %66 = vector.shape_cast %64 : vector<2x64xf32> to vector<2x1x64xf32>
    %67 = vector.broadcast %66 : vector<2x1x64xf32> to vector<2x8x64xf32>
    %68 = arith.addf %65, %67 : vector<2x8x64xf32>
    %69 = vector.shape_cast %6 : vector<2x8xf32> to vector<2x8x1xf32>
    %c0_43 = arith.constant 0 : index
    %c0_44 = arith.constant 0 : index
    %70 = vector.load %arg20[%c0_43, %c0_44] : memref<1x64xf32, #tpu.memory_space<vmem>>, vector<1x64xf32>
    %71 = vector.shape_cast %70 : vector<1x64xf32> to vector<1x1x64xf32>
    %72 = vector.broadcast %69 : vector<2x8x1xf32> to vector<2x8x64xf32>
    %73 = vector.broadcast %71 : vector<1x1x64xf32> to vector<2x8x64xf32>
    %74 = arith.mulf %72, %73 : vector<2x8x64xf32>
    %75 = arith.addf %68, %74 : vector<2x8x64xf32>
    %76 = math.tanh %75 : vector<2x8x64xf32>
    %c0_45 = arith.constant 0 : index
    %c0_46 = arith.constant 0 : index
    %77 = vector.load %arg21[%c0_45, %c0_46] : memref<1x64xf32, #tpu.memory_space<vmem>>, vector<1x64xf32>
    %78 = vector.shape_cast %77 : vector<1x64xf32> to vector<1x1x64xf32>
    %79 = vector.broadcast %78 : vector<1x1x64xf32> to vector<2x8x64xf32>
    %80 = arith.mulf %76, %79 : vector<2x8x64xf32>
    %cst_47 = arith.constant dense<0.000000e+00> : vector<2x8xf32>
    %81 = vector.multi_reduction <add>, %80, %cst_47 [2] : vector<2x8x64xf32> to vector<2x8xf32>
    %cst_48 = arith.constant dense<0xFF800000> : vector<2xf32>
    %82 = vector.multi_reduction <maximumf>, %81, %cst_48 [1] : vector<2x8xf32> to vector<2xf32>
    %83 = vector.shape_cast %82 : vector<2xf32> to vector<2x1xf32>
    %84 = vector.broadcast %83 : vector<2x1xf32> to vector<2x8xf32>
    %85 = arith.subf %81, %84 : vector<2x8xf32>
    %86 = math.exp %85 : vector<2x8xf32>
    %c0_49 = arith.constant 0 : index
    %c0_50 = arith.constant 0 : index
    %87 = vector.load %arg8[%c0_49, %c0_50] : memref<2x8xf32, #tpu.memory_space<vmem>>, vector<2x8xf32>
    %88 = arith.mulf %86, %87 : vector<2x8xf32>
    %cst_51 = arith.constant dense<0.000000e+00> : vector<2xf32>
    %89 = vector.multi_reduction <add>, %88, %cst_51 [1] : vector<2x8xf32> to vector<2xf32>
    %90 = vector.shape_cast %89 : vector<2xf32> to vector<2x1xf32>
    %91 = tpu.reciprocal %90 {approx = true} : vector<2x1xf32> -> vector<2x1xf32>
    %92 = vector.broadcast %91 : vector<2x1xf32> to vector<2x8xf32>
    %93 = arith.mulf %88, %92 : vector<2x8xf32>
    %94 = vector.shape_cast %93 : vector<2x8xf32> to vector<2x1x8xf32>
    %c0_52 = arith.constant 0 : index
    %c0_53 = arith.constant 0 : index
    %c0_54 = arith.constant 0 : index
    %95 = vector.load %arg6[%c0_52, %c0_53, %c0_54] : memref<2x8x64xf32, #tpu.memory_space<vmem>>, vector<2x8x64xf32>
    %cst_55 = arith.constant dense<0.000000e+00> : vector<2x1x64xf32>
    %96 = tpu.matmul %94, %95, %cst_55 {dimension_numbers = #tpu.dot_dimension_numbers<[2], [1], [1], [2], [0, 0, 0, 1, 1, 2], [0], [0]>} : vector<2x1x8xf32>, vector<2x8x64xf32>, vector<2x1x64xf32> -> vector<2x1x64xf32>
    %97 = vector.shape_cast %96 : vector<2x1x64xf32> to vector<2x64xf32>
    %98 = arith.addf %6, %93 : vector<2x8xf32>
    %c0_56 = arith.constant 0 : index
    %c0_57 = arith.constant 0 : index
    %99 = vector.load %arg22[%c0_56, %c0_57] : memref<64x1xf32, #tpu.memory_space<vmem>>, vector<64x1xf32>
    %cst_58 = arith.constant dense<0.000000e+00> : vector<2x1xf32>
    %100 = tpu.matmul %97, %99, %cst_58 {dimension_numbers = #tpu.dot_dimension_numbers<[1], [0], [0], [1], [0, 0, 1, 1], [], []>} : vector<2x64xf32>, vector<64x1xf32>, vector<2x1xf32> -> vector<2x1xf32>
    %c0_59 = arith.constant 0 : index
    %c0_60 = arith.constant 0 : index
    %101 = vector.load %arg23[%c0_59, %c0_60] : memref<32x1xf32, #tpu.memory_space<vmem>>, vector<32x1xf32>
    %cst_61 = arith.constant dense<0.000000e+00> : vector<2x1xf32>
    %102 = tpu.matmul %56, %101, %cst_61 {dimension_numbers = #tpu.dot_dimension_numbers<[1], [0], [0], [1], [0, 0, 1, 1], [], []>} : vector<2x32xf32>, vector<32x1xf32>, vector<2x1xf32> -> vector<2x1xf32>
    %103 = arith.addf %100, %102 : vector<2x1xf32>
    %c0_62 = arith.constant 0 : index
    %c0_63 = arith.constant 0 : index
    %104 = vector.load %arg24[%c0_62, %c0_63] : memref<32x1xf32, #tpu.memory_space<vmem>>, vector<32x1xf32>
    %cst_64 = arith.constant dense<0.000000e+00> : vector<2x1xf32>
    %105 = tpu.matmul %54, %104, %cst_64 {dimension_numbers = #tpu.dot_dimension_numbers<[1], [0], [0], [1], [0, 0, 1, 1], [], []>} : vector<2x32xf32>, vector<32x1xf32>, vector<2x1xf32> -> vector<2x1xf32>
    %106 = arith.addf %103, %105 : vector<2x1xf32>
    %c0_65 = arith.constant 0 : index
    %c0_66 = arith.constant 0 : index
    %107 = vector.load %arg25[%c0_65, %c0_66] : memref<32x1xf32, #tpu.memory_space<vmem>>, vector<32x1xf32>
    %cst_67 = arith.constant dense<0.000000e+00> : vector<2x1xf32>
    %108 = tpu.matmul %23, %107, %cst_67 {dimension_numbers = #tpu.dot_dimension_numbers<[1], [0], [0], [1], [0, 0, 1, 1], [], []>} : vector<2x32xf32>, vector<32x1xf32>, vector<2x1xf32> -> vector<2x1xf32>
    %109 = arith.addf %106, %108 : vector<2x1xf32>
    %c0_68 = arith.constant 0 : index
    %c0_69 = arith.constant 0 : index
    %110 = vector.load %arg26[%c0_68, %c0_69] : memref<1x1xf32, #tpu.memory_space<vmem>>, vector<1x1xf32>
    %111 = vector.broadcast %110 : vector<1x1xf32> to vector<2x1xf32>
    %112 = arith.addf %109, %111 : vector<2x1xf32>
    %113 = arith.negf %112 : vector<2x1xf32>
    %114 = math.exp %113 : vector<2x1xf32>
    %cst_70 = arith.constant 1.000000e+00 : f32
    %115 = vector.broadcast %cst_70 : f32 to vector<2x1xf32>
    %116 = arith.addf %115, %114 : vector<2x1xf32>
    %117 = arith.divf %115, %116 : vector<2x1xf32>
    %c0_71 = arith.constant 0 : index
    %c0_72 = arith.constant 0 : index
    %118 = vector.load %arg27[%c0_71, %c0_72] : memref<32x32xf32, #tpu.memory_space<vmem>>, vector<32x32xf32>
    %cst_73 = arith.constant dense<0.000000e+00> : vector<2x32xf32>
    %119 = tpu.matmul %56, %118, %cst_73 {dimension_numbers = #tpu.dot_dimension_numbers<[1], [0], [0], [1], [0, 0, 1, 1], [], []>} : vector<2x32xf32>, vector<32x32xf32>, vector<2x32xf32> -> vector<2x32xf32>
    %c0_74 = arith.constant 0 : index
    %c0_75 = arith.constant 0 : index
    %120 = vector.load %arg28[%c0_74, %c0_75] : memref<64x32xf32, #tpu.memory_space<vmem>>, vector<64x32xf32>
    %cst_76 = arith.constant dense<0.000000e+00> : vector<2x32xf32>
    %121 = tpu.matmul %97, %120, %cst_76 {dimension_numbers = #tpu.dot_dimension_numbers<[1], [0], [0], [1], [0, 0, 1, 1], [], []>} : vector<2x64xf32>, vector<64x32xf32>, vector<2x32xf32> -> vector<2x32xf32>
    %122 = arith.addf %119, %121 : vector<2x32xf32>
    %c0_77 = arith.constant 0 : index
    %c0_78 = arith.constant 0 : index
    %123 = vector.load %arg29[%c0_77, %c0_78] : memref<1x32xf32, #tpu.memory_space<vmem>>, vector<1x32xf32>
    %124 = vector.broadcast %123 : vector<1x32xf32> to vector<2x32xf32>
    %125 = arith.addf %122, %124 : vector<2x32xf32>
    %c0_79 = arith.constant 0 : index
    %c0_80 = arith.constant 0 : index
    %126 = vector.load %arg30[%c0_79, %c0_80] : memref<32x50xf32, #tpu.memory_space<vmem>>, vector<32x50xf32>
    %cst_81 = arith.constant dense<0.000000e+00> : vector<2x50xf32>
    %127 = tpu.matmul %125, %126, %cst_81 {dimension_numbers = #tpu.dot_dimension_numbers<[1], [0], [0], [1], [0, 0, 1, 1], [], []>} : vector<2x32xf32>, vector<32x50xf32>, vector<2x50xf32> -> vector<2x50xf32>
    %c0_82 = arith.constant 0 : index
    %c0_83 = arith.constant 0 : index
    %128 = vector.load %arg31[%c0_82, %c0_83] : memref<1x50xf32, #tpu.memory_space<vmem>>, vector<1x50xf32>
    %129 = vector.broadcast %128 : vector<1x50xf32> to vector<2x50xf32>
    %130 = arith.addf %127, %129 : vector<2x50xf32>
    %cst_84 = arith.constant dense<0xFF800000> : vector<2xf32>
    %131 = vector.multi_reduction <maximumf>, %130, %cst_84 [1] : vector<2x50xf32> to vector<2xf32>
    %132 = vector.shape_cast %131 : vector<2xf32> to vector<2x1xf32>
    %133 = vector.broadcast %132 : vector<2x1xf32> to vector<2x50xf32>
    %134 = arith.subf %130, %133 : vector<2x50xf32>
    %135 = math.exp %134 : vector<2x50xf32>
    %cst_85 = arith.constant dense<0.000000e+00> : vector<2xf32>
    %136 = vector.multi_reduction <add>, %135, %cst_85 [1] : vector<2x50xf32> to vector<2xf32>
    %137 = vector.shape_cast %136 : vector<2xf32> to vector<2x1xf32>
    %138 = tpu.reciprocal %137 {approx = true} : vector<2x1xf32> -> vector<2x1xf32>
    %139 = vector.broadcast %138 : vector<2x1xf32> to vector<2x50xf32>
    %140 = arith.mulf %135, %139 : vector<2x50xf32>
    %141 = vector.broadcast %117 : vector<2x1xf32> to vector<2x50xf32>
    %142 = arith.mulf %141, %140 : vector<2x50xf32>
    %cst_86 = arith.constant 1.000000e+00 : f32
    %143 = vector.broadcast %cst_86 : f32 to vector<2x1xf32>
    %144 = arith.subf %143, %117 : vector<2x1xf32>
    %145 = vector.broadcast %144 : vector<2x1xf32> to vector<2x8xf32>
    %146 = arith.mulf %145, %93 : vector<2x8xf32>
    %147 = vector.shape_cast %146 : vector<2x8xf32> to vector<2x1x8xf32>
    %c0_87 = arith.constant 0 : index
    %c0_88 = arith.constant 0 : index
    %c0_89 = arith.constant 0 : index
    %148 = vector.load %arg9[%c0_87, %c0_88, %c0_89] : memref<2x8x56xf32, #tpu.memory_space<vmem>>, vector<2x8x56xf32>
    %cst_90 = arith.constant dense<0.000000e+00> : vector<2x1x56xf32>
    %149 = tpu.matmul %147, %148, %cst_90 {dimension_numbers = #tpu.dot_dimension_numbers<[2], [1], [1], [2], [0, 0, 0, 1, 1, 2], [0], [0]>} : vector<2x1x8xf32>, vector<2x8x56xf32>, vector<2x1x56xf32> -> vector<2x1x56xf32>
    %150 = vector.shape_cast %149 : vector<2x1x56xf32> to vector<2x56xf32>
    %151 = vector.extract_strided_slice %150 {offsets = [0, 0], sizes = [2, 50], strides = [1, 1]} : vector<2x56xf32> to vector<2x50xf32>
    %152 = arith.addf %151, %142 : vector<2x50xf32>
    %c0_91 = arith.constant 0 : index
    %c0_92 = arith.constant 0 : index
    %c0_93 = arith.constant 0 : index
    %153 = vector.load %arg32[%c0_91, %c0_92, %c0_93] : memref<1x2x256xf32, #tpu.memory_space<vmem>>, vector<1x2x50xf32>
    %154 = vector.shape_cast %153 : vector<1x2x50xf32> to vector<2x50xf32>
    %155 = vector.shape_cast %152 : vector<2x50xf32> to vector<1x2x50xf32>
    tpu.vector_store %arg32[%c0_91, %c0_92, %c0_93], %155 {strides = array<i32>} : memref<1x2x256xf32, #tpu.memory_space<vmem>>, vector<1x2x50xf32>,
    %156 = vector.extract_strided_slice %150 {offsets = [0, 50], sizes = [2, 6], strides = [1, 1]} : vector<2x56xf32> to vector<2x6xf32>
    %c0_94 = arith.constant 0 : index
    %c0_95 = arith.constant 0 : index
    %c50 = arith.constant 50 : index
    %157 = vector.load %arg32[%c0_94, %c0_95, %c50] : memref<1x2x256xf32, #tpu.memory_space<vmem>>, vector<1x2x6xf32>
    %158 = vector.shape_cast %157 : vector<1x2x6xf32> to vector<2x6xf32>
    %159 = vector.shape_cast %156 : vector<2x6xf32> to vector<1x2x6xf32>
    tpu.vector_store %arg32[%c0_94, %c0_95, %c50], %159 {strides = array<i32>} : memref<1x2x256xf32, #tpu.memory_space<vmem>>, vector<1x2x6xf32>,
    %c0_96 = arith.constant 0 : index
    %c0_97 = arith.constant 0 : index
    %c56 = arith.constant 56 : index
    %160 = vector.load %arg32[%c0_96, %c0_97, %c56] : memref<1x2x256xf32, #tpu.memory_space<vmem>>, vector<1x2x32xf32>
    %161 = vector.shape_cast %160 : vector<1x2x32xf32> to vector<2x32xf32>
    %162 = vector.shape_cast %56 : vector<2x32xf32> to vector<1x2x32xf32>
    tpu.vector_store %arg32[%c0_96, %c0_97, %c56], %162 {strides = array<i32>} : memref<1x2x256xf32, #tpu.memory_space<vmem>>, vector<1x2x32xf32>,
    %c0_98 = arith.constant 0 : index
    %c0_99 = arith.constant 0 : index
    %c88 = arith.constant 88 : index
    %163 = vector.load %arg32[%c0_98, %c0_99, %c88] : memref<1x2x256xf32, #tpu.memory_space<vmem>>, vector<1x2x32xf32>
    %164 = vector.shape_cast %163 : vector<1x2x32xf32> to vector<2x32xf32>
    %165 = vector.shape_cast %54 : vector<2x32xf32> to vector<1x2x32xf32>
    tpu.vector_store %arg32[%c0_98, %c0_99, %c88], %165 {strides = array<i32>} : memref<1x2x256xf32, #tpu.memory_space<vmem>>, vector<1x2x32xf32>,
    %c0_100 = arith.constant 0 : index
    %c0_101 = arith.constant 0 : index
    %c120 = arith.constant 120 : index
    %166 = vector.load %arg32[%c0_100, %c0_101, %c120] : memref<1x2x256xf32, #tpu.memory_space<vmem>>, vector<1x2x64xf32>
    %167 = vector.shape_cast %166 : vector<1x2x64xf32> to vector<2x64xf32>
    %168 = vector.shape_cast %97 : vector<2x64xf32> to vector<1x2x64xf32>
    tpu.vector_store %arg32[%c0_100, %c0_101, %c120], %168 {strides = array<i32>} : memref<1x2x256xf32, #tpu.memory_space<vmem>>, vector<1x2x64xf32>,
    %c0_102 = arith.constant 0 : index
    %c0_103 = arith.constant 0 : index
    %c184 = arith.constant 184 : index
    %169 = vector.load %arg32[%c0_102, %c0_103, %c184] : memref<1x2x256xf32, #tpu.memory_space<vmem>>, vector<1x2x8xf32>
    %170 = vector.shape_cast %169 : vector<1x2x8xf32> to vector<2x8xf32>
    %171 = vector.shape_cast %93 : vector<2x8xf32> to vector<1x2x8xf32>
    tpu.vector_store %arg32[%c0_102, %c0_103, %c184], %171 {strides = array<i32>} : memref<1x2x256xf32, #tpu.memory_space<vmem>>, vector<1x2x8xf32>,
    %c0_104 = arith.constant 0 : index
    %c0_105 = arith.constant 0 : index
    %c192 = arith.constant 192 : index
    %172 = vector.load %arg32[%c0_104, %c0_105, %c192] : memref<1x2x256xf32, #tpu.memory_space<vmem>>, vector<1x2x1xf32>
    %173 = vector.shape_cast %172 : vector<1x2x1xf32> to vector<2x1xf32>
    %174 = vector.shape_cast %117 : vector<2x1xf32> to vector<1x2x1xf32>
    tpu.vector_store %arg32[%c0_104, %c0_105, %c192], %174 {strides = array<i32>} : memref<1x2x256xf32, #tpu.memory_space<vmem>>, vector<1x2x1xf32>,
    %c0_106 = arith.constant 0 : index
    %c0_107 = arith.constant 0 : index
    %c193 = arith.constant 193 : index
    %175 = vector.load %arg32[%c0_106, %c0_107, %c193] : memref<1x2x256xf32, #tpu.memory_space<vmem>>, vector<1x2x8xf32>
    %176 = vector.shape_cast %175 : vector<1x2x8xf32> to vector<2x8xf32>
    %177 = vector.shape_cast %98 : vector<2x8xf32> to vector<1x2x8xf32>
    tpu.vector_store %arg32[%c0_106, %c0_107, %c193], %177 {strides = array<i32>} : memref<1x2x256xf32, #tpu.memory_space<vmem>>, vector<1x2x8xf32>,
    %cst_108 = arith.constant 0.000000e+00 : f32
    %178 = vector.broadcast %cst_108 : f32 to vector<2x55xf32>
    %c0_109 = arith.constant 0 : index
    %c0_110 = arith.constant 0 : index
    %c201 = arith.constant 201 : index
    %179 = vector.load %arg32[%c0_109, %c0_110, %c201] : memref<1x2x256xf32, #tpu.memory_space<vmem>>, vector<1x2x55xf32>
    %180 = vector.shape_cast %179 : vector<1x2x55xf32> to vector<2x55xf32>
    %181 = vector.shape_cast %178 : vector<2x55xf32> to vector<1x2x55xf32>
    tpu.vector_store %arg32[%c0_109, %c0_110, %c201], %181 {strides = array<i32>} : memref<1x2x256xf32, #tpu.memory_space<vmem>>, vector<1x2x55xf32>,
    %c0_111 = arith.constant 0 : index
    %c0_112 = arith.constant 0 : index
    %182 = vector.load %arg33[%c0_111, %c0_112] : memref<2x32xf32, #tpu.memory_space<vmem>>, vector<2x32xf32>
    tpu.vector_store %arg33[%c0_111, %c0_112], %56 {strides = array<i32>} : memref<2x32xf32, #tpu.memory_space<vmem>>, vector<2x32xf32>,
    %c0_113 = arith.constant 0 : index
    %c0_114 = arith.constant 0 : index
    %183 = vector.load %arg34[%c0_113, %c0_114] : memref<2x32xf32, #tpu.memory_space<vmem>>, vector<2x32xf32>
    tpu.vector_store %arg34[%c0_113, %c0_114], %54 {strides = array<i32>} : memref<2x32xf32, #tpu.memory_space<vmem>>, vector<2x32xf32>,
    %c0_115 = arith.constant 0 : index
    %c0_116 = arith.constant 0 : index
    %184 = vector.load %arg35[%c0_115, %c0_116] : memref<2x64xf32, #tpu.memory_space<vmem>>, vector<2x64xf32>
    tpu.vector_store %arg35[%c0_115, %c0_116], %97 {strides = array<i32>} : memref<2x64xf32, #tpu.memory_space<vmem>>, vector<2x64xf32>,
    %c0_117 = arith.constant 0 : index
    %c0_118 = arith.constant 0 : index
    %185 = vector.load %arg36[%c0_117, %c0_118] : memref<2x8xf32, #tpu.memory_space<vmem>>, vector<2x8xf32>
    tpu.vector_store %arg36[%c0_117, %c0_118], %98 {strides = array<i32>} : memref<2x8xf32, #tpu.memory_space<vmem>>, vector<2x8xf32>,
    return
  }
  func.func @transform_0(%arg0: i32) -> (i32, i32, i32) {
    %c0_i32 = arith.constant 0 : i32
    %c0_i32_0 = arith.constant 0 : i32
    %c0_i32_1 = arith.constant 0 : i32
    return %arg0, %c0_i32, %c0_i32_0 : i32, i32, i32
  }
  func.func @transform_1(%arg0: i32) -> (i32, i32) {
    %c0_i32 = arith.constant 0 : i32
    %c0_i32_0 = arith.constant 0 : i32
    %c0_i32_1 = arith.constant 0 : i32
    return %c0_i32, %c0_i32_0 : i32, i32
  }
  func.func @transform_2(%arg0: i32) -> (i32, i32) {
    %c0_i32 = arith.constant 0 : i32
    %c0_i32_0 = arith.constant 0 : i32
    %c0_i32_1 = arith.constant 0 : i32
    return %c0_i32, %c0_i32_0 : i32, i32
  }
  func.func @transform_3(%arg0: i32) -> (i32, i32) {
    %c0_i32 = arith.constant 0 : i32
    %c0_i32_0 = arith.constant 0 : i32
    %c0_i32_1 = arith.constant 0 : i32
    return %c0_i32, %c0_i32_0 : i32, i32
  }
  func.func @transform_4(%arg0: i32) -> (i32, i32) {
    %c0_i32 = arith.constant 0 : i32
    %c0_i32_0 = arith.constant 0 : i32
    %c0_i32_1 = arith.constant 0 : i32
    return %c0_i32, %c0_i32_0 : i32, i32
  }
  func.func @transform_5(%arg0: i32) -> (i32, i32, i32) {
    %c0_i32 = arith.constant 0 : i32
    %c0_i32_0 = arith.constant 0 : i32
    %c0_i32_1 = arith.constant 0 : i32
    %c0_i32_2 = arith.constant 0 : i32
    return %c0_i32, %c0_i32_0, %c0_i32_1 : i32, i32, i32
  }
  func.func @transform_6(%arg0: i32) -> (i32, i32, i32) {
    %c0_i32 = arith.constant 0 : i32
    %c0_i32_0 = arith.constant 0 : i32
    %c0_i32_1 = arith.constant 0 : i32
    %c0_i32_2 = arith.constant 0 : i32
    return %c0_i32, %c0_i32_0, %c0_i32_1 : i32, i32, i32
  }
  func.func @transform_7(%arg0: i32) -> (i32, i32) {
    %c0_i32 = arith.constant 0 : i32
    %c0_i32_0 = arith.constant 0 : i32
    %c0_i32_1 = arith.constant 0 : i32
    return %c0_i32, %c0_i32_0 : i32, i32
  }
  func.func @transform_8(%arg0: i32) -> (i32, i32, i32) {
    %c0_i32 = arith.constant 0 : i32
    %c0_i32_0 = arith.constant 0 : i32
    %c0_i32_1 = arith.constant 0 : i32
    %c0_i32_2 = arith.constant 0 : i32
    return %c0_i32, %c0_i32_0, %c0_i32_1 : i32, i32, i32
  }
  func.func @transform_9(%arg0: i32) -> (i32, i32) {
    %c0_i32 = arith.constant 0 : i32
    %c0_i32_0 = arith.constant 0 : i32
    %c0_i32_1 = arith.constant 0 : i32
    return %c0_i32, %c0_i32_0 : i32, i32
  }
  func.func @transform_10(%arg0: i32) -> (i32, i32) {
    %c0_i32 = arith.constant 0 : i32
    %c0_i32_0 = arith.constant 0 : i32
    %c0_i32_1 = arith.constant 0 : i32
    return %c0_i32, %c0_i32_0 : i32, i32
  }
  func.func @transform_11(%arg0: i32) -> (i32, i32) {
    %c0_i32 = arith.constant 0 : i32
    %c0_i32_0 = arith.constant 0 : i32
    %c0_i32_1 = arith.constant 0 : i32
    return %c0_i32, %c0_i32_0 : i32, i32
  }
  func.func @transform_12(%arg0: i32) -> (i32, i32) {
    %c0_i32 = arith.constant 0 : i32
    %c0_i32_0 = arith.constant 0 : i32
    %c0_i32_1 = arith.constant 0 : i32
    return %c0_i32, %c0_i32_0 : i32, i32
  }
  func.func @transform_13(%arg0: i32) -> (i32, i32) {
    %c0_i32 = arith.constant 0 : i32
    %c0_i32_0 = arith.constant 0 : i32
    %c0_i32_1 = arith.constant 0 : i32
    return %c0_i32, %c0_i32_0 : i32, i32
  }
  func.func @transform_14(%arg0: i32) -> (i32, i32) {
    %c0_i32 = arith.constant 0 : i32
    %c0_i32_0 = arith.constant 0 : i32
    %c0_i32_1 = arith.constant 0 : i32
    return %c0_i32, %c0_i32_0 : i32, i32
  }
  func.func @transform_15(%arg0: i32) -> (i32, i32) {
    %c0_i32 = arith.constant 0 : i32
    %c0_i32_0 = arith.constant 0 : i32
    %c0_i32_1 = arith.constant 0 : i32
    return %c0_i32, %c0_i32_0 : i32, i32
  }
  func.func @transform_16(%arg0: i32) -> (i32, i32) {
    %c0_i32 = arith.constant 0 : i32
    %c0_i32_0 = arith.constant 0 : i32
    %c0_i32_1 = arith.constant 0 : i32
    return %c0_i32, %c0_i32_0 : i32, i32
  }
  func.func @transform_17(%arg0: i32) -> (i32, i32) {
    %c0_i32 = arith.constant 0 : i32
    %c0_i32_0 = arith.constant 0 : i32
    %c0_i32_1 = arith.constant 0 : i32
    return %c0_i32, %c0_i32_0 : i32, i32
  }
  func.func @transform_18(%arg0: i32) -> (i32, i32) {
    %c0_i32 = arith.constant 0 : i32
    %c0_i32_0 = arith.constant 0 : i32
    %c0_i32_1 = arith.constant 0 : i32
    return %c0_i32, %c0_i32_0 : i32, i32
  }
  func.func @transform_19(%arg0: i32) -> (i32, i32) {
    %c0_i32 = arith.constant 0 : i32
    %c0_i32_0 = arith.constant 0 : i32
    %c0_i32_1 = arith.constant 0 : i32
    return %c0_i32, %c0_i32_0 : i32, i32
  }
  func.func @transform_20(%arg0: i32) -> (i32, i32) {
    %c0_i32 = arith.constant 0 : i32
    %c0_i32_0 = arith.constant 0 : i32
    %c0_i32_1 = arith.constant 0 : i32
    return %c0_i32, %c0_i32_0 : i32, i32
  }
  func.func @transform_21(%arg0: i32) -> (i32, i32) {
    %c0_i32 = arith.constant 0 : i32
    %c0_i32_0 = arith.constant 0 : i32
    %c0_i32_1 = arith.constant 0 : i32
    return %c0_i32, %c0_i32_0 : i32, i32
  }
  func.func @transform_22(%arg0: i32) -> (i32, i32) {
    %c0_i32 = arith.constant 0 : i32
    %c0_i32_0 = arith.constant 0 : i32
    %c0_i32_1 = arith.constant 0 : i32
    return %c0_i32, %c0_i32_0 : i32, i32
  }
  func.func @transform_23(%arg0: i32) -> (i32, i32) {
    %c0_i32 = arith.constant 0 : i32
    %c0_i32_0 = arith.constant 0 : i32
    %c0_i32_1 = arith.constant 0 : i32
    return %c0_i32, %c0_i32_0 : i32, i32
  }
  func.func @transform_24(%arg0: i32) -> (i32, i32) {
    %c0_i32 = arith.constant 0 : i32
    %c0_i32_0 = arith.constant 0 : i32
    %c0_i32_1 = arith.constant 0 : i32
    return %c0_i32, %c0_i32_0 : i32, i32
  }
  func.func @transform_25(%arg0: i32) -> (i32, i32) {
    %c0_i32 = arith.constant 0 : i32
    %c0_i32_0 = arith.constant 0 : i32
    %c0_i32_1 = arith.constant 0 : i32
    return %c0_i32, %c0_i32_0 : i32, i32
  }
  func.func @transform_26(%arg0: i32) -> (i32, i32) {
    %c0_i32 = arith.constant 0 : i32
    %c0_i32_0 = arith.constant 0 : i32
    %c0_i32_1 = arith.constant 0 : i32
    return %c0_i32, %c0_i32_0 : i32, i32
  }
  func.func @transform_27(%arg0: i32) -> (i32, i32) {
    %c0_i32 = arith.constant 0 : i32
    %c0_i32_0 = arith.constant 0 : i32
    %c0_i32_1 = arith.constant 0 : i32
    return %c0_i32, %c0_i32_0 : i32, i32
  }
  func.func @transform_28(%arg0: i32) -> (i32, i32) {
    %c0_i32 = arith.constant 0 : i32
    %c0_i32_0 = arith.constant 0 : i32
    %c0_i32_1 = arith.constant 0 : i32
    return %c0_i32, %c0_i32_0 : i32, i32
  }
  func.func @transform_29(%arg0: i32) -> (i32, i32) {
    %c0_i32 = arith.constant 0 : i32
    %c0_i32_0 = arith.constant 0 : i32
    %c0_i32_1 = arith.constant 0 : i32
    return %c0_i32, %c0_i32_0 : i32, i32
  }
  func.func @transform_30(%arg0: i32) -> (i32, i32) {
    %c0_i32 = arith.constant 0 : i32
    %c0_i32_0 = arith.constant 0 : i32
    %c0_i32_1 = arith.constant 0 : i32
    return %c0_i32, %c0_i32_0 : i32, i32
  }
  func.func @transform_31(%arg0: i32) -> (i32, i32, i32) {
    %c0_i32 = arith.constant 0 : i32
    %c0_i32_0 = arith.constant 0 : i32
    %c0_i32_1 = arith.constant 0 : i32
    return %arg0, %c0_i32, %c0_i32_0 : i32, i32, i32
  }
}

</mosaic_0001>

<llo_original>
// kernel: tpu_custom_call.1
$region0: #{tpu_custom_call.1}
  #allocation0 [shape = 'u32[]', space=smem, size = 0x4, offset = 0x4, fixed_abs, tag = 'smem constant byte address 0x4 - core index']
  #allocation1 [shape = 'u32[144,128]{1,0:T(1,128)}', space=vmem, size = 0x12000, scoped, tag = 'internal scratch']
  #allocation2 [shape = 'f32[2,32]{1,0:T(2,128)}', space=vmem, size = 0x400, scoped, tag = 'scratch operand']
  #allocation3 [shape = 'f32[2,32]{1,0:T(2,128)}', space=vmem, size = 0x400, scoped, tag = 'scratch operand']
  #allocation4 [shape = 'f32[2,64]{1,0:T(2,128)}', space=vmem, size = 0x400, scoped, tag = 'scratch operand']
  #allocation5 [shape = 'f32[2,8]{1,0:T(2,128)}', space=vmem, size = 0x400, scoped, tag = 'scratch operand']
  #allocation6 [shape = 'f32[1,1]{1,0:T(1,128)S(1)}', space=vmem, size = 0x200, scoped, tag = 'scoped memory for tpu_custom_call.1']
  %s0 = inlined_call_operand.smem [shape: u32[32], index: -1, kind: input, shape index: {}]
  %s1 = sld [smem:[%s0]]
  %s2 = scalar_lea.smem %s0, 1
  %s3 = sld [smem:[%s2]]
  %s4 = scalar_lea.smem %s0, 2
  %s5 = sld [smem:[%s4]]
  %s6 = scalar_lea.smem %s0, 3
  %s7 = sld [smem:[%s6]]
  %s8 = scalar_lea.smem %s0, 4
  %s9 = sld [smem:[%s8]]
  %s10 = scalar_lea.smem %s0, 5
  %s11 = sld [smem:[%s10]]
  %s12 = scalar_lea.smem %s0, 6
  %s13 = sld [smem:[%s12]]
  %s14 = scalar_lea.smem %s0, 7
  %s15 = sld [smem:[%s14]]
  %s16 = scalar_lea.smem %s0, 8
  %s17 = sld [smem:[%s16]]
  %s18 = scalar_lea.smem %s0, 9
  %s19 = sld [smem:[%s18]]
  %s20 = scalar_lea.smem %s0, 10
  %s21 = sld [smem:[%s20]]
  %s22 = scalar_lea.smem %s0, 11
  %s23 = sld [smem:[%s22]]
  %s24 = scalar_lea.smem %s0, 12
  %s25 = sld [smem:[%s24]]
  %s26 = scalar_lea.smem %s0, 13
  %s27 = sld [smem:[%s26]]
  %s28 = scalar_lea.smem %s0, 14
  %s29 = sld [smem:[%s28]]
  %s30 = scalar_lea.smem %s0, 15
  %s31 = sld [smem:[%s30]]
  %s32 = scalar_lea.smem %s0, 16
  %s33 = sld [smem:[%s32]]
  %s34 = scalar_lea.smem %s0, 17
  %s35 = sld [smem:[%s34]]
  %s36 = scalar_lea.smem %s0, 18
  %s37 = sld [smem:[%s36]]
  %s38 = scalar_lea.smem %s0, 19
  %s39 = sld [smem:[%s38]]
  %s40 = scalar_lea.smem %s0, 20
  %s41 = sld [smem:[%s40]]
  %s42 = scalar_lea.smem %s0, 21
  %s43 = sld [smem:[%s42]]
  %s44 = scalar_lea.smem %s0, 22
  %s45 = sld [smem:[%s44]]
  %s46 = scalar_lea.smem %s0, 23
  %s47 = sld [smem:[%s46]]
  %s48 = scalar_lea.smem %s0, 24
  %s49 = sld [smem:[%s48]]
  %s50 = scalar_lea.smem %s0, 25
  %s51 = sld [smem:[%s50]]
  %s52 = scalar_lea.smem %s0, 26
  %s53 = sld [smem:[%s52]]
  %s54 = scalar_lea.smem %s0, 27
  %s55 = sld [smem:[%s54]]
  %s56 = scalar_lea.smem %s0, 28
  %s57 = sld [smem:[%s56]]
  %s58 = scalar_lea.smem %s0, 29
  %s59 = sld [smem:[%s58]]
  %s60 = scalar_lea.smem %s0, 30
  %s61 = sld [smem:[%s60]]
  %s62 = scalar_lea.smem %s0, 31
  %s63 = sld [smem:[%s62]]
  %s64 = sld [smem:[#allocation0]]
  $region161: #{tpu_custom_call.1} parent=0
    _
  %s66 = ssub.s32 1, %s64
  %s67 = scalar_select 0, %s66, %s64
  %v68 = vstv %s51
  %69 = vst [vmem:[#allocation6] sm:$0x1] %v68
  $region1: #{tpu_custom_call.1} parent=0
    #allocation7 [shape = 'u8[4096]{0}', space=vmem, size = 0x1000, scoped, tag = 'output window, operand 0']
    #allocation8 [shape = 's32[2]{0}', space=sflag, size = 0x8, scoped, tag = 'scoped memory for tpu_custom_call.1']
    %70 = vsyncpa [#allocation8], 0
    %s71 = scalar_lea.sflag [#allocation8], 1
    %72 = vsyncpa %s71, 0
    loop: start=0, step=1, limit=6
    $region2: #{tpu_custom_call.1} parent=1 // loop_pre_header
      _
    $region3: #{tpu_custom_call.1} parent=1 // loop_header
      %s74 = sphi 0, %s78
      %p75 = scmp.ge.s32.totalorder %s74, 6
      %s84 = sphi 0, %s86
      %s87 = sphi 0, %s84
      %s88 = sphi 0, %s87
      %s104 = sphi 0, %s88
      %s108 = sphi 0, %s108
      %s110 = sphi 0, %s108
      %s111 = sphi 0, %s110
      %s125 = sphi 0, %s111
      %s129 = sphi 0, %s129
      %s131 = sphi 0, %s129
      %s132 = sphi 0, %s131
      %s146 = sphi 0, %s132
      %s150 = sphi 0, %s150
      %s152 = sphi 0, %s150
      %s153 = sphi 0, %s152
      %s167 = sphi 0, %s153
      %s171 = sphi 0, %s171
      %s173 = sphi 0, %s171
      %s174 = sphi 0, %s173
      %s188 = sphi 0, %s174
      %s192 = sphi 0, %s192
      %s194 = sphi 0, %s192
      %s195 = sphi 0, %s194
      %s209 = sphi 0, %s195
      %s213 = sphi 0, %s213
      %s215 = sphi 0, %s213
      %s216 = sphi 0, %s215
      %s230 = sphi 0, %s216
      %s234 = sphi 0, %s234
      %s236 = sphi 0, %s234
      %s237 = sphi 0, %s236
      %s251 = sphi 0, %s237
      %s255 = sphi 0, %s255
      %s257 = sphi 0, %s255
      %s258 = sphi 0, %s257
      %s272 = sphi 0, %s258
      %s276 = sphi 0, %s276
      %s278 = sphi 0, %s276
      %s279 = sphi 0, %s278
      %s293 = sphi 0, %s279
      %s297 = sphi 0, %s297
      %s299 = sphi 0, %s297
      %s300 = sphi 0, %s299
      %s314 = sphi 0, %s300
      %s318 = sphi 0, %s318
      %s320 = sphi 0, %s318
      %s321 = sphi 0, %s320
      %s335 = sphi 0, %s321
      %s339 = sphi 0, %s339
      %s341 = sphi 0, %s339
      %s342 = sphi 0, %s341
      %s356 = sphi 0, %s342
      %s360 = sphi 0, %s360
      %s362 = sphi 0, %s360
      %s363 = sphi 0, %s362
      %s377 = sphi 0, %s363
      %s381 = sphi 0, %s381
      %s383 = sphi 0, %s381
      %s384 = sphi 0, %s383
      %s398 = sphi 0, %s384
      %s402 = sphi 0, %s402
      %s404 = sphi 0, %s402
      %s405 = sphi 0, %s404
      %s419 = sphi 0, %s405
      %s423 = sphi 0, %s423
      %s425 = sphi 0, %s423
      %s426 = sphi 0, %s425
      %s440 = sphi 0, %s426
      %s444 = sphi 0, %s444
      %s446 = sphi 0, %s444
      %s447 = sphi 0, %s446
      %s461 = sphi 0, %s447
      %s465 = sphi 0, %s465
      %s467 = sphi 0, %s465
      %s468 = sphi 0, %s467
      %s482 = sphi 0, %s468
      %s486 = sphi 0, %s486
      %s488 = sphi 0, %s486
      %s489 = sphi 0, %s488
      %s503 = sphi 0, %s489
      %s507 = sphi 0, %s507
      %s509 = sphi 0, %s507
      %s510 = sphi 0, %s509
      %s524 = sphi 0, %s510
      %s528 = sphi 0, %s528
      %s530 = sphi 0, %s528
      %s531 = sphi 0, %s530
      %s545 = sphi 0, %s531
      %s549 = sphi 0, %s549
      %s551 = sphi 0, %s549
      %s552 = sphi 0, %s551
      %s566 = sphi 0, %s552
      %s570 = sphi 0, %s570
      %s572 = sphi 0, %s570
      %s573 = sphi 0, %s572
      %s587 = sphi 0, %s573
      %s591 = sphi 0, %s591
      %s593 = sphi 0, %s591
      %s594 = sphi 0, %s593
      %s608 = sphi 0, %s594
      %s612 = sphi 0, %s612
      %s614 = sphi 0, %s612
      %s615 = sphi 0, %s614
      %s629 = sphi 0, %s615
      %s633 = sphi 0, %s633
      %s635 = sphi 0, %s633
      %s636 = sphi 0, %s635
      %s650 = sphi 0, %s636
      %s654 = sphi 0, %s654
      %s656 = sphi 0, %s654
      %s657 = sphi 0, %s656
      %s671 = sphi 0, %s657
      %s675 = sphi 0, %s675
      %s677 = sphi 0, %s675
      %s678 = sphi 0, %s677
      %s692 = sphi 0, %s678
      %s696 = sphi 0, %s696
      %s698 = sphi 0, %s696
      %s699 = sphi 0, %s698
      %s713 = sphi 0, %s699
      %s717 = sphi 0, %s717
      %s719 = sphi 0, %s717
      %s720 = sphi 0, %s719
      %s734 = sphi 0, %s720
      %s740 = sphi 0, %s742
      %s743 = sphi 0, %s740
      %s744 = sphi 0, %s743
      %s760 = sphi 0, %s744
    $region4: #{tpu_custom_call.1} parent=1 // loop_header_branch
      %77 = sbr.rel (%p75) target = $region8
    $region5: #{tpu_custom_call.1} parent=1 // loop_body
      %s79 = ssub.s32 %s74, 1
      %s80 = ssub.s32 %s74, 2
      %s81 = sadd.s32 %s74, 1
      %s82 = ssub.s32 %s74, %s81
      %p83 = scmp.eq.s32.totalorder %s82, 0
      %s85 = sadd.s32 %s84, 1
      %s86 = scalar_select %p83, %s84, %s85
      %p89 = pneg %p83
      %p90 = scmp.eq.s32.totalorder %s74, 3
      %p91 = por %p89, %p90
      %p92 = scmp.ne.s32.totalorder %s84, %s87
      %p93 = scmp.eq.s32.totalorder %s74, 0
      %p94 = por %p92, %p93
      %p95 = scmp.ne.s32.totalorder %s84, %s87
      %p96 = scmp.eq.s32.totalorder %s79, 3
      %p97 = por %p95, %p96
      %p98 = scmp.ne.s32.totalorder %s87, %s88
      %p99 = scmp.eq.s32.totalorder %s79, 0
      %p100 = por %p98, %p99
      %p101 = scmp.ne.s32.totalorder %s87, %s88
      %p102 = scmp.eq.s32.totalorder %s80, 3
      %p103 = por %p101, %p102
      %p105 = scmp.ne.s32.totalorder %s88, %s104
      %p106 = scmp.eq.s32.totalorder %s80, 0
      %p107 = por %p105, %p106
      %s109 = sadd.s32 %s108, 1
      %p112 = scmp.eq.s32.totalorder %s74, 3
      %p113 = scmp.ne.s32.totalorder %s108, %s110
      %p114 = scmp.eq.s32.totalorder %s74, 0
      %p115 = por %p113, %p114
      %p116 = scmp.ne.s32.totalorder %s108, %s110
      %p117 = scmp.eq.s32.totalorder %s79, 3
      %p118 = por %p116, %p117
      %p119 = scmp.ne.s32.totalorder %s110, %s111
      %p120 = scmp.eq.s32.totalorder %s79, 0
      %p121 = por %p119, %p120
      %p122 = scmp.ne.s32.totalorder %s110, %s111
      %p123 = scmp.eq.s32.totalorder %s80, 3
      %p124 = por %p122, %p123
      %p126 = scmp.ne.s32.totalorder %s111, %s125
      %p127 = scmp.eq.s32.totalorder %s80, 0
      %p128 = por %p126, %p127
      %s130 = sadd.s32 %s129, 1
      %p133 = scmp.eq.s32.totalorder %s74, 3
      %p134 = scmp.ne.s32.totalorder %s129, %s131
      %p135 = scmp.eq.s32.totalorder %s74, 0
      %p136 = por %p134, %p135
      %p137 = scmp.ne.s32.totalorder %s129, %s131
      %p138 = scmp.eq.s32.totalorder %s79, 3
      %p139 = por %p137, %p138
      %p140 = scmp.ne.s32.totalorder %s131, %s132
      %p141 = scmp.eq.s32.totalorder %s79, 0
      %p142 = por %p140, %p141
      %p143 = scmp.ne.s32.totalorder %s131, %s132
      %p144 = scmp.eq.s32.totalorder %s80, 3
      %p145 = por %p143, %p144
      %p147 = scmp.ne.s32.totalorder %s132, %s146
      %p148 = scmp.eq.s32.totalorder %s80, 0
      %p149 = por %p147, %p148
      %s151 = sadd.s32 %s150, 1
      %p154 = scmp.eq.s32.totalorder %s74, 3
      %p155 = scmp.ne.s32.totalorder %s150, %s152
      %p156 = scmp.eq.s32.totalorder %s74, 0
      %p157 = por %p155, %p156
      %p158 = scmp.ne.s32.totalorder %s150, %s152
      %p159 = scmp.eq.s32.totalorder %s79, 3
      %p160 = por %p158, %p159
      %p161 = scmp.ne.s32.totalorder %s152, %s153
      %p162 = scmp.eq.s32.totalorder %s79, 0
      %p163 = por %p161, %p162
      %p164 = scmp.ne.s32.totalorder %s152, %s153
      %p165 = scmp.eq.s32.totalorder %s80, 3
      %p166 = por %p164, %p165
      %p168 = scmp.ne.s32.totalorder %s153, %s167
      %p169 = scmp.eq.s32.totalorder %s80, 0
      %p170 = por %p168, %p169
      %s172 = sadd.s32 %s171, 1
      %p175 = scmp.eq.s32.totalorder %s74, 3
      %p176 = scmp.ne.s32.totalorder %s171, %s173
      %p177 = scmp.eq.s32.totalorder %s74, 0
      %p178 = por %p176, %p177
      %p179 = scmp.ne.s32.totalorder %s171, %s173
      %p180 = scmp.eq.s32.totalorder %s79, 3
      %p181 = por %p179, %p180
      %p182 = scmp.ne.s32.totalorder %s173, %s174
      %p183 = scmp.eq.s32.totalorder %s79, 0
      %p184 = por %p182, %p183
      %p185 = scmp.ne.s32.totalorder %s173, %s174
      %p186 = scmp.eq.s32.totalorder %s80, 3
      %p187 = por %p185, %p186
      %p189 = scmp.ne.s32.totalorder %s174, %s188
      %p190 = scmp.eq.s32.totalorder %s80, 0
      %p191 = por %p189, %p190
      %s193 = sadd.s32 %s192, 1
      %p196 = scmp.eq.s32.totalorder %s74, 3
      %p197 = scmp.ne.s32.totalorder %s192, %s194
      %p198 = scmp.eq.s32.totalorder %s74, 0
      %p199 = por %p197, %p198
      %p200 = scmp.ne.s32.totalorder %s192, %s194
      %p201 = scmp.eq.s32.totalorder %s79, 3
      %p202 = por %p200, %p201
      %p203 = scmp.ne.s32.totalorder %s194, %s195
      %p204 = scmp.eq.s32.totalorder %s79, 0
      %p205 = por %p203, %p204
      %p206 = scmp.ne.s32.totalorder %s194, %s195
      %p207 = scmp.eq.s32.totalorder %s80, 3
      %p208 = por %p206, %p207
      %p210 = scmp.ne.s32.totalorder %s195, %s209
      %p211 = scmp.eq.s32.totalorder %s80, 0
      %p212 = por %p210, %p211
      %s214 = sadd.s32 %s213, 1
      %p217 = scmp.eq.s32.totalorder %s74, 3
      %p218 = scmp.ne.s32.totalorder %s213, %s215
      %p219 = scmp.eq.s32.totalorder %s74, 0
      %p220 = por %p218, %p219
      %p221 = scmp.ne.s32.totalorder %s213, %s215
      %p222 = scmp.eq.s32.totalorder %s79, 3
      %p223 = por %p221, %p222
      %p224 = scmp.ne.s32.totalorder %s215, %s216
      %p225 = scmp.eq.s32.totalorder %s79, 0
      %p226 = por %p224, %p225
      %p227 = scmp.ne.s32.totalorder %s215, %s216
      %p228 = scmp.eq.s32.totalorder %s80, 3
      %p229 = por %p227, %p228
      %p231 = scmp.ne.s32.totalorder %s216, %s230
      %p232 = scmp.eq.s32.totalorder %s80, 0
      %p233 = por %p231, %p232
      %s235 = sadd.s32 %s234, 1
      %p238 = scmp.eq.s32.totalorder %s74, 3
      %p239 = scmp.ne.s32.totalorder %s234, %s236
      %p240 = scmp.eq.s32.totalorder %s74, 0
      %p241 = por %p239, %p240
      %p242 = scmp.ne.s32.totalorder %s234, %s236
      %p243 = scmp.eq.s32.totalorder %s79, 3
      %p244 = por %p242, %p243
      %p245 = scmp.ne.s32.totalorder %s236, %s237
      %p246 = scmp.eq.s32.totalorder %s79, 0
      %p247 = por %p245, %p246
      %p248 = scmp.ne.s32.totalorder %s236, %s237
      %p249 = scmp.eq.s32.totalorder %s80, 3
      %p250 = por %p248, %p249
      %p252 = scmp.ne.s32.totalorder %s237, %s251
      %p253 = scmp.eq.s32.totalorder %s80, 0
      %p254 = por %p252, %p253
      %s256 = sadd.s32 %s255, 1
      %p259 = scmp.eq.s32.totalorder %s74, 3
      %p260 = scmp.ne.s32.totalorder %s255, %s257
      %p261 = scmp.eq.s32.totalorder %s74, 0
      %p262 = por %p260, %p261
      %p263 = scmp.ne.s32.totalorder %s255, %s257
      %p264 = scmp.eq.s32.totalorder %s79, 3
      %p265 = por %p263, %p264
      %p266 = scmp.ne.s32.totalorder %s257, %s258
      %p267 = scmp.eq.s32.totalorder %s79, 0
      %p268 = por %p266, %p267
      %p269 = scmp.ne.s32.totalorder %s257, %s258
      %p270 = scmp.eq.s32.totalorder %s80, 3
      %p271 = por %p269, %p270
      %p273 = scmp.ne.s32.totalorder %s258, %s272
      %p274 = scmp.eq.s32.totalorder %s80, 0
      %p275 = por %p273, %p274
      %s277 = sadd.s32 %s276, 1
      %p280 = scmp.eq.s32.totalorder %s74, 3
      %p281 = scmp.ne.s32.totalorder %s276, %s278
      %p282 = scmp.eq.s32.totalorder %s74, 0
      %p283 = por %p281, %p282
      %p284 = scmp.ne.s32.totalorder %s276, %s278
      %p285 = scmp.eq.s32.totalorder %s79, 3
      %p286 = por %p284, %p285
      %p287 = scmp.ne.s32.totalorder %s278, %s279
      %p288 = scmp.eq.s32.totalorder %s79, 0
      %p289 = por %p287, %p288
      %p290 = scmp.ne.s32.totalorder %s278, %s279
      %p291 = scmp.eq.s32.totalorder %s80, 3
      %p292 = por %p290, %p291
      %p294 = scmp.ne.s32.totalorder %s279, %s293
      %p295 = scmp.eq.s32.totalorder %s80, 0
      %p296 = por %p294, %p295
      %s298 = sadd.s32 %s297, 1
      %p301 = scmp.eq.s32.totalorder %s74, 3
      %p302 = scmp.ne.s32.totalorder %s297, %s299
      %p303 = scmp.eq.s32.totalorder %s74, 0
      %p304 = por %p302, %p303
      %p305 = scmp.ne.s32.totalorder %s297, %s299
      %p306 = scmp.eq.s32.totalorder %s79, 3
      %p307 = por %p305, %p306
      %p308 = scmp.ne.s32.totalorder %s299, %s300
      %p309 = scmp.eq.s32.totalorder %s79, 0
      %p310 = por %p308, %p309
      %p311 = scmp.ne.s32.totalorder %s299, %s300
      %p312 = scmp.eq.s32.totalorder %s80, 3
      %p313 = por %p311, %p312
      %p315 = scmp.ne.s32.totalorder %s300, %s314
      %p316 = scmp.eq.s32.totalorder %s80, 0
      %p317 = por %p315, %p316
      %s319 = sadd.s32 %s318, 1
      %p322 = scmp.eq.s32.totalorder %s74, 3
      %p323 = scmp.ne.s32.totalorder %s318, %s320
      %p324 = scmp.eq.s32.totalorder %s74, 0
      %p325 = por %p323, %p324
      %p326 = scmp.ne.s32.totalorder %s318, %s320
      %p327 = scmp.eq.s32.totalorder %s79, 3
      %p328 = por %p326, %p327
      %p329 = scmp.ne.s32.totalorder %s320, %s321
      %p330 = scmp.eq.s32.totalorder %s79, 0
      %p331 = por %p329, %p330
      %p332 = scmp.ne.s32.totalorder %s320, %s321
      %p333 = scmp.eq.s32.totalorder %s80, 3
      %p334 = por %p332, %p333
      %p336 = scmp.ne.s32.totalorder %s321, %s335
      %p337 = scmp.eq.s32.totalorder %s80, 0
      %p338 = por %p336, %p337
      %s340 = sadd.s32 %s339, 1
      %p343 = scmp.eq.s32.totalorder %s74, 3
      %p344 = scmp.ne.s32.totalorder %s339, %s341
      %p345 = scmp.eq.s32.totalorder %s74, 0
      %p346 = por %p344, %p345
      %p347 = scmp.ne.s32.totalorder %s339, %s341
      %p348 = scmp.eq.s32.totalorder %s79, 3
      %p349 = por %p347, %p348
      %p350 = scmp.ne.s32.totalorder %s341, %s342
      %p351 = scmp.eq.s32.totalorder %s79, 0
      %p352 = por %p350, %p351
      %p353 = scmp.ne.s32.totalorder %s341, %s342
      %p354 = scmp.eq.s32.totalorder %s80, 3
      %p355 = por %p353, %p354
      %p357 = scmp.ne.s32.totalorder %s342, %s356
      %p358 = scmp.eq.s32.totalorder %s80, 0
      %p359 = por %p357, %p358
      %s361 = sadd.s32 %s360, 1
      %p364 = scmp.eq.s32.totalorder %s74, 3
      %p365 = scmp.ne.s32.totalorder %s360, %s362
      %p366 = scmp.eq.s32.totalorder %s74, 0
      %p367 = por %p365, %p366
      %p368 = scmp.ne.s32.totalorder %s360, %s362
      %p369 = scmp.eq.s32.totalorder %s79, 3
      %p370 = por %p368, %p369
      %p371 = scmp.ne.s32.totalorder %s362, %s363
      %p372 = scmp.eq.s32.totalorder %s79, 0
      %p373 = por %p371, %p372
      %p374 = scmp.ne.s32.totalorder %s362, %s363
      %p375 = scmp.eq.s32.totalorder %s80, 3
      %p376 = por %p374, %p375
      %p378 = scmp.ne.s32.totalorder %s363, %s377
      %p379 = scmp.eq.s32.totalorder %s80, 0
      %p380 = por %p378, %p379
      %s382 = sadd.s32 %s381, 1
      %p385 = scmp.eq.s32.totalorder %s74, 3
      %p386 = scmp.ne.s32.totalorder %s381, %s383
      %p387 = scmp.eq.s32.totalorder %s74, 0
      %p388 = por %p386, %p387
      %p389 = scmp.ne.s32.totalorder %s381, %s383
      %p390 = scmp.eq.s32.totalorder %s79, 3
      %p391 = por %p389, %p390
      %p392 = scmp.ne.s32.totalorder %s383, %s384
      %p393 = scmp.eq.s32.totalorder %s79, 0
      %p394 = por %p392, %p393
      %p395 = scmp.ne.s32.totalorder %s383, %s384
      %p396 = scmp.eq.s32.totalorder %s80, 3
      %p397 = por %p395, %p396
      %p399 = scmp.ne.s32.totalorder %s384, %s398
      %p400 = scmp.eq.s32.totalorder %s80, 0
      %p401 = por %p399, %p400
      %s403 = sadd.s32 %s402, 1
      %p406 = scmp.eq.s32.totalorder %s74, 3
      %p407 = scmp.ne.s32.totalorder %s402, %s404
      %p408 = scmp.eq.s32.totalorder %s74, 0
      %p409 = por %p407, %p408
      %p410 = scmp.ne.s32.totalorder %s402, %s404
      %p411 = scmp.eq.s32.totalorder %s79, 3
      %p412 = por %p410, %p411
      %p413 = scmp.ne.s32.totalorder %s404, %s405
      %p414 = scmp.eq.s32.totalorder %s79, 0
      %p415 = por %p413, %p414
      %p416 = scmp.ne.s32.totalorder %s404, %s405
      %p417 = scmp.eq.s32.totalorder %s80, 3
      %p418 = por %p416, %p417
      %p420 = scmp.ne.s32.totalorder %s405, %s419
      %p421 = scmp.eq.s32.totalorder %s80, 0
      %p422 = por %p420, %p421
      %s424 = sadd.s32 %s423, 1
      %p427 = scmp.eq.s32.totalorder %s74, 3
      %p428 = scmp.ne.s32.totalorder %s423, %s425
      %p429 = scmp.eq.s32.totalorder %s74, 0
      %p430 = por %p428, %p429
      %p431 = scmp.ne.s32.totalorder %s423, %s425
      %p432 = scmp.eq.s32.totalorder %s79, 3
      %p433 = por %p431, %p432
      %p434 = scmp.ne.s32.totalorder %s425, %s426
      %p435 = scmp.eq.s32.totalorder %s79, 0
      %p436 = por %p434, %p435
      %p437 = scmp.ne.s32.totalorder %s425, %s426
      %p438 = scmp.eq.s32.totalorder %s80, 3
      %p439 = por %p437, %p438
      %p441 = scmp.ne.s32.totalorder %s426, %s440
      %p442 = scmp.eq.s32.totalorder %s80, 0
      %p443 = por %p441, %p442
      %s445 = sadd.s32 %s444, 1
      %p448 = scmp.eq.s32.totalorder %s74, 3
      %p449 = scmp.ne.s32.totalorder %s444, %s446
      %p450 = scmp.eq.s32.totalorder %s74, 0
      %p451 = por %p449, %p450
      %p452 = scmp.ne.s32.totalorder %s444, %s446
      %p453 = scmp.eq.s32.totalorder %s79, 3
      %p454 = por %p452, %p453
      %p455 = scmp.ne.s32.totalorder %s446, %s447
      %p456 = scmp.eq.s32.totalorder %s79, 0
      %p457 = por %p455, %p456
      %p458 = scmp.ne.s32.totalorder %s446, %s447
      %p459 = scmp.eq.s32.totalorder %s80, 3
      %p460 = por %p458, %p459
      %p462 = scmp.ne.s32.totalorder %s447, %s461
      %p463 = scmp.eq.s32.totalorder %s80, 0
      %p464 = por %p462, %p463
      %s466 = sadd.s32 %s465, 1
      %p469 = scmp.eq.s32.totalorder %s74, 3
      %p470 = scmp.ne.s32.totalorder %s465, %s467
      %p471 = scmp.eq.s32.totalorder %s74, 0
      %p472 = por %p470, %p471
      %p473 = scmp.ne.s32.totalorder %s465, %s467
      %p474 = scmp.eq.s32.totalorder %s79, 3
      %p475 = por %p473, %p474
      %p476 = scmp.ne.s32.totalorder %s467, %s468
      %p477 = scmp.eq.s32.totalorder %s79, 0
      %p478 = por %p476, %p477
      %p479 = scmp.ne.s32.totalorder %s467, %s468
      %p480 = scmp.eq.s32.totalorder %s80, 3
      %p481 = por %p479, %p480
      %p483 = scmp.ne.s32.totalorder %s468, %s482
      %p484 = scmp.eq.s32.totalorder %s80, 0
      %p485 = por %p483, %p484
      %s487 = sadd.s32 %s486, 1
      %p490 = scmp.eq.s32.totalorder %s74, 3
      %p491 = scmp.ne.s32.totalorder %s486, %s488
      %p492 = scmp.eq.s32.totalorder %s74, 0
      %p493 = por %p491, %p492
      %p494 = scmp.ne.s32.totalorder %s486, %s488
      %p495 = scmp.eq.s32.totalorder %s79, 3
      %p496 = por %p494, %p495
      %p497 = scmp.ne.s32.totalorder %s488, %s489
      %p498 = scmp.eq.s32.totalorder %s79, 0
      %p499 = por %p497, %p498
      %p500 = scmp.ne.s32.totalorder %s488, %s489
      %p501 = scmp.eq.s32.totalorder %s80, 3
      %p502 = por %p500, %p501
      %p504 = scmp.ne.s32.totalorder %s489, %s503
      %p505 = scmp.eq.s32.totalorder %s80, 0
      %p506 = por %p504, %p505
      %s508 = sadd.s32 %s507, 1
      %p511 = scmp.eq.s32.totalorder %s74, 3
      %p512 = scmp.ne.s32.totalorder %s507, %s509
      %p513 = scmp.eq.s32.totalorder %s74, 0
      %p514 = por %p512, %p513
      %p515 = scmp.ne.s32.totalorder %s507, %s509
      %p516 = scmp.eq.s32.totalorder %s79, 3
      %p517 = por %p515, %p516
      %p518 = scmp.ne.s32.totalorder %s509, %s510
      %p519 = scmp.eq.s32.totalorder %s79, 0
      %p520 = por %p518, %p519
      %p521 = scmp.ne.s32.totalorder %s509, %s510
      %p522 = scmp.eq.s32.totalorder %s80, 3
      %p523 = por %p521, %p522
      %p525 = scmp.ne.s32.totalorder %s510, %s524
      %p526 = scmp.eq.s32.totalorder %s80, 0
      %p527 = por %p525, %p526
      %s529 = sadd.s32 %s528, 1
      %p532 = scmp.eq.s32.totalorder %s74, 3
      %p533 = scmp.ne.s32.totalorder %s528, %s530
      %p534 = scmp.eq.s32.totalorder %s74, 0
      %p535 = por %p533, %p534
      %p536 = scmp.ne.s32.totalorder %s528, %s530
      %p537 = scmp.eq.s32.totalorder %s79, 3
      %p538 = por %p536, %p537
      %p539 = scmp.ne.s32.totalorder %s530, %s531
      %p540 = scmp.eq.s32.totalorder %s79, 0
      %p541 = por %p539, %p540
      %p542 = scmp.ne.s32.totalorder %s530, %s531
      %p543 = scmp.eq.s32.totalorder %s80, 3
      %p544 = por %p542, %p543
      %p546 = scmp.ne.s32.totalorder %s531, %s545
      %p547 = scmp.eq.s32.totalorder %s80, 0
      %p548 = por %p546, %p547
      %s550 = sadd.s32 %s549, 1
      %p553 = scmp.eq.s32.totalorder %s74, 3
      %p554 = scmp.ne.s32.totalorder %s549, %s551
      %p555 = scmp.eq.s32.totalorder %s74, 0
      %p556 = por %p554, %p555
      %p557 = scmp.ne.s32.totalorder %s549, %s551
      %p558 = scmp.eq.s32.totalorder %s79, 3
      %p559 = por %p557, %p558
      %p560 = scmp.ne.s32.totalorder %s551, %s552
      %p561 = scmp.eq.s32.totalorder %s79, 0
      %p562 = por %p560, %p561
      %p563 = scmp.ne.s32.totalorder %s551, %s552
      %p564 = scmp.eq.s32.totalorder %s80, 3
      %p565 = por %p563, %p564
      %p567 = scmp.ne.s32.totalorder %s552, %s566
      %p568 = scmp.eq.s32.totalorder %s80, 0
      %p569 = por %p567, %p568
      %s571 = sadd.s32 %s570, 1
      %p574 = scmp.eq.s32.totalorder %s74, 3
      %p575 = scmp.ne.s32.totalorder %s570, %s572
      %p576 = scmp.eq.s32.totalorder %s74, 0
      %p577 = por %p575, %p576
      %p578 = scmp.ne.s32.totalorder %s570, %s572
      %p579 = scmp.eq.s32.totalorder %s79, 3
      %p580 = por %p578, %p579
      %p581 = scmp.ne.s32.totalorder %s572, %s573
      %p582 = scmp.eq.s32.totalorder %s79, 0
      %p583 = por %p581, %p582
      %p584 = scmp.ne.s32.totalorder %s572, %s573
      %p585 = scmp.eq.s32.totalorder %s80, 3
      %p586 = por %p584, %p585
      %p588 = scmp.ne.s32.totalorder %s573, %s587
      %p589 = scmp.eq.s32.totalorder %s80, 0
      %p590 = por %p588, %p589
      %s592 = sadd.s32 %s591, 1
      %p595 = scmp.eq.s32.totalorder %s74, 3
      %p596 = scmp.ne.s32.totalorder %s591, %s593
      %p597 = scmp.eq.s32.totalorder %s74, 0
      %p598 = por %p596, %p597
      %p599 = scmp.ne.s32.totalorder %s591, %s593
      %p600 = scmp.eq.s32.totalorder %s79, 3
      %p601 = por %p599, %p600
      %p602 = scmp.ne.s32.totalorder %s593, %s594
      %p603 = scmp.eq.s32.totalorder %s79, 0
      %p604 = por %p602, %p603
      %p605 = scmp.ne.s32.totalorder %s593, %s594
      %p606 = scmp.eq.s32.totalorder %s80, 3
      %p607 = por %p605, %p606
      %p609 = scmp.ne.s32.totalorder %s594, %s608
      %p610 = scmp.eq.s32.totalorder %s80, 0
      %p611 = por %p609, %p610
      %s613 = sadd.s32 %s612, 1
      %p616 = scmp.eq.s32.totalorder %s74, 3
      %p617 = scmp.ne.s32.totalorder %s612, %s614
      %p618 = scmp.eq.s32.totalorder %s74, 0
      %p619 = por %p617, %p618
      %p620 = scmp.ne.s32.totalorder %s612, %s614
      %p621 = scmp.eq.s32.totalorder %s79, 3
      %p622 = por %p620, %p621
      %p623 = scmp.ne.s32.totalorder %s614, %s615
      %p624 = scmp.eq.s32.totalorder %s79, 0
      %p625 = por %p623, %p624
      %p626 = scmp.ne.s32.totalorder %s614, %s615
      %p627 = scmp.eq.s32.totalorder %s80, 3
      %p628 = por %p626, %p627
      %p630 = scmp.ne.s32.totalorder %s615, %s629
      %p631 = scmp.eq.s32.totalorder %s80, 0
      %p632 = por %p630, %p631
      %s634 = sadd.s32 %s633, 1
      %p637 = scmp.eq.s32.totalorder %s74, 3
      %p638 = scmp.ne.s32.totalorder %s633, %s635
      %p639 = scmp.eq.s32.totalorder %s74, 0
      %p640 = por %p638, %p639
      %p641 = scmp.ne.s32.totalorder %s633, %s635
      %p642 = scmp.eq.s32.totalorder %s79, 3
      %p643 = por %p641, %p642
      %p644 = scmp.ne.s32.totalorder %s635, %s636
      %p645 = scmp.eq.s32.totalorder %s79, 0
      %p646 = por %p644, %p645
      %p647 = scmp.ne.s32.totalorder %s635, %s636
      %p648 = scmp.eq.s32.totalorder %s80, 3
      %p649 = por %p647, %p648
      %p651 = scmp.ne.s32.totalorder %s636, %s650
      %p652 = scmp.eq.s32.totalorder %s80, 0
      %p653 = por %p651, %p652
      %s655 = sadd.s32 %s654, 1
      %p658 = scmp.eq.s32.totalorder %s74, 3
      %p659 = scmp.ne.s32.totalorder %s654, %s656
      %p660 = scmp.eq.s32.totalorder %s74, 0
      %p661 = por %p659, %p660
      %p662 = scmp.ne.s32.totalorder %s654, %s656
      %p663 = scmp.eq.s32.totalorder %s79, 3
      %p664 = por %p662, %p663
      %p665 = scmp.ne.s32.totalorder %s656, %s657
      %p666 = scmp.eq.s32.totalorder %s79, 0
      %p667 = por %p665, %p666
      %p668 = scmp.ne.s32.totalorder %s656, %s657
      %p669 = scmp.eq.s32.totalorder %s80, 3
      %p670 = por %p668, %p669
      %p672 = scmp.ne.s32.totalorder %s657, %s671
      %p673 = scmp.eq.s32.totalorder %s80, 0
      %p674 = por %p672, %p673
      %s676 = sadd.s32 %s675, 1
      %p679 = scmp.eq.s32.totalorder %s74, 3
      %p680 = scmp.ne.s32.totalorder %s675, %s677
      %p681 = scmp.eq.s32.totalorder %s74, 0
      %p682 = por %p680, %p681
      %p683 = scmp.ne.s32.totalorder %s675, %s677
      %p684 = scmp.eq.s32.totalorder %s79, 3
      %p685 = por %p683, %p684
      %p686 = scmp.ne.s32.totalorder %s677, %s678
      %p687 = scmp.eq.s32.totalorder %s79, 0
      %p688 = por %p686, %p687
      %p689 = scmp.ne.s32.totalorder %s677, %s678
      %p690 = scmp.eq.s32.totalorder %s80, 3
      %p691 = por %p689, %p690
      %p693 = scmp.ne.s32.totalorder %s678, %s692
      %p694 = scmp.eq.s32.totalorder %s80, 0
      %p695 = por %p693, %p694
      %s697 = sadd.s32 %s696, 1
      %p700 = scmp.eq.s32.totalorder %s74, 3
      %p701 = scmp.ne.s32.totalorder %s696, %s698
      %p702 = scmp.eq.s32.totalorder %s74, 0
      %p703 = por %p701, %p702
      %p704 = scmp.ne.s32.totalorder %s696, %s698
      %p705 = scmp.eq.s32.totalorder %s79, 3
      %p706 = por %p704, %p705
      %p707 = scmp.ne.s32.totalorder %s698, %s699
      %p708 = scmp.eq.s32.totalorder %s79, 0
      %p709 = por %p707, %p708
      %p710 = scmp.ne.s32.totalorder %s698, %s699
      %p711 = scmp.eq.s32.totalorder %s80, 3
      %p712 = por %p710, %p711
      %p714 = scmp.ne.s32.totalorder %s699, %s713
      %p715 = scmp.eq.s32.totalorder %s80, 0
      %p716 = por %p714, %p715
      %s718 = sadd.s32 %s717, 1
      %p721 = scmp.eq.s32.totalorder %s74, 3
      %p722 = scmp.ne.s32.totalorder %s717, %s719
      %p723 = scmp.eq.s32.totalorder %s74, 0
      %p724 = por %p722, %p723
      %p725 = scmp.ne.s32.totalorder %s717, %s719
      %p726 = scmp.eq.s32.totalorder %s79, 3
      %p727 = por %p725, %p726
      %p728 = scmp.ne.s32.totalorder %s719, %s720
      %p729 = scmp.eq.s32.totalorder %s79, 0
      %p730 = por %p728, %p729
      %p731 = scmp.ne.s32.totalorder %s719, %s720
      %p732 = scmp.eq.s32.totalorder %s80, 3
      %p733 = por %p731, %p732
      %p735 = scmp.ne.s32.totalorder %s720, %s734
      %p736 = scmp.eq.s32.totalorder %s80, 0
      %p737 = por %p735, %p736
      %s738 = ssub.s32 %s74, %s81
      %p739 = scmp.eq.s32.totalorder %s738, 0
      %s741 = sadd.s32 %s740, 1
      %s742 = scalar_select %p739, %s740, %s741
      %p745 = pneg %p739
      %p746 = scmp.eq.s32.totalorder %s74, 3
      %p747 = por %p745, %p746
      %p748 = scmp.ne.s32.totalorder %s740, %s743
      %p749 = scmp.eq.s32.totalorder %s74, 0
      %p750 = por %p748, %p749
      %p751 = scmp.ne.s32.totalorder %s740, %s743
      %p752 = scmp.eq.s32.totalorder %s79, 3
      %p753 = por %p751, %p752
      %p754 = scmp.ne.s32.totalorder %s743, %s744
      %p755 = scmp.eq.s32.totalorder %s79, 0
      %p756 = por %p754, %p755
      %p757 = scmp.ne.s32.totalorder %s743, %s744
      %p758 = scmp.eq.s32.totalorder %s80, 3
      %p759 = por %p757, %p758
      %p761 = scmp.ne.s32.totalorder %s744, %s760
      %p762 = scmp.eq.s32.totalorder %s80, 0
      %p763 = por %p761, %p762
      %p764 = scmp.le.s32.totalorder 1, %s74
      %p765 = scmp.lt.s32.totalorder %s74, 5
      %p766 = pnand %p764, %p765
      %p767 = pneg %p766
      // Predicated region
      $region9: #{tpu_custom_call.1} parent=5 // pred_check
        _
      $region10: #{tpu_custom_call.1} parent=5 // pred_check_branch
        %769 = sbr.rel (%p766) target = $region12
      $region11: #{tpu_custom_call.1} parent=5 // pred_region
        %s770 = ssub.s32 %s74, 1
        // Predicated region
        $region13: #{tpu_custom_call.1} parent=11 // pred_check
          %p771 = pneg %p121
        $region14: #{tpu_custom_call.1} parent=11 // pred_check_branch
          %773 = sbr.rel (%p771) target = $region16
        $region15: #{tpu_custom_call.1} parent=11 // pred_region
          _
        $region16: #{tpu_custom_call.1} parent=11 // pred_fallthru
          _
        // Predicated region
        $region17: #{tpu_custom_call.1} parent=11 // pred_check
          %p774 = pneg %p142
        $region18: #{tpu_custom_call.1} parent=11 // pred_check_branch
          %776 = sbr.rel (%p774) target = $region20
        $region19: #{tpu_custom_call.1} parent=11 // pred_region
          _
        $region20: #{tpu_custom_call.1} parent=11 // pred_fallthru
          _
        // Predicated region
        $region21: #{tpu_custom_call.1} parent=11 // pred_check
          %p777 = pneg %p163
        $region22: #{tpu_custom_call.1} parent=11 // pred_check_branch
          %779 = sbr.rel (%p777) target = $region24
        $region23: #{tpu_custom_call.1} parent=11 // pred_region
          _
        $region24: #{tpu_custom_call.1} parent=11 // pred_fallthru
          _
        // Predicated region
        $region25: #{tpu_custom_call.1} parent=11 // pred_check
          %p780 = pneg %p184
        $region26: #{tpu_custom_call.1} parent=11 // pred_check_branch
          %782 = sbr.rel (%p780) target = $region28
        $region27: #{tpu_custom_call.1} parent=11 // pred_region
          _
        $region28: #{tpu_custom_call.1} parent=11 // pred_fallthru
          _
        // Predicated region
        $region29: #{tpu_custom_call.1} parent=11 // pred_check
          %p783 = pneg %p205
        $region30: #{tpu_custom_call.1} parent=11 // pred_check_branch
          %785 = sbr.rel (%p783) target = $region32
        $region31: #{tpu_custom_call.1} parent=11 // pred_region
          _
        $region32: #{tpu_custom_call.1} parent=11 // pred_fallthru
          _
        // Predicated region
        $region33: #{tpu_custom_call.1} parent=11 // pred_check
          %p786 = pneg %p226
        $region34: #{tpu_custom_call.1} parent=11 // pred_check_branch
          %788 = sbr.rel (%p786) target = $region36
        $region35: #{tpu_custom_call.1} parent=11 // pred_region
          _
        $region36: #{tpu_custom_call.1} parent=11 // pred_fallthru
          _
        // Predicated region
        $region37: #{tpu_custom_call.1} parent=11 // pred_check
          %p789 = pneg %p247
        $region38: #{tpu_custom_call.1} parent=11 // pred_check_branch
          %791 = sbr.rel (%p789) target = $region40
        $region39: #{tpu_custom_call.1} parent=11 // pred_region
          _
        $region40: #{tpu_custom_call.1} parent=11 // pred_fallthru
          _
        // Predicated region
        $region41: #{tpu_custom_call.1} parent=11 // pred_check
          %p792 = pneg %p268
        $region42: #{tpu_custom_call.1} parent=11 // pred_check_branch
          %794 = sbr.rel (%p792) target = $region44
        $region43: #{tpu_custom_call.1} parent=11 // pred_region
          _
        $region44: #{tpu_custom_call.1} parent=11 // pred_fallthru
          _
        // Predicated region
        $region45: #{tpu_custom_call.1} parent=11 // pred_check
          %p795 = pneg %p289
        $region46: #{tpu_custom_call.1} parent=11 // pred_check_branch
          %797 = sbr.rel (%p795) target = $region48
        $region47: #{tpu_custom_call.1} parent=11 // pred_region
          _
        $region48: #{tpu_custom_call.1} parent=11 // pred_fallthru
          _
        // Predicated region
        $region49: #{tpu_custom_call.1} parent=11 // pred_check
          %p798 = pneg %p310
        $region50: #{tpu_custom_call.1} parent=11 // pred_check_branch
          %800 = sbr.rel (%p798) target = $region52
        $region51: #{tpu_custom_call.1} parent=11 // pred_region
          _
        $region52: #{tpu_custom_call.1} parent=11 // pred_fallthru
          _
        // Predicated region
        $region53: #{tpu_custom_call.1} parent=11 // pred_check
          %p801 = pneg %p331
        $region54: #{tpu_custom_call.1} parent=11 // pred_check_branch
          %803 = sbr.rel (%p801) target = $region56
        $region55: #{tpu_custom_call.1} parent=11 // pred_region
          _
        $region56: #{tpu_custom_call.1} parent=11 // pred_fallthru
          _
        // Predicated region
        $region57: #{tpu_custom_call.1} parent=11 // pred_check
          %p804 = pneg %p352
        $region58: #{tpu_custom_call.1} parent=11 // pred_check_branch
          %806 = sbr.rel (%p804) target = $region60
        $region59: #{tpu_custom_call.1} parent=11 // pred_region
          _
        $region60: #{tpu_custom_call.1} parent=11 // pred_fallthru
          _
        // Predicated region
        $region61: #{tpu_custom_call.1} parent=11 // pred_check
          %p807 = pneg %p373
        $region62: #{tpu_custom_call.1} parent=11 // pred_check_branch
          %809 = sbr.rel (%p807) target = $region64
        $region63: #{tpu_custom_call.1} parent=11 // pred_region
          _
        $region64: #{tpu_custom_call.1} parent=11 // pred_fallthru
          _
        // Predicated region
        $region65: #{tpu_custom_call.1} parent=11 // pred_check
          %p810 = pneg %p394
        $region66: #{tpu_custom_call.1} parent=11 // pred_check_branch
          %812 = sbr.rel (%p810) target = $region68
        $region67: #{tpu_custom_call.1} parent=11 // pred_region
          _
        $region68: #{tpu_custom_call.1} parent=11 // pred_fallthru
          _
        // Predicated region
        $region69: #{tpu_custom_call.1} parent=11 // pred_check
          %p813 = pneg %p415
        $region70: #{tpu_custom_call.1} parent=11 // pred_check_branch
          %815 = sbr.rel (%p813) target = $region72
        $region71: #{tpu_custom_call.1} parent=11 // pred_region
          _
        $region72: #{tpu_custom_call.1} parent=11 // pred_fallthru
          _
        // Predicated region
        $region73: #{tpu_custom_call.1} parent=11 // pred_check
          %p816 = pneg %p436
        $region74: #{tpu_custom_call.1} parent=11 // pred_check_branch
          %818 = sbr.rel (%p816) target = $region76
        $region75: #{tpu_custom_call.1} parent=11 // pred_region
          _
        $region76: #{tpu_custom_call.1} parent=11 // pred_fallthru
          _
        // Predicated region
        $region77: #{tpu_custom_call.1} parent=11 // pred_check
          %p819 = pneg %p457
        $region78: #{tpu_custom_call.1} parent=11 // pred_check_branch
          %821 = sbr.rel (%p819) target = $region80
        $region79: #{tpu_custom_call.1} parent=11 // pred_region
          _
        $region80: #{tpu_custom_call.1} parent=11 // pred_fallthru
          _
        // Predicated region
        $region81: #{tpu_custom_call.1} parent=11 // pred_check
          %p822 = pneg %p478
        $region82: #{tpu_custom_call.1} parent=11 // pred_check_branch
          %824 = sbr.rel (%p822) target = $region84
        $region83: #{tpu_custom_call.1} parent=11 // pred_region
          _
        $region84: #{tpu_custom_call.1} parent=11 // pred_fallthru
          _
        // Predicated region
        $region85: #{tpu_custom_call.1} parent=11 // pred_check
          %p825 = pneg %p499
        $region86: #{tpu_custom_call.1} parent=11 // pred_check_branch
          %827 = sbr.rel (%p825) target = $region88
        $region87: #{tpu_custom_call.1} parent=11 // pred_region
          _
        $region88: #{tpu_custom_call.1} parent=11 // pred_fallthru
          _
        // Predicated region
        $region89: #{tpu_custom_call.1} parent=11 // pred_check
          %p828 = pneg %p520
        $region90: #{tpu_custom_call.1} parent=11 // pred_check_branch
          %830 = sbr.rel (%p828) target = $region92
        $region91: #{tpu_custom_call.1} parent=11 // pred_region
          _
        $region92: #{tpu_custom_call.1} parent=11 // pred_fallthru
          _
        // Predicated region
        $region93: #{tpu_custom_call.1} parent=11 // pred_check
          %p831 = pneg %p541
        $region94: #{tpu_custom_call.1} parent=11 // pred_check_branch
          %833 = sbr.rel (%p831) target = $region96
        $region95: #{tpu_custom_call.1} parent=11 // pred_region
          _
        $region96: #{tpu_custom_call.1} parent=11 // pred_fallthru
          _
        // Predicated region
        $region97: #{tpu_custom_call.1} parent=11 // pred_check
          %p834 = pneg %p562
        $region98: #{tpu_custom_call.1} parent=11 // pred_check_branch
          %836 = sbr.rel (%p834) target = $region100
        $region99: #{tpu_custom_call.1} parent=11 // pred_region
          _
        $region100: #{tpu_custom_call.1} parent=11 // pred_fallthru
          _
        // Predicated region
        $region101: #{tpu_custom_call.1} parent=11 // pred_check
          %p837 = pneg %p583
        $region102: #{tpu_custom_call.1} parent=11 // pred_check_branch
          %839 = sbr.rel (%p837) target = $region104
        $region103: #{tpu_custom_call.1} parent=11 // pred_region
          _
        $region104: #{tpu_custom_call.1} parent=11 // pred_fallthru
          _
        // Predicated region
        $region105: #{tpu_custom_call.1} parent=11 // pred_check
          %p840 = pneg %p604
        $region106: #{tpu_custom_call.1} parent=11 // pred_check_branch
          %842 = sbr.rel (%p840) target = $region108
        $region107: #{tpu_custom_call.1} parent=11 // pred_region
          _
        $region108: #{tpu_custom_call.1} parent=11 // pred_fallthru
          _
        // Predicated region
        $region109: #{tpu_custom_call.1} parent=11 // pred_check
          %p843 = pneg %p625
        $region110: #{tpu_custom_call.1} parent=11 // pred_check_branch
          %845 = sbr.rel (%p843) target = $region112
        $region111: #{tpu_custom_call.1} parent=11 // pred_region
          _
        $region112: #{tpu_custom_call.1} parent=11 // pred_fallthru
          _
        // Predicated region
        $region113: #{tpu_custom_call.1} parent=11 // pred_check
          %p846 = pneg %p646
        $region114: #{tpu_custom_call.1} parent=11 // pred_check_branch
          %848 = sbr.rel (%p846) target = $region116
        $region115: #{tpu_custom_call.1} parent=11 // pred_region
          _
        $region116: #{tpu_custom_call.1} parent=11 // pred_fallthru
          _
        // Predicated region
        $region117: #{tpu_custom_call.1} parent=11 // pred_check
          %p849 = pneg %p667
        $region118: #{tpu_custom_call.1} parent=11 // pred_check_branch
          %851 = sbr.rel (%p849) target = $region120
        $region119: #{tpu_custom_call.1} parent=11 // pred_region
          _
        $region120: #{tpu_custom_call.1} parent=11 // pred_fallthru
          _
        // Predicated region
        $region121: #{tpu_custom_call.1} parent=11 // pred_check
          %p852 = pneg %p688
        $region122: #{tpu_custom_call.1} parent=11 // pred_check_branch
          %854 = sbr.rel (%p852) target = $region124
        $region123: #{tpu_custom_call.1} parent=11 // pred_region
          _
        $region124: #{tpu_custom_call.1} parent=11 // pred_fallthru
          _
        // Predicated region
        $region125: #{tpu_custom_call.1} parent=11 // pred_check
          %p855 = pneg %p709
        $region126: #{tpu_custom_call.1} parent=11 // pred_check_branch
          %857 = sbr.rel (%p855) target = $region128
        $region127: #{tpu_custom_call.1} parent=11 // pred_region
          _
        $region128: #{tpu_custom_call.1} parent=11 // pred_fallthru
          _
        // Predicated region
        $region129: #{tpu_custom_call.1} parent=11 // pred_check
          %p858 = pneg %p730
        $region130: #{tpu_custom_call.1} parent=11 // pred_check_branch
          %860 = sbr.rel (%p858) target = $region132
        $region131: #{tpu_custom_call.1} parent=11 // pred_region
          _
        $region132: #{tpu_custom_call.1} parent=11 // pred_fallthru
          _
      $region12: #{tpu_custom_call.1} parent=5 // pred_fallthru
        _
      %p861 = scmp.lt.s32.totalorder %s74, 4
      // Predicated region
      $region133: #{tpu_custom_call.1} parent=5 // pred_check
        %p862 = pneg %p861
      $region134: #{tpu_custom_call.1} parent=5 // pred_check_branch
        %864 = sbr.rel (%p862) target = $region136
      $region135: #{tpu_custom_call.1} parent=5 // pred_region
        // Predicated region
        $region137: #{tpu_custom_call.1} parent=135 // pred_check
          %p865 = pneg %p94
        $region138: #{tpu_custom_call.1} parent=135 // pred_check_branch
          %867 = sbr.rel (%p865) target = $region140
        $region139: #{tpu_custom_call.1} parent=135 // pred_region
          %p868 = scmp.lt.s32.totalorder %s74, 3
          %s869 = scalar_select %p868, %s74, 3
          %s870 = smul.addr %s869, 2
          %s871 = scalar_lea.vmem %s1, %s870
        $region140: #{tpu_custom_call.1} parent=135 // pred_fallthru
          _
      $region136: #{tpu_custom_call.1} parent=5 // pred_fallthru
        _
      %p872 = scmp.le.s32.totalorder 1, %s74
      %p873 = scmp.lt.s32.totalorder %s74, 5
      %p874 = pnand %p872, %p873
      %p875 = pneg %p874
      // Predicated region
      $region141: #{tpu_custom_call.1} parent=5 // pred_check
        _
      $region142: #{tpu_custom_call.1} parent=5 // pred_check_branch
        %877 = sbr.rel (%p874) target = $region144
      $region143: #{tpu_custom_call.1} parent=5 // pred_region
        %s878 = ssub.s32 %s74, 1
        %p879 = scmp.lt.s32.totalorder %s79, 3
        %s880 = scalar_select %p879, %s79, 3
        %s881 = smul.addr %s880, 2
        %s882 = scalar_lea.vmem %s1, %s881
        %p883 = pneg %p100
        %p884 = pneg %p97
        %p885 = pneg %p121
        %p886 = pneg %p118
        %p887 = pneg %p142
        %p888 = pneg %p139
        %p889 = pneg %p163
        %p890 = pneg %p160
        %p891 = pneg %p184
        %p892 = pneg %p181
        %p893 = pneg %p205
        %p894 = pneg %p202
        %p895 = pneg %p226
        %p896 = pneg %p223
        %p897 = pneg %p247
        %p898 = pneg %p244
        %p899 = pneg %p268
        %p900 = pneg %p265
        %p901 = pneg %p289
        %p902 = pneg %p286
        %p903 = pneg %p310
        %p904 = pneg %p307
        %p905 = pneg %p331
        %p906 = pneg %p328
        %p907 = pneg %p352
        %p908 = pneg %p349
        %p909 = pneg %p373
        %p910 = pneg %p370
        %p911 = pneg %p394
        %p912 = pneg %p391
        %p913 = pneg %p415
        %p914 = pneg %p412
        %p915 = pneg %p436
        %p916 = pneg %p433
        %p917 = pneg %p457
        %p918 = pneg %p454
        %p919 = pneg %p478
        %p920 = pneg %p475
        %p921 = pneg %p499
        %p922 = pneg %p496
        %p923 = pneg %p520
        %p924 = pneg %p517
        %p925 = pneg %p541
        %p926 = pneg %p538
        %p927 = pneg %p562
        %p928 = pneg %p559
        %p929 = pneg %p583
        %p930 = pneg %p580
        %p931 = pneg %p604
        %p932 = pneg %p601
        %p933 = pneg %p625
        %p934 = pneg %p622
        %p935 = pneg %p646
        %p936 = pneg %p643
        %p937 = pneg %p667
        %p938 = pneg %p664
        %p939 = pneg %p688
        %p940 = pneg %p685
        %p941 = pneg %p709
        %p942 = pneg %p706
        %p943 = pneg %p730
        %p944 = pneg %p727
        %p945 = pneg %p756
        %p946 = pneg %p753
        %s947 = sand.u32 %s743, 1
        %s948 = scalar_lea.sflag [#allocation8], %s947
        %s949 = sand.u32 %s743, 1
        %s950 = smul.addr %s949, 4
        %s951 = scalar_lea.vmem [#allocation7], %s950
        %p952 = scmp.lt.s32.totalorder %s79, 3
        %s953 = scalar_select %p952, %s79, 3
        %s954 = smul.addr %s953, 2
        %s955 = scalar_lea.vmem %s1, %s954
        %p956 = scmp.eq.s32.totalorder %s79, 0
        // Predicated region
        $region145: #{tpu_custom_call.1} parent=143 // pred_check
          %p957 = pneg %p956
        $region146: #{tpu_custom_call.1} parent=143 // pred_check_branch
          %959 = sbr.rel (%p957) target = $region148
        $region147: #{tpu_custom_call.1} parent=143 // pred_region
          %v960 = vld [vmem:[%s3] sm:$0x3]
          %vm961 = vcmask 254976
          %962 = vst.msk [vmem:[#allocation2] sm:$0x3] %vm961, %v960
          %v963 = vld [vmem:[%s5] sm:$0x3]
          %964 = vst.msk [vmem:[#allocation3] sm:$0x3] %vm961, %v963
          %v965 = vld [vmem:[%s7] sm:$0x3]
          %vm966 = vcmask 517120
          %967 = vst.msk [vmem:[#allocation4] sm:$0x3] %vm966, %v965
          %v968 = vld [vmem:[%s9] sm:$0x3]
          %vm969 = vcmask 58368
          %970 = vst.msk [vmem:[#allocation5] sm:$0x3] %vm969, %v968
        $region148: #{tpu_custom_call.1} parent=143 // pred_fallthru
          _
        %v971 = vld [vmem:[#allocation2] sm:$0x3]
        %v972 = vld [vmem:[#allocation3] sm:$0x3]
        %v973 = vld [vmem:[#allocation4] sm:$0x3]
        %v974 = vld [vmem:[#allocation5] sm:$0x3]
        %v975 = vld [vmem:[%s955] sm:$0x3]
        %v976 = vlaneseq
        %v977 = vand.u32 %v976, 127
        %978 = vset.pattern.permute.xlu0 0
        %979 = vperm.xlu0 %978, %v975
        %v980 = vpop.permute.xlu0 %979
        %vm981 = vcmp.eq.s32.totalorder %v980, %v977
        %v982 = vsel %vm981, 1, 0
        %v983 = vcvt.s32.f32 %v982
        %v984 = vld [vmem:[%s19] sm:$0xff]
        %v985 = vld [vmem:[%s19 + $0x8] sm:$0xff]
        %v986 = vld [vmem:[%s19 + $0x10] sm:$0xff]
        %v987 = vld [vmem:[%s19 + $0x18] sm:$0xff]
        %v988 = vld [vmem:[%s19 + $0x20] sm:$0xff]
        %v989 = vld [vmem:[%s19 + $0x28] sm:$0xff]
        %v990 = vld [vmem:[%s19 + $0x30] sm:$0x3]
        %vm991 = vcmask 408576
        %v993 = vsel %vm991, %v983, 0
        %vm995 = vcmask 1041408
        %v997 = vsel %vm995, %v990, 0
        %999 = vmatprep.subr.mxu0 0.0
        %1000 = vmatpush1.msra.mxu0 %v984
        %1001 = vmatprep.subr.mxu0 0.0
        %1002 = vmatpush1.msra.mxu0 %v985
        %1003 = vmatprep.subr.mxu0 0.0
        %1004 = vmatpush1.msra.mxu0 %v986
        %1005 = vmatprep.subr.mxu0 0.0
        %1006 = vmatpush1.msra.mxu0 %v987
        %1007 = vmatprep.subr.mxu0 0.0
        %1008 = vmatpush1.msra.mxu0 %v988
        %1009 = vmatprep.subr.mxu0 0.0
        %1010 = vmatpush1.msra.mxu0 %v989
        %1011 = vmatprep.subr.mxu0 0.0
        %1012 = vmatpush1.msra.mxu0 %v997
        %1013 = vmatprep.subr.mxu0 0.0
        %1014 = vmatpush1.msra.mxu0 0.0
        %1015 = vmatprep.subr.mxu0 0.0
        %1016 = vmatpush1.msra.mxu0 0.0
        %1017 = vmatprep.subr.mxu0 0.0
        %1018 = vmatpush1.msra.mxu0 0.0
        %1019 = vmatprep.subr.mxu0 0.0
        %1020 = vmatpush1.msra.mxu0 0.0
        %1021 = vmatprep.subr.mxu0 0.0
        %1022 = vmatpush1.msra.mxu0 0.0
        %1023 = vmatprep.subr.mxu0 0.0
        %1024 = vmatpush1.msra.mxu0 0.0
        %1025 = vmatprep.subr.mxu0 0.0
        %1026 = vmatpush1.msra.mxu0 0.0
        %1027 = vmatprep.subr.mxu0 0.0
        %1028 = vmatpush1.msra.mxu0 0.0
        %1029 = vmatprep.subr.mxu0 0.0
        %1030 = vmatpush1.msra.mxu0 0.0
        %1031 = vmatprep.subr.mxu0 0.0
        %1032 = vmatpush1.msra.mxu0 0.0
        %1033 = vmatprep.subr.mxu0 0.0
        %1034 = vmatpush1.msra.mxu0 0.0
        %1035 = vmatprep.subr.mxu0 0.0
        %1036 = vmatpush1.msra.mxu0 0.0
        %1037 = vmatprep.subr.mxu0 0.0
        %1038 = vmatpush1.msra.mxu0 0.0
        %1039 = vmatprep.subr.mxu0 0.0
        %1040 = vmatpush1.msra.mxu0 0.0
        %1041 = vmatprep.subr.mxu0 0.0
        %1042 = vmatpush1.msra.mxu0 0.0
        %1043 = vmatprep.subr.mxu0 0.0
        %1044 = vmatpush1.msra.mxu0 0.0
        %1045 = vmatprep.subr.mxu0 0.0
        %1046 = vmatpush1.msra.mxu0 0.0
        %1047 = vmatprep.subr.mxu0 0.0
        %1048 = vmatpush1.msra.mxu0 0.0
        %1049 = vmatprep.subr.mxu0 0.0
        %1050 = vmatpush1.msra.mxu0 0.0
        %1051 = vmatprep.subr.mxu0 0.0
        %1052 = vmatpush1.msra.mxu0 0.0
        %1053 = vmatprep.subr.mxu0 0.0
        %1054 = vmatpush1.msra.mxu0 0.0
        %1055 = vmatprep.subr.mxu0 0.0
        %1056 = vmatpush1.msra.mxu0 0.0
        %1057 = vmatprep.subr.mxu0 0.0
        %1058 = vmatpush1.msra.mxu0 0.0
        %1059 = vmatprep.subr.mxu0 0.0
        %1060 = vmatpush1.msra.mxu0 0.0
        %1061 = vmatprep.subr.mxu0 0.0
        %1062 = vmatpush1.msra.mxu0 0.0
        %1063 = vmatprep.mubr.f32.mxu0 0.0
        %1064 = vmatmul.mubr.f32.gmra.mrb[0].mxu0 %v993
        %v1065 = vpop.f32.mrb[0].mxu0
        %v1066 = vadd.f32 0.0, %v1065
        %v1067 = vpop.f32.mrb[0].mxu0
        %1068 = vdwg.mxu0
        %v1069 = vld [vmem:[%s21] sm:$0xff]
        %v1070 = vld [vmem:[%s21 + $0x8] sm:$0xff]
        %v1071 = vld [vmem:[%s21 + $0x10] sm:$0xff]
        %v1072 = vld [vmem:[%s21 + $0x18] sm:$0xff]
        %v1073 = vld [vmem:[%s21 + $0x20] sm:$0xff]
        %v1074 = vld [vmem:[%s21 + $0x28] sm:$0xff]
        %v1075 = vld [vmem:[%s21 + $0x30] sm:$0xff]
        %v1076 = vld [vmem:[%s21 + $0x38] sm:$0xff]
        %v1077 = vld [vmem:[%s23] sm:$0xff]
        %v1078 = vld [vmem:[%s23 + $0x8] sm:$0xff]
        %v1079 = vld [vmem:[%s23 + $0x10] sm:$0xff]
        %v1080 = vld [vmem:[%s23 + $0x18] sm:$0xff]
        %vm1081 = vcmask 261120
        %v1083 = vsel %vm1081, %v1066, 0
        %1085 = vmatprep.subr.mxu0 0.0
        %1086 = vmatpush1.msra.mxu0 %v1077
        %1087 = vmatprep.subr.mxu0 0.0
        %1088 = vmatpush1.msra.mxu0 %v1078
        %1089 = vmatprep.subr.mxu0 0.0
        %1090 = vmatpush1.msra.mxu0 %v1079
        %1091 = vmatprep.subr.mxu0 0.0
        %1092 = vmatpush1.msra.mxu0 %v1080
        %1093 = vmatprep.subr.mxu0 0.0
        %1094 = vmatpush1.msra.mxu0 0.0
        %1095 = vmatprep.subr.mxu0 0.0
        %1096 = vmatpush1.msra.mxu0 0.0
        %1097 = vmatprep.subr.mxu0 0.0
        %1098 = vmatpush1.msra.mxu0 0.0
        %1099 = vmatprep.subr.mxu0 0.0
        %1100 = vmatpush1.msra.mxu0 0.0
        %1101 = vmatprep.subr.mxu0 0.0
        %1102 = vmatpush1.msra.mxu0 0.0
        %1103 = vmatprep.subr.mxu0 0.0
        %1104 = vmatpush1.msra.mxu0 0.0
        %1105 = vmatprep.subr.mxu0 0.0
        %1106 = vmatpush1.msra.mxu0 0.0
        %1107 = vmatprep.subr.mxu0 0.0
        %1108 = vmatpush1.msra.mxu0 0.0
        %1109 = vmatprep.subr.mxu0 0.0
        %1110 = vmatpush1.msra.mxu0 0.0
        %1111 = vmatprep.subr.mxu0 0.0
        %1112 = vmatpush1.msra.mxu0 0.0
        %1113 = vmatprep.subr.mxu0 0.0
        %1114 = vmatpush1.msra.mxu0 0.0
        %1115 = vmatprep.subr.mxu0 0.0
        %1116 = vmatpush1.msra.mxu0 0.0
        %1117 = vmatprep.subr.mxu0 0.0
        %1118 = vmatpush1.msra.mxu0 0.0
        %1119 = vmatprep.subr.mxu0 0.0
        %1120 = vmatpush1.msra.mxu0 0.0
        %1121 = vmatprep.subr.mxu0 0.0
        %1122 = vmatpush1.msra.mxu0 0.0
        %1123 = vmatprep.subr.mxu0 0.0
        %1124 = vmatpush1.msra.mxu0 0.0
        %1125 = vmatprep.subr.mxu0 0.0
        %1126 = vmatpush1.msra.mxu0 0.0
        %1127 = vmatprep.subr.mxu0 0.0
        %1128 = vmatpush1.msra.mxu0 0.0
        %1129 = vmatprep.subr.mxu0 0.0
        %1130 = vmatpush1.msra.mxu0 0.0
        %1131 = vmatprep.subr.mxu0 0.0
        %1132 = vmatpush1.msra.mxu0 0.0
        %1133 = vmatprep.subr.mxu0 0.0
        %1134 = vmatpush1.msra.mxu0 0.0
        %1135 = vmatprep.subr.mxu0 0.0
        %1136 = vmatpush1.msra.mxu0 0.0
        %1137 = vmatprep.subr.mxu0 0.0
        %1138 = vmatpush1.msra.mxu0 0.0
        %1139 = vmatprep.subr.mxu0 0.0
        %1140 = vmatpush1.msra.mxu0 0.0
        %1141 = vmatprep.subr.mxu0 0.0
        %1142 = vmatpush1.msra.mxu0 0.0
        %1143 = vmatprep.subr.mxu0 0.0
        %1144 = vmatpush1.msra.mxu0 0.0
        %1145 = vmatprep.subr.mxu0 0.0
        %1146 = vmatpush1.msra.mxu0 0.0
        %1147 = vmatprep.subr.mxu0 0.0
        %1148 = vmatpush1.msra.mxu0 0.0
        %1149 = vmatprep.mubr.f32.mxu0 0.0
        %1150 = vmatmul.mubr.f32.gmra.mrb[0].mxu0 %v1083
        %v1151 = vpop.f32.mrb[0].mxu0
        %v1152 = vadd.f32 0.0, %v1151
        %v1153 = vpop.f32.mrb[0].mxu0
        %1154 = vdwg.mxu0
        %vm1155 = vcmask 523264
        %v1157 = vsel %vm1155, %v973, 0
        %1159 = vmatprep.subr.mxu0 0.0
        %1160 = vmatpush1.msra.mxu0 %v1069
        %1161 = vmatprep.subr.mxu0 0.0
        %1162 = vmatpush1.msra.mxu0 %v1070
        %1163 = vmatprep.subr.mxu0 0.0
        %1164 = vmatpush1.msra.mxu0 %v1071
        %1165 = vmatprep.subr.mxu0 0.0
        %1166 = vmatpush1.msra.mxu0 %v1072
        %1167 = vmatprep.subr.mxu0 0.0
        %1168 = vmatpush1.msra.mxu0 %v1073
        %1169 = vmatprep.subr.mxu0 0.0
        %1170 = vmatpush1.msra.mxu0 %v1074
        %1171 = vmatprep.subr.mxu0 0.0
        %1172 = vmatpush1.msra.mxu0 %v1075
        %1173 = vmatprep.subr.mxu0 0.0
        %1174 = vmatpush1.msra.mxu0 %v1076
        %1175 = vmatprep.subr.mxu0 0.0
        %1176 = vmatpush1.msra.mxu0 0.0
        %1177 = vmatprep.subr.mxu0 0.0
        %1178 = vmatpush1.msra.mxu0 0.0
        %1179 = vmatprep.subr.mxu0 0.0
        %1180 = vmatpush1.msra.mxu0 0.0
        %1181 = vmatprep.subr.mxu0 0.0
        %1182 = vmatpush1.msra.mxu0 0.0
        %1183 = vmatprep.subr.mxu0 0.0
        %1184 = vmatpush1.msra.mxu0 0.0
        %1185 = vmatprep.subr.mxu0 0.0
        %1186 = vmatpush1.msra.mxu0 0.0
        %1187 = vmatprep.subr.mxu0 0.0
        %1188 = vmatpush1.msra.mxu0 0.0
        %1189 = vmatprep.subr.mxu0 0.0
        %1190 = vmatpush1.msra.mxu0 0.0
        %1191 = vmatprep.subr.mxu0 0.0
        %1192 = vmatpush1.msra.mxu0 0.0
        %1193 = vmatprep.subr.mxu0 0.0
        %1194 = vmatpush1.msra.mxu0 0.0
        %1195 = vmatprep.subr.mxu0 0.0
        %1196 = vmatpush1.msra.mxu0 0.0
        %1197 = vmatprep.subr.mxu0 0.0
        %1198 = vmatpush1.msra.mxu0 0.0
        %1199 = vmatprep.subr.mxu0 0.0
        %1200 = vmatpush1.msra.mxu0 0.0
        %1201 = vmatprep.subr.mxu0 0.0
        %1202 = vmatpush1.msra.mxu0 0.0
        %1203 = vmatprep.subr.mxu0 0.0
        %1204 = vmatpush1.msra.mxu0 0.0
        %1205 = vmatprep.subr.mxu0 0.0
        %1206 = vmatpush1.msra.mxu0 0.0
        %1207 = vmatprep.subr.mxu0 0.0
        %1208 = vmatpush1.msra.mxu0 0.0
        %1209 = vmatprep.subr.mxu0 0.0
        %1210 = vmatpush1.msra.mxu0 0.0
        %1211 = vmatprep.subr.mxu0 0.0
        %1212 = vmatpush1.msra.mxu0 0.0
        %1213 = vmatprep.subr.mxu0 0.0
        %1214 = vmatpush1.msra.mxu0 0.0
        %1215 = vmatprep.subr.mxu0 0.0
        %1216 = vmatpush1.msra.mxu0 0.0
        %1217 = vmatprep.subr.mxu0 0.0
        %1218 = vmatpush1.msra.mxu0 0.0
        %1219 = vmatprep.subr.mxu0 0.0
        %1220 = vmatpush1.msra.mxu0 0.0
        %1221 = vmatprep.subr.mxu0 0.0
        %1222 = vmatpush1.msra.mxu0 0.0
        %1223 = vmatprep.mubr.f32.mxu0 0.0
        %1224 = vmatmul.mubr.f32.gmra.mrb[0].mxu0 %v1157
        %v1225 = vpop.f32.mrb[0].mxu0
        %v1226 = vadd.f32 %v1152, %v1225
        %v1227 = vpop.f32.mrb[0].mxu0
        %1228 = vdwg.mxu0
        %v1229 = vld [vmem:[%s25] sm:$0x1]
        %v1231 = vlaneseq
        %v1232 = vshrl.u32 %v1231, 7
        %v1233 = vsub.s32 0, %v1232
        %v1234 = vrot.slane %v1229, %v1233
        %v1236 = vadd.f32 %v1226, %v1234
        %v1237 = vld [vmem:[%s27] sm:$0xff]
        %v1238 = vld [vmem:[%s27 + $0x8] sm:$0xff]
        %v1239 = vld [vmem:[%s27 + $0x10] sm:$0xff]
        %v1240 = vld [vmem:[%s27 + $0x18] sm:$0xff]
        %v1241 = vld [vmem:[%s29] sm:$0xff]
        %v1242 = vld [vmem:[%s29 + $0x8] sm:$0xff]
        %v1243 = vld [vmem:[%s29 + $0x10] sm:$0xff]
        %v1244 = vld [vmem:[%s29 + $0x18] sm:$0xff]
        %v1246 = vsel %vm1081, %v971, 0
        %1248 = vmatprep.subr.mxu0 0.0
        %1249 = vmatpush1.msra.mxu0 %v1241
        %1250 = vmatprep.subr.mxu0 0.0
        %1251 = vmatpush1.msra.mxu0 %v1242
        %1252 = vmatprep.subr.mxu0 0.0
        %1253 = vmatpush1.msra.mxu0 %v1243
        %1254 = vmatprep.subr.mxu0 0.0
        %1255 = vmatpush1.msra.mxu0 %v1244
        %1256 = vmatprep.subr.mxu0 0.0
        %1257 = vmatpush1.msra.mxu0 0.0
        %1258 = vmatprep.subr.mxu0 0.0
        %1259 = vmatpush1.msra.mxu0 0.0
        %1260 = vmatprep.subr.mxu0 0.0
        %1261 = vmatpush1.msra.mxu0 0.0
        %1262 = vmatprep.subr.mxu0 0.0
        %1263 = vmatpush1.msra.mxu0 0.0
        %1264 = vmatprep.subr.mxu0 0.0
        %1265 = vmatpush1.msra.mxu0 0.0
        %1266 = vmatprep.subr.mxu0 0.0
        %1267 = vmatpush1.msra.mxu0 0.0
        %1268 = vmatprep.subr.mxu0 0.0
        %1269 = vmatpush1.msra.mxu0 0.0
        %1270 = vmatprep.subr.mxu0 0.0
        %1271 = vmatpush1.msra.mxu0 0.0
        %1272 = vmatprep.subr.mxu0 0.0
        %1273 = vmatpush1.msra.mxu0 0.0
        %1274 = vmatprep.subr.mxu0 0.0
        %1275 = vmatpush1.msra.mxu0 0.0
        %1276 = vmatprep.subr.mxu0 0.0
        %1277 = vmatpush1.msra.mxu0 0.0
        %1278 = vmatprep.subr.mxu0 0.0
        %1279 = vmatpush1.msra.mxu0 0.0
        %1280 = vmatprep.subr.mxu0 0.0
        %1281 = vmatpush1.msra.mxu0 0.0
        %1282 = vmatprep.subr.mxu0 0.0
        %1283 = vmatpush1.msra.mxu0 0.0
        %1284 = vmatprep.subr.mxu0 0.0
        %1285 = vmatpush1.msra.mxu0 0.0
        %1286 = vmatprep.subr.mxu0 0.0
        %1287 = vmatpush1.msra.mxu0 0.0
        %1288 = vmatprep.subr.mxu0 0.0
        %1289 = vmatpush1.msra.mxu0 0.0
        %1290 = vmatprep.subr.mxu0 0.0
        %1291 = vmatpush1.msra.mxu0 0.0
        %1292 = vmatprep.subr.mxu0 0.0
        %1293 = vmatpush1.msra.mxu0 0.0
        %1294 = vmatprep.subr.mxu0 0.0
        %1295 = vmatpush1.msra.mxu0 0.0
        %1296 = vmatprep.subr.mxu0 0.0
        %1297 = vmatpush1.msra.mxu0 0.0
        %1298 = vmatprep.subr.mxu0 0.0
        %1299 = vmatpush1.msra.mxu0 0.0
        %1300 = vmatprep.subr.mxu0 0.0
        %1301 = vmatpush1.msra.mxu0 0.0
        %1302 = vmatprep.subr.mxu0 0.0
        %1303 = vmatpush1.msra.mxu0 0.0
        %1304 = vmatprep.subr.mxu0 0.0
        %1305 = vmatpush1.msra.mxu0 0.0
        %1306 = vmatprep.subr.mxu0 0.0
        %1307 = vmatpush1.msra.mxu0 0.0
        %1308 = vmatprep.subr.mxu0 0.0
        %1309 = vmatpush1.msra.mxu0 0.0
        %1310 = vmatprep.subr.mxu0 0.0
        %1311 = vmatpush1.msra.mxu0 0.0
        %1312 = vmatprep.mubr.f32.mxu0 0.0
        %1313 = vmatmul.mubr.f32.gmra.mrb[0].mxu0 %v1246
        %v1314 = vpop.f32.mrb[0].mxu0
        %v1315 = vadd.f32 0.0, %v1314
        %v1316 = vpop.f32.mrb[0].mxu0
        %1317 = vdwg.mxu0
        %v1319 = vsel %vm1081, %v1236, 0
        %1321 = vmatprep.subr.mxu0 0.0
        %1322 = vmatpush1.msra.mxu0 %v1237
        %1323 = vmatprep.subr.mxu0 0.0
        %1324 = vmatpush1.msra.mxu0 %v1238
        %1325 = vmatprep.subr.mxu0 0.0
        %1326 = vmatpush1.msra.mxu0 %v1239
        %1327 = vmatprep.subr.mxu0 0.0
        %1328 = vmatpush1.msra.mxu0 %v1240
        %1329 = vmatprep.subr.mxu0 0.0
        %1330 = vmatpush1.msra.mxu0 0.0
        %1331 = vmatprep.subr.mxu0 0.0
        %1332 = vmatpush1.msra.mxu0 0.0
        %1333 = vmatprep.subr.mxu0 0.0
        %1334 = vmatpush1.msra.mxu0 0.0
        %1335 = vmatprep.subr.mxu0 0.0
        %1336 = vmatpush1.msra.mxu0 0.0
        %1337 = vmatprep.subr.mxu0 0.0
        %1338 = vmatpush1.msra.mxu0 0.0
        %1339 = vmatprep.subr.mxu0 0.0
        %1340 = vmatpush1.msra.mxu0 0.0
        %1341 = vmatprep.subr.mxu0 0.0
        %1342 = vmatpush1.msra.mxu0 0.0
        %1343 = vmatprep.subr.mxu0 0.0
        %1344 = vmatpush1.msra.mxu0 0.0
        %1345 = vmatprep.subr.mxu0 0.0
        %1346 = vmatpush1.msra.mxu0 0.0
        %1347 = vmatprep.subr.mxu0 0.0
        %1348 = vmatpush1.msra.mxu0 0.0
        %1349 = vmatprep.subr.mxu0 0.0
        %1350 = vmatpush1.msra.mxu0 0.0
        %1351 = vmatprep.subr.mxu0 0.0
        %1352 = vmatpush1.msra.mxu0 0.0
        %1353 = vmatprep.subr.mxu0 0.0
        %1354 = vmatpush1.msra.mxu0 0.0
        %1355 = vmatprep.subr.mxu0 0.0
        %1356 = vmatpush1.msra.mxu0 0.0
        %1357 = vmatprep.subr.mxu0 0.0
        %1358 = vmatpush1.msra.mxu0 0.0
        %1359 = vmatprep.subr.mxu0 0.0
        %1360 = vmatpush1.msra.mxu0 0.0
        %1361 = vmatprep.subr.mxu0 0.0
        %1362 = vmatpush1.msra.mxu0 0.0
        %1363 = vmatprep.subr.mxu0 0.0
        %1364 = vmatpush1.msra.mxu0 0.0
        %1365 = vmatprep.subr.mxu0 0.0
        %1366 = vmatpush1.msra.mxu0 0.0
        %1367 = vmatprep.subr.mxu0 0.0
        %1368 = vmatpush1.msra.mxu0 0.0
        %1369 = vmatprep.subr.mxu0 0.0
        %1370 = vmatpush1.msra.mxu0 0.0
        %1371 = vmatprep.subr.mxu0 0.0
        %1372 = vmatpush1.msra.mxu0 0.0
        %1373 = vmatprep.subr.mxu0 0.0
        %1374 = vmatpush1.msra.mxu0 0.0
        %1375 = vmatprep.subr.mxu0 0.0
        %1376 = vmatpush1.msra.mxu0 0.0
        %1377 = vmatprep.subr.mxu0 0.0
        %1378 = vmatpush1.msra.mxu0 0.0
        %1379 = vmatprep.subr.mxu0 0.0
        %1380 = vmatpush1.msra.mxu0 0.0
        %1381 = vmatprep.subr.mxu0 0.0
        %1382 = vmatpush1.msra.mxu0 0.0
        %1383 = vmatprep.subr.mxu0 0.0
        %1384 = vmatpush1.msra.mxu0 0.0
        %1385 = vmatprep.mubr.f32.mxu0 0.0
        %1386 = vmatmul.mubr.f32.gmra.mrb[0].mxu0 %v1319
        %v1387 = vpop.f32.mrb[0].mxu0
        %v1388 = vadd.f32 %v1315, %v1387
        %v1389 = vpop.f32.mrb[0].mxu0
        %1390 = vdwg.mxu0
        %v1391 = vld [vmem:[%s31] sm:$0x1]
        %v1393 = vlaneseq
        %v1394 = vshrl.u32 %v1393, 7
        %v1395 = vsub.s32 0, %v1394
        %v1396 = vrot.slane %v1391, %v1395
        %v1398 = vadd.f32 %v1388, %v1396
        %v1399 = vxor.u32 %v1398, 2147483648
        %v1400 = vmul.f32 %v1399, 1.442695
        %v1401 = vpow.pop %v1400
        %v1402 = vadd.f32 %v1401, 1.0
        %v1403 = vrcp.pop %v1402
        %v1404 = vmul.f32 1.0, %v1403
        %v1405 = vtanh.pop %v1398
        %1407 = vrot.lane.b32.xlu0 %v972, 32
        %v1408 = vpop.permute.xlu0 %1407
        %v1410 = vmul.f32 %v1404, %v1408
        %1412 = vrot.lane.b32.xlu0 %v1405, 64
        %v1413 = vpop.permute.xlu0 %1412
        %v1415 = vmul.f32 %v1404, %v1413
        %1417 = vrot.lane.b32.xlu0 %v1415, 32
        %v1418 = vpop.permute.xlu0 %1417
        %v1420 = vadd.f32 %v1410, %v1418
        %v1421 = vtanh.pop %v1420
        %1423 = vrot.lane.b32.xlu0 %v1421, 64
        %v1424 = vpop.permute.xlu0 %1423
        %v1426 = vmul.f32 %v1404, %v1424
        %v1427 = vld [vmem:[%s33] sm:$0xff]
        %v1428 = vld [vmem:[%s33 + $0x8] sm:$0xff]
        %v1429 = vld [vmem:[%s33 + $0x10] sm:$0xff]
        %v1430 = vld [vmem:[%s33 + $0x18] sm:$0xff]
        %v1431 = vld [vmem:[%s35] sm:$0xff]
        %v1432 = vld [vmem:[%s35 + $0x8] sm:$0xff]
        %v1433 = vld [vmem:[%s35 + $0x10] sm:$0xff]
        %v1434 = vld [vmem:[%s35 + $0x18] sm:$0xff]
        %1436 = vrot.lane.b32.xlu0 %v1420, 96
        %v1437 = vpop.permute.xlu0 %1436
        %v1438 = vsel %vm1081, %v1437, 0
        %1440 = vmatprep.subr.mxu0 0.0
        %1441 = vmatpush1.msra.mxu0 %v1431
        %1442 = vmatprep.subr.mxu0 0.0
        %1443 = vmatpush1.msra.mxu0 %v1432
        %1444 = vmatprep.subr.mxu0 0.0
        %1445 = vmatpush1.msra.mxu0 %v1433
        %1446 = vmatprep.subr.mxu0 0.0
        %1447 = vmatpush1.msra.mxu0 %v1434
        %1448 = vmatprep.subr.mxu0 0.0
        %1449 = vmatpush1.msra.mxu0 0.0
        %1450 = vmatprep.subr.mxu0 0.0
        %1451 = vmatpush1.msra.mxu0 0.0
        %1452 = vmatprep.subr.mxu0 0.0
        %1453 = vmatpush1.msra.mxu0 0.0
        %1454 = vmatprep.subr.mxu0 0.0
        %1455 = vmatpush1.msra.mxu0 0.0
        %1456 = vmatprep.subr.mxu0 0.0
        %1457 = vmatpush1.msra.mxu0 0.0
        %1458 = vmatprep.subr.mxu0 0.0
        %1459 = vmatpush1.msra.mxu0 0.0
        %1460 = vmatprep.subr.mxu0 0.0
        %1461 = vmatpush1.msra.mxu0 0.0
        %1462 = vmatprep.subr.mxu0 0.0
        %1463 = vmatpush1.msra.mxu0 0.0
        %1464 = vmatprep.subr.mxu0 0.0
        %1465 = vmatpush1.msra.mxu0 0.0
        %1466 = vmatprep.subr.mxu0 0.0
        %1467 = vmatpush1.msra.mxu0 0.0
        %1468 = vmatprep.subr.mxu0 0.0
        %1469 = vmatpush1.msra.mxu0 0.0
        %1470 = vmatprep.subr.mxu0 0.0
        %1471 = vmatpush1.msra.mxu0 0.0
        %1472 = vmatprep.subr.mxu0 0.0
        %1473 = vmatpush1.msra.mxu0 0.0
        %1474 = vmatprep.subr.mxu0 0.0
        %1475 = vmatpush1.msra.mxu0 0.0
        %1476 = vmatprep.subr.mxu0 0.0
        %1477 = vmatpush1.msra.mxu0 0.0
        %1478 = vmatprep.subr.mxu0 0.0
        %1479 = vmatpush1.msra.mxu0 0.0
        %1480 = vmatprep.subr.mxu0 0.0
        %1481 = vmatpush1.msra.mxu0 0.0
        %1482 = vmatprep.subr.mxu0 0.0
        %1483 = vmatpush1.msra.mxu0 0.0
        %1484 = vmatprep.subr.mxu0 0.0
        %1485 = vmatpush1.msra.mxu0 0.0
        %1486 = vmatprep.subr.mxu0 0.0
        %1487 = vmatpush1.msra.mxu0 0.0
        %1488 = vmatprep.subr.mxu0 0.0
        %1489 = vmatpush1.msra.mxu0 0.0
        %1490 = vmatprep.subr.mxu0 0.0
        %1491 = vmatpush1.msra.mxu0 0.0
        %1492 = vmatprep.subr.mxu0 0.0
        %1493 = vmatpush1.msra.mxu0 0.0
        %1494 = vmatprep.subr.mxu0 0.0
        %1495 = vmatpush1.msra.mxu0 0.0
        %1496 = vmatprep.subr.mxu0 0.0
        %1497 = vmatpush1.msra.mxu0 0.0
        %1498 = vmatprep.subr.mxu0 0.0
        %1499 = vmatpush1.msra.mxu0 0.0
        %1500 = vmatprep.subr.mxu0 0.0
        %1501 = vmatpush1.msra.mxu0 0.0
        %1502 = vmatprep.subr.mxu0 0.0
        %1503 = vmatpush1.msra.mxu0 0.0
        %1504 = vmatprep.mubr.f32.mxu0 0.0
        %1505 = vmatmul.mubr.f32.gmra.mrb[0].mxu0 %v1438
        %v1506 = vpop.f32.mrb[0].mxu0
        %v1507 = vadd.f32 0.0, %v1506
        %v1508 = vpop.f32.mrb[0].mxu0
        %1509 = vdwg.mxu0
        %1511 = vrot.lane.b32.xlu0 %v1426, 32
        %v1512 = vpop.permute.xlu0 %1511
        %v1513 = vsel %vm1081, %v1512, 0
        %1515 = vmatprep.subr.mxu0 0.0
        %1516 = vmatpush1.msra.mxu0 %v1427
        %1517 = vmatprep.subr.mxu0 0.0
        %1518 = vmatpush1.msra.mxu0 %v1428
        %1519 = vmatprep.subr.mxu0 0.0
        %1520 = vmatpush1.msra.mxu0 %v1429
        %1521 = vmatprep.subr.mxu0 0.0
        %1522 = vmatpush1.msra.mxu0 %v1430
        %1523 = vmatprep.subr.mxu0 0.0
        %1524 = vmatpush1.msra.mxu0 0.0
        %1525 = vmatprep.subr.mxu0 0.0
        %1526 = vmatpush1.msra.mxu0 0.0
        %1527 = vmatprep.subr.mxu0 0.0
        %1528 = vmatpush1.msra.mxu0 0.0
        %1529 = vmatprep.subr.mxu0 0.0
        %1530 = vmatpush1.msra.mxu0 0.0
        %1531 = vmatprep.subr.mxu0 0.0
        %1532 = vmatpush1.msra.mxu0 0.0
        %1533 = vmatprep.subr.mxu0 0.0
        %1534 = vmatpush1.msra.mxu0 0.0
        %1535 = vmatprep.subr.mxu0 0.0
        %1536 = vmatpush1.msra.mxu0 0.0
        %1537 = vmatprep.subr.mxu0 0.0
        %1538 = vmatpush1.msra.mxu0 0.0
        %1539 = vmatprep.subr.mxu0 0.0
        %1540 = vmatpush1.msra.mxu0 0.0
        %1541 = vmatprep.subr.mxu0 0.0
        %1542 = vmatpush1.msra.mxu0 0.0
        %1543 = vmatprep.subr.mxu0 0.0
        %1544 = vmatpush1.msra.mxu0 0.0
        %1545 = vmatprep.subr.mxu0 0.0
        %1546 = vmatpush1.msra.mxu0 0.0
        %1547 = vmatprep.subr.mxu0 0.0
        %1548 = vmatpush1.msra.mxu0 0.0
        %1549 = vmatprep.subr.mxu0 0.0
        %1550 = vmatpush1.msra.mxu0 0.0
        %1551 = vmatprep.subr.mxu0 0.0
        %1552 = vmatpush1.msra.mxu0 0.0
        %1553 = vmatprep.subr.mxu0 0.0
        %1554 = vmatpush1.msra.mxu0 0.0
        %1555 = vmatprep.subr.mxu0 0.0
        %1556 = vmatpush1.msra.mxu0 0.0
        %1557 = vmatprep.subr.mxu0 0.0
        %1558 = vmatpush1.msra.mxu0 0.0
        %1559 = vmatprep.subr.mxu0 0.0
        %1560 = vmatpush1.msra.mxu0 0.0
        %1561 = vmatprep.subr.mxu0 0.0
        %1562 = vmatpush1.msra.mxu0 0.0
        %1563 = vmatprep.subr.mxu0 0.0
        %1564 = vmatpush1.msra.mxu0 0.0
        %1565 = vmatprep.subr.mxu0 0.0
        %1566 = vmatpush1.msra.mxu0 0.0
        %1567 = vmatprep.subr.mxu0 0.0
        %1568 = vmatpush1.msra.mxu0 0.0
        %1569 = vmatprep.subr.mxu0 0.0
        %1570 = vmatpush1.msra.mxu0 0.0
        %1571 = vmatprep.subr.mxu0 0.0
        %1572 = vmatpush1.msra.mxu0 0.0
        %1573 = vmatprep.subr.mxu0 0.0
        %1574 = vmatpush1.msra.mxu0 0.0
        %1575 = vmatprep.subr.mxu0 0.0
        %1576 = vmatpush1.msra.mxu0 0.0
        %1577 = vmatprep.subr.mxu0 0.0
        %1578 = vmatpush1.msra.mxu0 0.0
        %1579 = vmatprep.mubr.f32.mxu0 0.0
        %1580 = vmatmul.mubr.f32.gmra.mrb[0].mxu0 %v1513
        %v1581 = vpop.f32.mrb[0].mxu0
        %v1582 = vadd.f32 %v1507, %v1581
        %v1583 = vpop.f32.mrb[0].mxu0
        %1584 = vdwg.mxu0
        %v1585 = vld [vmem:[%s37] sm:$0x1]
        %v1587 = vlaneseq
        %v1588 = vshrl.u32 %v1587, 7
        %v1589 = vsub.s32 0, %v1588
        %v1590 = vrot.slane %v1585, %v1589
        %v1592 = vadd.f32 %v1582, %v1590
        %v1593 = vld [vmem:[%s13] sm:$0xff]
        %v1594 = vld [vmem:[%s13 + $0x8] sm:$0xff]
        %v1597 = vunpack.c.l.s4 1966171168
        %v1598 = vunpack.c.0.s8 %v1597
        %v1599 = vlaneseq
        %v1600 = vshrl.u32 %v1599, 7
        %v1601 = vsub.s32 %v1598, %v1600
        %v1602 = vrot.slane %v1592, %v1601
        %v1603 = vcombine.high %v1602, %v1602
        %v1605 = vunpack.c.l.s4 1966171168
        %v1606 = vunpack.c.0.s8 %v1605
        %v1607 = vlaneseq
        %v1608 = vshrl.u32 %v1607, 7
        %v1609 = vsub.s32 %v1606, %v1608
        %v1610 = vrot.slane %v1602, %v1609
        %v1612 = vunpack.c.l.s4 1966171168
        %v1613 = vunpack.c.0.s8 %v1612
        %v1614 = vlaneseq
        %v1615 = vshrl.u32 %v1614, 7
        %v1616 = vsub.s32 %v1613, %v1615
        %v1617 = vrot.slane %v1603, %v1616
        %v1618 = vlaneseq
        %v1619 = vshrl.u32 %v1618, 7
        %v1620 = vsub.s32 0, %v1619
        %v1621 = vrot.slane %v1610, %v1620
        %v1622 = vlaneseq
        %v1623 = vshrl.u32 %v1622, 7
        %v1624 = vsub.s32 0, %v1623
        %v1625 = vrot.slane %v1617, %v1624
        %v1628 = vadd.f32 %v1593, %v1621
        %v1629 = vadd.f32 %v1594, %v1625
        %v1630 = vlaneseq
        %v1631 = vshrl.u32 %v1630, 7
        %v1632 = vsub.s32 0, %v1631
        %v1633 = vrot.slane %v974, %v1632
        %1635 = vbcast.lane.b32.xlu0 %v1633, 256
        %v1636 = vpop.permute.xlu0 %1635
        %v1637 = vlaneseq
        %v1638 = vshrl.u32 %v1637, 7
        %v1639 = vsub.s32 1, %v1638
        %v1640 = vrot.slane %v974, %v1639
        %1642 = vbcast.lane.b32.xlu0 %v1640, 256
        %v1643 = vpop.permute.xlu0 %1642
        %v1644 = vld [vmem:[%s39] sm:$0x1]
        %v1646 = vlaneseq
        %v1647 = vshrl.u32 %v1646, 7
        %v1648 = vsub.s32 0, %v1647
        %v1649 = vrot.slane %v1644, %v1648
        %v1651 = vmul.f32 %v1636, %v1649
        %v1652 = vmul.f32 %v1643, %v1649
        %v1653 = vadd.f32 %v1628, %v1651
        %v1654 = vadd.f32 %v1629, %v1652
        %v1655 = vtanh.pop %v1653
        %v1656 = vtanh.pop %v1654
        %v1657 = vld [vmem:[%s41] sm:$0x1]
        %v1659 = vlaneseq
        %v1660 = vshrl.u32 %v1659, 7
        %v1661 = vsub.s32 0, %v1660
        %v1662 = vrot.slane %v1657, %v1661
        %v1664 = vmul.f32 %v1655, %v1662
        %v1665 = vmul.f32 %v1656, %v1662
        %v1666 = vsel %vm1155, %v1664, 0.0
        %1667 = vadd.xlane.f32.xlu0 %v1666
        %v1668 = vpop.xlane.xlu0 %1667
        %v1669 = vsel %vm1155, %v1665, 0.0
        %1670 = vadd.xlane.f32.xlu0 %v1669
        %v1671 = vpop.xlane.xlu0 %1670
        %v1674 = vlaneseq
        %v1675 = vshrl.u32 %v1674, 7
        %v1676 = vsub.s32 %v977, %v1675
        %v1677 = vrot.slane %v1668, %v1676
        %v1678 = vlaneseq
        %v1679 = vshrl.u32 %v1678, 7
        %v1680 = vsub.s32 %v977, %v1679
        %v1681 = vrot.slane %v1671, %v1680
        %vm1682 = vcmask 1041409
        %v1683 = vsel %vm1682, %v1681, %v1677
        %vm1685 = vcmask 58368
        %v1686 = vsel %vm1685, %v1683, -inf
        %1687 = vmax.xlane.f32.xlu0 %v1686
        %v1688 = vpop.xlane.xlu0 %1687
        %v1690 = vlaneseq
        %v1691 = vshrl.u32 %v1690, 7
        %v1692 = vsub.s32 0, %v1691
        %v1693 = vrot.slane %v1688, %v1692
        %v1694 = vlaneseq
        %v1695 = vshrl.u32 %v1694, 7
        %v1696 = vsub.s32 1, %v1695
        %v1697 = vrot.slane %v1688, %v1696
        %v1700 = vsub.f32 %v1668, %v1693
        %v1701 = vsub.f32 %v1671, %v1697
        %v1702 = vmul.f32 %v1700, 1.442695
        %v1703 = vpow.pop %v1702
        %v1704 = vmul.f32 %v1701, 1.442695
        %v1705 = vpow.pop %v1704
        %v1706 = vld [vmem:[%s15] sm:$0x3]
        %v1708 = vlaneseq
        %v1709 = vshrl.u32 %v1708, 7
        %v1710 = vsub.s32 0, %v1709
        %v1711 = vrot.slane %v1706, %v1710
        %1713 = vbcast.lane.b32.xlu0 %v1711, 256
        %v1714 = vpop.permute.xlu0 %1713
        %v1715 = vlaneseq
        %v1716 = vshrl.u32 %v1715, 7
        %v1717 = vsub.s32 1, %v1716
        %v1718 = vrot.slane %v1706, %v1717
        %1720 = vbcast.lane.b32.xlu0 %v1718, 256
        %v1721 = vpop.permute.xlu0 %1720
        %v1724 = vmul.f32 %v1703, %v1714
        %v1725 = vmul.f32 %v1705, %v1721
        %1728 = vset.pattern.permute.xlu0 0
        %1729 = vperm.xlu0 %1728, %v1724
        %v1730 = vpop.permute.xlu0 %1729
        %1731 = vset.pattern.permute.xlu0 0
        %1732 = vperm.xlu0 %1731, %v1725
        %v1733 = vpop.permute.xlu0 %1732
        %v1734 = vlaneseq
        %v1735 = vshrl.u32 %v1734, 7
        %v1736 = vsub.s32 %v977, %v1735
        %v1737 = vrot.slane %v1730, %v1736
        %v1738 = vlaneseq
        %v1739 = vshrl.u32 %v1738, 7
        %v1740 = vsub.s32 %v977, %v1739
        %v1741 = vrot.slane %v1733, %v1740
        %v1742 = vsel %vm1682, %v1741, %v1737
        %v1744 = vsel %vm1685, %v1742, 0.0
        %1745 = vadd.xlane.f32.xlu0 %v1744
        %v1746 = vpop.xlane.xlu0 %1745
        %v1747 = vrcp.pop %v1746
        %v1749 = vlaneseq
        %v1750 = vshrl.u32 %v1749, 7
        %v1751 = vsub.s32 0, %v1750
        %v1752 = vrot.slane %v1747, %v1751
        %v1753 = vlaneseq
        %v1754 = vshrl.u32 %v1753, 7
        %v1755 = vsub.s32 1, %v1754
        %v1756 = vrot.slane %v1747, %v1755
        %v1759 = vmul.f32 %v1724, %v1752
        %v1760 = vmul.f32 %v1725, %v1756
        %v1761 = vld [vmem:[%s11] sm:$0xff]
        %v1762 = vld [vmem:[%s11 + $0x8] sm:$0xff]
        %1764 = vset.pattern.permute.xlu0 0
        %1765 = vperm.xlu0 %1764, %v1759
        %v1766 = vpop.permute.xlu0 %1765
        %v1767 = vlaneseq
        %v1768 = vshrl.u32 %v1767, 7
        %v1769 = vsub.s32 %v977, %v1768
        %v1770 = vrot.slane %v1766, %v1769
        %vm1771 = vcmask 64512
        %v1772 = vsel %vm1771, %v1770, 0
        %1774 = vmatprep.subr.mxu0 0.0
        %1775 = vmatpush1.msra.mxu0 %v1761
        %1776 = vmatprep.subr.mxu0 0.0
        %1777 = vmatpush1.msra.mxu0 0.0
        %1778 = vmatprep.subr.mxu0 0.0
        %1779 = vmatpush1.msra.mxu0 0.0
        %1780 = vmatprep.subr.mxu0 0.0
        %1781 = vmatpush1.msra.mxu0 0.0
        %1782 = vmatprep.subr.mxu0 0.0
        %1783 = vmatpush1.msra.mxu0 0.0
        %1784 = vmatprep.subr.mxu0 0.0
        %1785 = vmatpush1.msra.mxu0 0.0
        %1786 = vmatprep.subr.mxu0 0.0
        %1787 = vmatpush1.msra.mxu0 0.0
        %1788 = vmatprep.subr.mxu0 0.0
        %1789 = vmatpush1.msra.mxu0 0.0
        %1790 = vmatprep.subr.mxu0 0.0
        %1791 = vmatpush1.msra.mxu0 0.0
        %1792 = vmatprep.subr.mxu0 0.0
        %1793 = vmatpush1.msra.mxu0 0.0
        %1794 = vmatprep.subr.mxu0 0.0
        %1795 = vmatpush1.msra.mxu0 0.0
        %1796 = vmatprep.subr.mxu0 0.0
        %1797 = vmatpush1.msra.mxu0 0.0
        %1798 = vmatprep.subr.mxu0 0.0
        %1799 = vmatpush1.msra.mxu0 0.0
        %1800 = vmatprep.subr.mxu0 0.0
        %1801 = vmatpush1.msra.mxu0 0.0
        %1802 = vmatprep.subr.mxu0 0.0
        %1803 = vmatpush1.msra.mxu0 0.0
        %1804 = vmatprep.subr.mxu0 0.0
        %1805 = vmatpush1.msra.mxu0 0.0
        %1806 = vmatprep.subr.mxu0 0.0
        %1807 = vmatpush1.msra.mxu0 0.0
        %1808 = vmatprep.subr.mxu0 0.0
        %1809 = vmatpush1.msra.mxu0 0.0
        %1810 = vmatprep.subr.mxu0 0.0
        %1811 = vmatpush1.msra.mxu0 0.0
        %1812 = vmatprep.subr.mxu0 0.0
        %1813 = vmatpush1.msra.mxu0 0.0
        %1814 = vmatprep.subr.mxu0 0.0
        %1815 = vmatpush1.msra.mxu0 0.0
        %1816 = vmatprep.subr.mxu0 0.0
        %1817 = vmatpush1.msra.mxu0 0.0
        %1818 = vmatprep.subr.mxu0 0.0
        %1819 = vmatpush1.msra.mxu0 0.0
        %1820 = vmatprep.subr.mxu0 0.0
        %1821 = vmatpush1.msra.mxu0 0.0
        %1822 = vmatprep.subr.mxu0 0.0
        %1823 = vmatpush1.msra.mxu0 0.0
        %1824 = vmatprep.subr.mxu0 0.0
        %1825 = vmatpush1.msra.mxu0 0.0
        %1826 = vmatprep.subr.mxu0 0.0
        %1827 = vmatpush1.msra.mxu0 0.0
        %1828 = vmatprep.subr.mxu0 0.0
        %1829 = vmatpush1.msra.mxu0 0.0
        %1830 = vmatprep.subr.mxu0 0.0
        %1831 = vmatpush1.msra.mxu0 0.0
        %1832 = vmatprep.subr.mxu0 0.0
        %1833 = vmatpush1.msra.mxu0 0.0
        %1834 = vmatprep.subr.mxu0 0.0
        %1835 = vmatpush1.msra.mxu0 0.0
        %1836 = vmatprep.subr.mxu0 0.0
        %1837 = vmatpush1.msra.mxu0 0.0
        %1838 = vmatprep.mubr.f32.mxu0 0.0
        %1839 = vmatmul.mubr.f32.gmra.mrb[0].mxu0 %v1772
        %v1840 = vpop.f32.mrb[0].mxu0
        %v1841 = vadd.f32 0.0, %v1840
        %v1842 = vpop.f32.mrb[0].mxu0
        %1843 = vdwg.mxu0
        %1845 = vset.pattern.permute.xlu0 0
        %1846 = vperm.xlu0 %1845, %v1760
        %v1847 = vpop.permute.xlu0 %1846
        %v1848 = vlaneseq
        %v1849 = vshrl.u32 %v1848, 7
        %v1850 = vsub.s32 %v977, %v1849
        %v1851 = vrot.slane %v1847, %v1850
        %v1852 = vsel %vm1771, %v1851, 0
        %1854 = vmatprep.subr.mxu0 0.0
        %1855 = vmatpush1.msra.mxu0 %v1762
        %1856 = vmatprep.subr.mxu0 0.0
        %1857 = vmatpush1.msra.mxu0 0.0
        %1858 = vmatprep.subr.mxu0 0.0
        %1859 = vmatpush1.msra.mxu0 0.0
        %1860 = vmatprep.subr.mxu0 0.0
        %1861 = vmatpush1.msra.mxu0 0.0
        %1862 = vmatprep.subr.mxu0 0.0
        %1863 = vmatpush1.msra.mxu0 0.0
        %1864 = vmatprep.subr.mxu0 0.0
        %1865 = vmatpush1.msra.mxu0 0.0
        %1866 = vmatprep.subr.mxu0 0.0
        %1867 = vmatpush1.msra.mxu0 0.0
        %1868 = vmatprep.subr.mxu0 0.0
        %1869 = vmatpush1.msra.mxu0 0.0
        %1870 = vmatprep.subr.mxu0 0.0
        %1871 = vmatpush1.msra.mxu0 0.0
        %1872 = vmatprep.subr.mxu0 0.0
        %1873 = vmatpush1.msra.mxu0 0.0
        %1874 = vmatprep.subr.mxu0 0.0
        %1875 = vmatpush1.msra.mxu0 0.0
        %1876 = vmatprep.subr.mxu0 0.0
        %1877 = vmatpush1.msra.mxu0 0.0
        %1878 = vmatprep.subr.mxu0 0.0
        %1879 = vmatpush1.msra.mxu0 0.0
        %1880 = vmatprep.subr.mxu0 0.0
        %1881 = vmatpush1.msra.mxu0 0.0
        %1882 = vmatprep.subr.mxu0 0.0
        %1883 = vmatpush1.msra.mxu0 0.0
        %1884 = vmatprep.subr.mxu0 0.0
        %1885 = vmatpush1.msra.mxu0 0.0
        %1886 = vmatprep.subr.mxu0 0.0
        %1887 = vmatpush1.msra.mxu0 0.0
        %1888 = vmatprep.subr.mxu0 0.0
        %1889 = vmatpush1.msra.mxu0 0.0
        %1890 = vmatprep.subr.mxu0 0.0
        %1891 = vmatpush1.msra.mxu0 0.0
        %1892 = vmatprep.subr.mxu0 0.0
        %1893 = vmatpush1.msra.mxu0 0.0
        %1894 = vmatprep.subr.mxu0 0.0
        %1895 = vmatpush1.msra.mxu0 0.0
        %1896 = vmatprep.subr.mxu0 0.0
        %1897 = vmatpush1.msra.mxu0 0.0
        %1898 = vmatprep.subr.mxu0 0.0
        %1899 = vmatpush1.msra.mxu0 0.0
        %1900 = vmatprep.subr.mxu0 0.0
        %1901 = vmatpush1.msra.mxu0 0.0
        %1902 = vmatprep.subr.mxu0 0.0
        %1903 = vmatpush1.msra.mxu0 0.0
        %1904 = vmatprep.subr.mxu0 0.0
        %1905 = vmatpush1.msra.mxu0 0.0
        %1906 = vmatprep.subr.mxu0 0.0
        %1907 = vmatpush1.msra.mxu0 0.0
        %1908 = vmatprep.subr.mxu0 0.0
        %1909 = vmatpush1.msra.mxu0 0.0
        %1910 = vmatprep.subr.mxu0 0.0
        %1911 = vmatpush1.msra.mxu0 0.0
        %1912 = vmatprep.subr.mxu0 0.0
        %1913 = vmatpush1.msra.mxu0 0.0
        %1914 = vmatprep.subr.mxu0 0.0
        %1915 = vmatpush1.msra.mxu0 0.0
        %1916 = vmatprep.subr.mxu0 0.0
        %1917 = vmatpush1.msra.mxu0 0.0
        %1918 = vmatprep.mubr.f32.mxu0 0.0
        %1919 = vmatmul.mubr.f32.gmra.mrb[0].mxu0 %v1852
        %v1920 = vpop.f32.mrb[0].mxu0
        %v1921 = vadd.f32 0.0, %v1920
        %v1922 = vpop.f32.mrb[0].mxu0
        %1923 = vdwg.mxu0
        %v1924 = vsel %vm1682, %v1851, %v1770
        %v1926 = vadd.f32 %v974, %v1924
        %v1927 = vld [vmem:[%s43] sm:$0xff]
        %v1928 = vld [vmem:[%s43 + $0x8] sm:$0xff]
        %v1929 = vld [vmem:[%s43 + $0x10] sm:$0xff]
        %v1930 = vld [vmem:[%s43 + $0x18] sm:$0xff]
        %v1931 = vld [vmem:[%s43 + $0x20] sm:$0xff]
        %v1932 = vld [vmem:[%s43 + $0x28] sm:$0xff]
        %v1933 = vld [vmem:[%s43 + $0x30] sm:$0xff]
        %v1934 = vld [vmem:[%s43 + $0x38] sm:$0xff]
        %v1935 = vld [vmem:[%s45] sm:$0xff]
        %v1936 = vld [vmem:[%s45 + $0x8] sm:$0xff]
        %v1937 = vld [vmem:[%s45 + $0x10] sm:$0xff]
        %v1938 = vld [vmem:[%s45 + $0x18] sm:$0xff]
        %1939 = vmatprep.subr.mxu0 0.0
        %1940 = vmatpush1.msra.mxu0 %v1935
        %1941 = vmatprep.subr.mxu0 0.0
        %1942 = vmatpush1.msra.mxu0 %v1936
        %1943 = vmatprep.subr.mxu0 0.0
        %1944 = vmatpush1.msra.mxu0 %v1937
        %1945 = vmatprep.subr.mxu0 0.0
        %1946 = vmatpush1.msra.mxu0 %v1938
        %1947 = vmatprep.subr.mxu0 0.0
        %1948 = vmatpush1.msra.mxu0 0.0
        %1949 = vmatprep.subr.mxu0 0.0
        %1950 = vmatpush1.msra.mxu0 0.0
        %1951 = vmatprep.subr.mxu0 0.0
        %1952 = vmatpush1.msra.mxu0 0.0
        %1953 = vmatprep.subr.mxu0 0.0
        %1954 = vmatpush1.msra.mxu0 0.0
        %1955 = vmatprep.subr.mxu0 0.0
        %1956 = vmatpush1.msra.mxu0 0.0
        %1957 = vmatprep.subr.mxu0 0.0
        %1958 = vmatpush1.msra.mxu0 0.0
        %1959 = vmatprep.subr.mxu0 0.0
        %1960 = vmatpush1.msra.mxu0 0.0
        %1961 = vmatprep.subr.mxu0 0.0
        %1962 = vmatpush1.msra.mxu0 0.0
        %1963 = vmatprep.subr.mxu0 0.0
        %1964 = vmatpush1.msra.mxu0 0.0
        %1965 = vmatprep.subr.mxu0 0.0
        %1966 = vmatpush1.msra.mxu0 0.0
        %1967 = vmatprep.subr.mxu0 0.0
        %1968 = vmatpush1.msra.mxu0 0.0
        %1969 = vmatprep.subr.mxu0 0.0
        %1970 = vmatpush1.msra.mxu0 0.0
        %1971 = vmatprep.subr.mxu0 0.0
        %1972 = vmatpush1.msra.mxu0 0.0
        %1973 = vmatprep.subr.mxu0 0.0
        %1974 = vmatpush1.msra.mxu0 0.0
        %1975 = vmatprep.subr.mxu0 0.0
        %1976 = vmatpush1.msra.mxu0 0.0
        %1977 = vmatprep.subr.mxu0 0.0
        %1978 = vmatpush1.msra.mxu0 0.0
        %1979 = vmatprep.subr.mxu0 0.0
        %1980 = vmatpush1.msra.mxu0 0.0
        %1981 = vmatprep.subr.mxu0 0.0
        %1982 = vmatpush1.msra.mxu0 0.0
        %1983 = vmatprep.subr.mxu0 0.0
        %1984 = vmatpush1.msra.mxu0 0.0
        %1985 = vmatprep.subr.mxu0 0.0
        %1986 = vmatpush1.msra.mxu0 0.0
        %1987 = vmatprep.subr.mxu0 0.0
        %1988 = vmatpush1.msra.mxu0 0.0
        %1989 = vmatprep.subr.mxu0 0.0
        %1990 = vmatpush1.msra.mxu0 0.0
        %1991 = vmatprep.subr.mxu0 0.0
        %1992 = vmatpush1.msra.mxu0 0.0
        %1993 = vmatprep.subr.mxu0 0.0
        %1994 = vmatpush1.msra.mxu0 0.0
        %1995 = vmatprep.subr.mxu0 0.0
        %1996 = vmatpush1.msra.mxu0 0.0
        %1997 = vmatprep.subr.mxu0 0.0
        %1998 = vmatpush1.msra.mxu0 0.0
        %1999 = vmatprep.subr.mxu0 0.0
        %2000 = vmatpush1.msra.mxu0 0.0
        %2001 = vmatprep.subr.mxu0 0.0
        %2002 = vmatpush1.msra.mxu0 0.0
        %2003 = vmatprep.mubr.f32.mxu0 0.0
        %2004 = vmatmul.mubr.f32.gmra.mrb[0].mxu0 %v1513
        %v2005 = vpop.f32.mrb[0].mxu0
        %v2006 = vadd.f32 0.0, %v2005
        %v2007 = vpop.f32.mrb[0].mxu0
        %2008 = vdwg.mxu0
        %v2011 = vrot.slane %v1921, 7
        %v2012 = vsel %vm1682, %v2011, %v1841
        %v2013 = vsel %vm1155, %v2012, 0
        %2015 = vmatprep.subr.mxu0 0.0
        %2016 = vmatpush1.msra.mxu0 %v1927
        %2017 = vmatprep.subr.mxu0 0.0
        %2018 = vmatpush1.msra.mxu0 %v1928
        %2019 = vmatprep.subr.mxu0 0.0
        %2020 = vmatpush1.msra.mxu0 %v1929
        %2021 = vmatprep.subr.mxu0 0.0
        %2022 = vmatpush1.msra.mxu0 %v1930
        %2023 = vmatprep.subr.mxu0 0.0
        %2024 = vmatpush1.msra.mxu0 %v1931
        %2025 = vmatprep.subr.mxu0 0.0
        %2026 = vmatpush1.msra.mxu0 %v1932
        %2027 = vmatprep.subr.mxu0 0.0
        %2028 = vmatpush1.msra.mxu0 %v1933
        %2029 = vmatprep.subr.mxu0 0.0
        %2030 = vmatpush1.msra.mxu0 %v1934
        %2031 = vmatprep.subr.mxu0 0.0
        %2032 = vmatpush1.msra.mxu0 0.0
        %2033 = vmatprep.subr.mxu0 0.0
        %2034 = vmatpush1.msra.mxu0 0.0
        %2035 = vmatprep.subr.mxu0 0.0
        %2036 = vmatpush1.msra.mxu0 0.0
        %2037 = vmatprep.subr.mxu0 0.0
        %2038 = vmatpush1.msra.mxu0 0.0
        %2039 = vmatprep.subr.mxu0 0.0
        %2040 = vmatpush1.msra.mxu0 0.0
        %2041 = vmatprep.subr.mxu0 0.0
        %2042 = vmatpush1.msra.mxu0 0.0
        %2043 = vmatprep.subr.mxu0 0.0
        %2044 = vmatpush1.msra.mxu0 0.0
        %2045 = vmatprep.subr.mxu0 0.0
        %2046 = vmatpush1.msra.mxu0 0.0
        %2047 = vmatprep.subr.mxu0 0.0
        %2048 = vmatpush1.msra.mxu0 0.0
        %2049 = vmatprep.subr.mxu0 0.0
        %2050 = vmatpush1.msra.mxu0 0.0
        %2051 = vmatprep.subr.mxu0 0.0
        %2052 = vmatpush1.msra.mxu0 0.0
        %2053 = vmatprep.subr.mxu0 0.0
        %2054 = vmatpush1.msra.mxu0 0.0
        %2055 = vmatprep.subr.mxu0 0.0
        %2056 = vmatpush1.msra.mxu0 0.0
        %2057 = vmatprep.subr.mxu0 0.0
        %2058 = vmatpush1.msra.mxu0 0.0
        %2059 = vmatprep.subr.mxu0 0.0
        %2060 = vmatpush1.msra.mxu0 0.0
        %2061 = vmatprep.subr.mxu0 0.0
        %2062 = vmatpush1.msra.mxu0 0.0
        %2063 = vmatprep.subr.mxu0 0.0
        %2064 = vmatpush1.msra.mxu0 0.0
        %2065 = vmatprep.subr.mxu0 0.0
        %2066 = vmatpush1.msra.mxu0 0.0
        %2067 = vmatprep.subr.mxu0 0.0
        %2068 = vmatpush1.msra.mxu0 0.0
        %2069 = vmatprep.subr.mxu0 0.0
        %2070 = vmatpush1.msra.mxu0 0.0
        %2071 = vmatprep.subr.mxu0 0.0
        %2072 = vmatpush1.msra.mxu0 0.0
        %2073 = vmatprep.subr.mxu0 0.0
        %2074 = vmatpush1.msra.mxu0 0.0
        %2075 = vmatprep.subr.mxu0 0.0
        %2076 = vmatpush1.msra.mxu0 0.0
        %2077 = vmatprep.subr.mxu0 0.0
        %2078 = vmatpush1.msra.mxu0 0.0
        %2079 = vmatprep.mubr.f32.mxu0 0.0
        %2080 = vmatmul.mubr.f32.gmra.mrb[0].mxu0 %v2013
        %v2081 = vpop.f32.mrb[0].mxu0
        %v2082 = vadd.f32 %v2006, %v2081
        %v2083 = vpop.f32.mrb[0].mxu0
        %2084 = vdwg.mxu0
        %v2085 = vld [vmem:[%s47] sm:$0xff]
        %v2086 = vld [vmem:[%s47 + $0x8] sm:$0xff]
        %v2087 = vld [vmem:[%s47 + $0x10] sm:$0xff]
        %v2088 = vld [vmem:[%s47 + $0x18] sm:$0xff]
        %2089 = vmatprep.subr.mxu0 0.0
        %2090 = vmatpush1.msra.mxu0 %v2085
        %2091 = vmatprep.subr.mxu0 0.0
        %2092 = vmatpush1.msra.mxu0 %v2086
        %2093 = vmatprep.subr.mxu0 0.0
        %2094 = vmatpush1.msra.mxu0 %v2087
        %2095 = vmatprep.subr.mxu0 0.0
        %2096 = vmatpush1.msra.mxu0 %v2088
        %2097 = vmatprep.subr.mxu0 0.0
        %2098 = vmatpush1.msra.mxu0 0.0
        %2099 = vmatprep.subr.mxu0 0.0
        %2100 = vmatpush1.msra.mxu0 0.0
        %2101 = vmatprep.subr.mxu0 0.0
        %2102 = vmatpush1.msra.mxu0 0.0
        %2103 = vmatprep.subr.mxu0 0.0
        %2104 = vmatpush1.msra.mxu0 0.0
        %2105 = vmatprep.subr.mxu0 0.0
        %2106 = vmatpush1.msra.mxu0 0.0
        %2107 = vmatprep.subr.mxu0 0.0
        %2108 = vmatpush1.msra.mxu0 0.0
        %2109 = vmatprep.subr.mxu0 0.0
        %2110 = vmatpush1.msra.mxu0 0.0
        %2111 = vmatprep.subr.mxu0 0.0
        %2112 = vmatpush1.msra.mxu0 0.0
        %2113 = vmatprep.subr.mxu0 0.0
        %2114 = vmatpush1.msra.mxu0 0.0
        %2115 = vmatprep.subr.mxu0 0.0
        %2116 = vmatpush1.msra.mxu0 0.0
        %2117 = vmatprep.subr.mxu0 0.0
        %2118 = vmatpush1.msra.mxu0 0.0
        %2119 = vmatprep.subr.mxu0 0.0
        %2120 = vmatpush1.msra.mxu0 0.0
        %2121 = vmatprep.subr.mxu0 0.0
        %2122 = vmatpush1.msra.mxu0 0.0
        %2123 = vmatprep.subr.mxu0 0.0
        %2124 = vmatpush1.msra.mxu0 0.0
        %2125 = vmatprep.subr.mxu0 0.0
        %2126 = vmatpush1.msra.mxu0 0.0
        %2127 = vmatprep.subr.mxu0 0.0
        %2128 = vmatpush1.msra.mxu0 0.0
        %2129 = vmatprep.subr.mxu0 0.0
        %2130 = vmatpush1.msra.mxu0 0.0
        %2131 = vmatprep.subr.mxu0 0.0
        %2132 = vmatpush1.msra.mxu0 0.0
        %2133 = vmatprep.subr.mxu0 0.0
        %2134 = vmatpush1.msra.mxu0 0.0
        %2135 = vmatprep.subr.mxu0 0.0
        %2136 = vmatpush1.msra.mxu0 0.0
        %2137 = vmatprep.subr.mxu0 0.0
        %2138 = vmatpush1.msra.mxu0 0.0
        %2139 = vmatprep.subr.mxu0 0.0
        %2140 = vmatpush1.msra.mxu0 0.0
        %2141 = vmatprep.subr.mxu0 0.0
        %2142 = vmatpush1.msra.mxu0 0.0
        %2143 = vmatprep.subr.mxu0 0.0
        %2144 = vmatpush1.msra.mxu0 0.0
        %2145 = vmatprep.subr.mxu0 0.0
        %2146 = vmatpush1.msra.mxu0 0.0
        %2147 = vmatprep.subr.mxu0 0.0
        %2148 = vmatpush1.msra.mxu0 0.0
        %2149 = vmatprep.subr.mxu0 0.0
        %2150 = vmatpush1.msra.mxu0 0.0
        %2151 = vmatprep.subr.mxu0 0.0
        %2152 = vmatpush1.msra.mxu0 0.0
        %2153 = vmatprep.mubr.f32.mxu0 0.0
        %2154 = vmatmul.mubr.f32.gmra.mrb[0].mxu0 %v1438
        %v2155 = vpop.f32.mrb[0].mxu0
        %v2156 = vadd.f32 0.0, %v2155
        %v2157 = vpop.f32.mrb[0].mxu0
        %2158 = vdwg.mxu0
        %v2159 = vadd.f32 %v2082, %v2156
        %v2160 = vld [vmem:[%s49] sm:$0xff]
        %v2161 = vld [vmem:[%s49 + $0x8] sm:$0xff]
        %v2162 = vld [vmem:[%s49 + $0x10] sm:$0xff]
        %v2163 = vld [vmem:[%s49 + $0x18] sm:$0xff]
        %2164 = vmatprep.subr.mxu0 0.0
        %2165 = vmatpush1.msra.mxu0 %v2160
        %2166 = vmatprep.subr.mxu0 0.0
        %2167 = vmatpush1.msra.mxu0 %v2161
        %2168 = vmatprep.subr.mxu0 0.0
        %2169 = vmatpush1.msra.mxu0 %v2162
        %2170 = vmatprep.subr.mxu0 0.0
        %2171 = vmatpush1.msra.mxu0 %v2163
        %2172 = vmatprep.subr.mxu0 0.0
        %2173 = vmatpush1.msra.mxu0 0.0
        %2174 = vmatprep.subr.mxu0 0.0
        %2175 = vmatpush1.msra.mxu0 0.0
        %2176 = vmatprep.subr.mxu0 0.0
        %2177 = vmatpush1.msra.mxu0 0.0
        %2178 = vmatprep.subr.mxu0 0.0
        %2179 = vmatpush1.msra.mxu0 0.0
        %2180 = vmatprep.subr.mxu0 0.0
        %2181 = vmatpush1.msra.mxu0 0.0
        %2182 = vmatprep.subr.mxu0 0.0
        %2183 = vmatpush1.msra.mxu0 0.0
        %2184 = vmatprep.subr.mxu0 0.0
        %2185 = vmatpush1.msra.mxu0 0.0
        %2186 = vmatprep.subr.mxu0 0.0
        %2187 = vmatpush1.msra.mxu0 0.0
        %2188 = vmatprep.subr.mxu0 0.0
        %2189 = vmatpush1.msra.mxu0 0.0
        %2190 = vmatprep.subr.mxu0 0.0
        %2191 = vmatpush1.msra.mxu0 0.0
        %2192 = vmatprep.subr.mxu0 0.0
        %2193 = vmatpush1.msra.mxu0 0.0
        %2194 = vmatprep.subr.mxu0 0.0
        %2195 = vmatpush1.msra.mxu0 0.0
        %2196 = vmatprep.subr.mxu0 0.0
        %2197 = vmatpush1.msra.mxu0 0.0
        %2198 = vmatprep.subr.mxu0 0.0
        %2199 = vmatpush1.msra.mxu0 0.0
        %2200 = vmatprep.subr.mxu0 0.0
        %2201 = vmatpush1.msra.mxu0 0.0
        %2202 = vmatprep.subr.mxu0 0.0
        %2203 = vmatpush1.msra.mxu0 0.0
        %2204 = vmatprep.subr.mxu0 0.0
        %2205 = vmatpush1.msra.mxu0 0.0
        %2206 = vmatprep.subr.mxu0 0.0
        %2207 = vmatpush1.msra.mxu0 0.0
        %2208 = vmatprep.subr.mxu0 0.0
        %2209 = vmatpush1.msra.mxu0 0.0
        %2210 = vmatprep.subr.mxu0 0.0
        %2211 = vmatpush1.msra.mxu0 0.0
        %2212 = vmatprep.subr.mxu0 0.0
        %2213 = vmatpush1.msra.mxu0 0.0
        %2214 = vmatprep.subr.mxu0 0.0
        %2215 = vmatpush1.msra.mxu0 0.0
        %2216 = vmatprep.subr.mxu0 0.0
        %2217 = vmatpush1.msra.mxu0 0.0
        %2218 = vmatprep.subr.mxu0 0.0
        %2219 = vmatpush1.msra.mxu0 0.0
        %2220 = vmatprep.subr.mxu0 0.0
        %2221 = vmatpush1.msra.mxu0 0.0
        %2222 = vmatprep.subr.mxu0 0.0
        %2223 = vmatpush1.msra.mxu0 0.0
        %2224 = vmatprep.subr.mxu0 0.0
        %2225 = vmatpush1.msra.mxu0 0.0
        %2226 = vmatprep.subr.mxu0 0.0
        %2227 = vmatpush1.msra.mxu0 0.0
        %2228 = vmatprep.mubr.f32.mxu0 0.0
        %2229 = vmatmul.mubr.f32.gmra.mrb[0].mxu0 %v1319
        %v2230 = vpop.f32.mrb[0].mxu0
        %v2231 = vadd.f32 0.0, %v2230
        %v2232 = vpop.f32.mrb[0].mxu0
        %2233 = vdwg.mxu0
        %v2234 = vadd.f32 %v2159, %v2231
        %v2235 = vld [vmem:[#allocation6] sm:$0x1]
        %v2237 = vlaneseq
        %v2238 = vshrl.u32 %v2237, 7
        %v2239 = vsub.s32 0, %v2238
        %v2240 = vrot.slane %v2235, %v2239
        %v2242 = vadd.f32 %v2234, %v2240
        %v2243 = vxor.u32 %v2242, 2147483648
        %v2244 = vmul.f32 %v2243, 1.442695
        %v2245 = vpow.pop %v2244
        %v2246 = vadd.f32 %v2245, 1.0
        %v2247 = vrcp.pop %v2246
        %v2248 = vmul.f32 1.0, %v2247
        %v2249 = vld [vmem:[%s53] sm:$0xff]
        %v2250 = vld [vmem:[%s53 + $0x8] sm:$0xff]
        %v2251 = vld [vmem:[%s53 + $0x10] sm:$0xff]
        %v2252 = vld [vmem:[%s53 + $0x18] sm:$0xff]
        %v2253 = vld [vmem:[%s55] sm:$0xff]
        %v2254 = vld [vmem:[%s55 + $0x8] sm:$0xff]
        %v2255 = vld [vmem:[%s55 + $0x10] sm:$0xff]
        %v2256 = vld [vmem:[%s55 + $0x18] sm:$0xff]
        %v2257 = vld [vmem:[%s55 + $0x20] sm:$0xff]
        %v2258 = vld [vmem:[%s55 + $0x28] sm:$0xff]
        %v2259 = vld [vmem:[%s55 + $0x30] sm:$0xff]
        %v2260 = vld [vmem:[%s55 + $0x38] sm:$0xff]
        %2261 = vmatprep.subr.mxu0 0.0
        %2262 = vmatpush1.msra.mxu0 %v2253
        %2263 = vmatprep.subr.mxu0 0.0
        %2264 = vmatpush1.msra.mxu0 %v2254
        %2265 = vmatprep.subr.mxu0 0.0
        %2266 = vmatpush1.msra.mxu0 %v2255
        %2267 = vmatprep.subr.mxu0 0.0
        %2268 = vmatpush1.msra.mxu0 %v2256
        %2269 = vmatprep.subr.mxu0 0.0
        %2270 = vmatpush1.msra.mxu0 %v2257
        %2271 = vmatprep.subr.mxu0 0.0
        %2272 = vmatpush1.msra.mxu0 %v2258
        %2273 = vmatprep.subr.mxu0 0.0
        %2274 = vmatpush1.msra.mxu0 %v2259
        %2275 = vmatprep.subr.mxu0 0.0
        %2276 = vmatpush1.msra.mxu0 %v2260
        %2277 = vmatprep.subr.mxu0 0.0
        %2278 = vmatpush1.msra.mxu0 0.0
        %2279 = vmatprep.subr.mxu0 0.0
        %2280 = vmatpush1.msra.mxu0 0.0
        %2281 = vmatprep.subr.mxu0 0.0
        %2282 = vmatpush1.msra.mxu0 0.0
        %2283 = vmatprep.subr.mxu0 0.0
        %2284 = vmatpush1.msra.mxu0 0.0
        %2285 = vmatprep.subr.mxu0 0.0
        %2286 = vmatpush1.msra.mxu0 0.0
        %2287 = vmatprep.subr.mxu0 0.0
        %2288 = vmatpush1.msra.mxu0 0.0
        %2289 = vmatprep.subr.mxu0 0.0
        %2290 = vmatpush1.msra.mxu0 0.0
        %2291 = vmatprep.subr.mxu0 0.0
        %2292 = vmatpush1.msra.mxu0 0.0
        %2293 = vmatprep.subr.mxu0 0.0
        %2294 = vmatpush1.msra.mxu0 0.0
        %2295 = vmatprep.subr.mxu0 0.0
        %2296 = vmatpush1.msra.mxu0 0.0
        %2297 = vmatprep.subr.mxu0 0.0
        %2298 = vmatpush1.msra.mxu0 0.0
        %2299 = vmatprep.subr.mxu0 0.0
        %2300 = vmatpush1.msra.mxu0 0.0
        %2301 = vmatprep.subr.mxu0 0.0
        %2302 = vmatpush1.msra.mxu0 0.0
        %2303 = vmatprep.subr.mxu0 0.0
        %2304 = vmatpush1.msra.mxu0 0.0
        %2305 = vmatprep.subr.mxu0 0.0
        %2306 = vmatpush1.msra.mxu0 0.0
        %2307 = vmatprep.subr.mxu0 0.0
        %2308 = vmatpush1.msra.mxu0 0.0
        %2309 = vmatprep.subr.mxu0 0.0
        %2310 = vmatpush1.msra.mxu0 0.0
        %2311 = vmatprep.subr.mxu0 0.0
        %2312 = vmatpush1.msra.mxu0 0.0
        %2313 = vmatprep.subr.mxu0 0.0
        %2314 = vmatpush1.msra.mxu0 0.0
        %2315 = vmatprep.subr.mxu0 0.0
        %2316 = vmatpush1.msra.mxu0 0.0
        %2317 = vmatprep.subr.mxu0 0.0
        %2318 = vmatpush1.msra.mxu0 0.0
        %2319 = vmatprep.subr.mxu0 0.0
        %2320 = vmatpush1.msra.mxu0 0.0
        %2321 = vmatprep.subr.mxu0 0.0
        %2322 = vmatpush1.msra.mxu0 0.0
        %2323 = vmatprep.subr.mxu0 0.0
        %2324 = vmatpush1.msra.mxu0 0.0
        %2325 = vmatprep.mubr.f32.mxu0 0.0
        %2326 = vmatmul.mubr.f32.gmra.mrb[0].mxu0 %v2013
        %v2327 = vpop.f32.mrb[0].mxu0
        %v2328 = vadd.f32 0.0, %v2327
        %v2329 = vpop.f32.mrb[0].mxu0
        %2330 = vdwg.mxu0
        %2331 = vmatprep.subr.mxu0 0.0
        %2332 = vmatpush1.msra.mxu0 %v2249
        %2333 = vmatprep.subr.mxu0 0.0
        %2334 = vmatpush1.msra.mxu0 %v2250
        %2335 = vmatprep.subr.mxu0 0.0
        %2336 = vmatpush1.msra.mxu0 %v2251
        %2337 = vmatprep.subr.mxu0 0.0
        %2338 = vmatpush1.msra.mxu0 %v2252
        %2339 = vmatprep.subr.mxu0 0.0
        %2340 = vmatpush1.msra.mxu0 0.0
        %2341 = vmatprep.subr.mxu0 0.0
        %2342 = vmatpush1.msra.mxu0 0.0
        %2343 = vmatprep.subr.mxu0 0.0
        %2344 = vmatpush1.msra.mxu0 0.0
        %2345 = vmatprep.subr.mxu0 0.0
        %2346 = vmatpush1.msra.mxu0 0.0
        %2347 = vmatprep.subr.mxu0 0.0
        %2348 = vmatpush1.msra.mxu0 0.0
        %2349 = vmatprep.subr.mxu0 0.0
        %2350 = vmatpush1.msra.mxu0 0.0
        %2351 = vmatprep.subr.mxu0 0.0
        %2352 = vmatpush1.msra.mxu0 0.0
        %2353 = vmatprep.subr.mxu0 0.0
        %2354 = vmatpush1.msra.mxu0 0.0
        %2355 = vmatprep.subr.mxu0 0.0
        %2356 = vmatpush1.msra.mxu0 0.0
        %2357 = vmatprep.subr.mxu0 0.0
        %2358 = vmatpush1.msra.mxu0 0.0
        %2359 = vmatprep.subr.mxu0 0.0
        %2360 = vmatpush1.msra.mxu0 0.0
        %2361 = vmatprep.subr.mxu0 0.0
        %2362 = vmatpush1.msra.mxu0 0.0
        %2363 = vmatprep.subr.mxu0 0.0
        %2364 = vmatpush1.msra.mxu0 0.0
        %2365 = vmatprep.subr.mxu0 0.0
        %2366 = vmatpush1.msra.mxu0 0.0
        %2367 = vmatprep.subr.mxu0 0.0
        %2368 = vmatpush1.msra.mxu0 0.0
        %2369 = vmatprep.subr.mxu0 0.0
        %2370 = vmatpush1.msra.mxu0 0.0
        %2371 = vmatprep.subr.mxu0 0.0
        %2372 = vmatpush1.msra.mxu0 0.0
        %2373 = vmatprep.subr.mxu0 0.0
        %2374 = vmatpush1.msra.mxu0 0.0
        %2375 = vmatprep.subr.mxu0 0.0
        %2376 = vmatpush1.msra.mxu0 0.0
        %2377 = vmatprep.subr.mxu0 0.0
        %2378 = vmatpush1.msra.mxu0 0.0
        %2379 = vmatprep.subr.mxu0 0.0
        %2380 = vmatpush1.msra.mxu0 0.0
        %2381 = vmatprep.subr.mxu0 0.0
        %2382 = vmatpush1.msra.mxu0 0.0
        %2383 = vmatprep.subr.mxu0 0.0
        %2384 = vmatpush1.msra.mxu0 0.0
        %2385 = vmatprep.subr.mxu0 0.0
        %2386 = vmatpush1.msra.mxu0 0.0
        %2387 = vmatprep.subr.mxu0 0.0
        %2388 = vmatpush1.msra.mxu0 0.0
        %2389 = vmatprep.subr.mxu0 0.0
        %2390 = vmatpush1.msra.mxu0 0.0
        %2391 = vmatprep.subr.mxu0 0.0
        %2392 = vmatpush1.msra.mxu0 0.0
        %2393 = vmatprep.subr.mxu0 0.0
        %2394 = vmatpush1.msra.mxu0 0.0
        %2395 = vmatprep.mubr.f32.mxu0 0.0
        %2396 = vmatmul.mubr.f32.gmra.mrb[0].mxu0 %v1513
        %v2397 = vpop.f32.mrb[0].mxu0
        %v2398 = vadd.f32 %v2328, %v2397
        %v2399 = vpop.f32.mrb[0].mxu0
        %2400 = vdwg.mxu0
        %v2401 = vld [vmem:[%s57] sm:$0x1]
        %v2403 = vlaneseq
        %v2404 = vshrl.u32 %v2403, 7
        %v2405 = vsub.s32 0, %v2404
        %v2406 = vrot.slane %v2401, %v2405
        %v2408 = vadd.f32 %v2398, %v2406
        %v2409 = vld [vmem:[%s59] sm:$0xff]
        %v2410 = vld [vmem:[%s59 + $0x8] sm:$0xff]
        %v2411 = vld [vmem:[%s59 + $0x10] sm:$0xff]
        %v2412 = vld [vmem:[%s59 + $0x18] sm:$0xff]
        %v2413 = vld [vmem:[%s61] sm:$0x1]
        %v2415 = vlaneseq
        %v2416 = vshrl.u32 %v2415, 7
        %v2417 = vsub.s32 0, %v2416
        %v2418 = vrot.slane %v2413, %v2417
        %v2421 = vsel %vm1081, %v2408, 0
        %2423 = vmatprep.subr.mxu0 0.0
        %2424 = vmatpush1.msra.mxu0 %v2409
        %2425 = vmatprep.subr.mxu0 0.0
        %2426 = vmatpush1.msra.mxu0 %v2410
        %2427 = vmatprep.subr.mxu0 0.0
        %2428 = vmatpush1.msra.mxu0 %v2411
        %2429 = vmatprep.subr.mxu0 0.0
        %2430 = vmatpush1.msra.mxu0 %v2412
        %2431 = vmatprep.subr.mxu0 0.0
        %2432 = vmatpush1.msra.mxu0 0.0
        %2433 = vmatprep.subr.mxu0 0.0
        %2434 = vmatpush1.msra.mxu0 0.0
        %2435 = vmatprep.subr.mxu0 0.0
        %2436 = vmatpush1.msra.mxu0 0.0
        %2437 = vmatprep.subr.mxu0 0.0
        %2438 = vmatpush1.msra.mxu0 0.0
        %2439 = vmatprep.subr.mxu0 0.0
        %2440 = vmatpush1.msra.mxu0 0.0
        %2441 = vmatprep.subr.mxu0 0.0
        %2442 = vmatpush1.msra.mxu0 0.0
        %2443 = vmatprep.subr.mxu0 0.0
        %2444 = vmatpush1.msra.mxu0 0.0
        %2445 = vmatprep.subr.mxu0 0.0
        %2446 = vmatpush1.msra.mxu0 0.0
        %2447 = vmatprep.subr.mxu0 0.0
        %2448 = vmatpush1.msra.mxu0 0.0
        %2449 = vmatprep.subr.mxu0 0.0
        %2450 = vmatpush1.msra.mxu0 0.0
        %2451 = vmatprep.subr.mxu0 0.0
        %2452 = vmatpush1.msra.mxu0 0.0
        %2453 = vmatprep.subr.mxu0 0.0
        %2454 = vmatpush1.msra.mxu0 0.0
        %2455 = vmatprep.subr.mxu0 0.0
        %2456 = vmatpush1.msra.mxu0 0.0
        %2457 = vmatprep.subr.mxu0 0.0
        %2458 = vmatpush1.msra.mxu0 0.0
        %2459 = vmatprep.subr.mxu0 0.0
        %2460 = vmatpush1.msra.mxu0 0.0
        %2461 = vmatprep.subr.mxu0 0.0
        %2462 = vmatpush1.msra.mxu0 0.0
        %2463 = vmatprep.subr.mxu0 0.0
        %2464 = vmatpush1.msra.mxu0 0.0
        %2465 = vmatprep.subr.mxu0 0.0
        %2466 = vmatpush1.msra.mxu0 0.0
        %2467 = vmatprep.subr.mxu0 0.0
        %2468 = vmatpush1.msra.mxu0 0.0
        %2469 = vmatprep.subr.mxu0 0.0
        %2470 = vmatpush1.msra.mxu0 0.0
        %2471 = vmatprep.subr.mxu0 0.0
        %2472 = vmatpush1.msra.mxu0 0.0
        %2473 = vmatprep.subr.mxu0 0.0
        %2474 = vmatpush1.msra.mxu0 0.0
        %2475 = vmatprep.subr.mxu0 0.0
        %2476 = vmatpush1.msra.mxu0 0.0
        %2477 = vmatprep.subr.mxu0 0.0
        %2478 = vmatpush1.msra.mxu0 0.0
        %2479 = vmatprep.subr.mxu0 0.0
        %2480 = vmatpush1.msra.mxu0 0.0
        %2481 = vmatprep.subr.mxu0 0.0
        %2482 = vmatpush1.msra.mxu0 0.0
        %2483 = vmatprep.subr.mxu0 0.0
        %2484 = vmatpush1.msra.mxu0 0.0
        %2485 = vmatprep.subr.mxu0 0.0
        %2486 = vmatpush1.msra.mxu0 0.0
        %2487 = vmatprep.mubr.f32.mxu0 0.0
        %2488 = vmatmul.mubr.f32.gmra.mrb[0].mxu0 %v2421
        %v2489 = vpop.f32.mrb[0].mxu0
        %v2490 = vadd.f32 %v2418, %v2489
        %v2491 = vpop.f32.mrb[0].mxu0
        %2492 = vdwg.mxu0
        %vm2493 = vcmask 402432
        %v2494 = vsel %vm2493, %v2490, -inf
        %2495 = vmax.xlane.f32.xlu0 %v2494
        %v2496 = vpop.xlane.xlu0 %2495
        %v2497 = vsub.f32 %v2490, %v2496
        %v2498 = vmul.f32 %v2497, 1.442695
        %v2499 = vpow.pop %v2498
        %v2500 = vsel %vm2493, %v2499, 0.0
        %2501 = vadd.xlane.f32.xlu0 %v2500
        %v2502 = vpop.xlane.xlu0 %2501
        %v2503 = vrcp.pop %v2502
        %v2504 = vmul.f32 %v2499, %v2503
        %2506 = vset.pattern.permute.xlu0 0
        %2507 = vperm.xlu0 %2506, %v2248
        %v2508 = vpop.permute.xlu0 %2507
        %v2510 = vmul.f32 %v2508, %v2504
        %v2511 = vsub.f32 1.0, %v2248
        %2513 = vset.pattern.permute.xlu0 0
        %2514 = vperm.xlu0 %2513, %v2511
        %v2515 = vpop.permute.xlu0 %2514
        %v2517 = vmul.f32 %v2515, %v1924
        %v2520 = vunpack.c.l.s4 1966171168
        %v2521 = vunpack.c.0.s8 %v2520
        %v2522 = vlaneseq
        %v2523 = vshrl.u32 %v2522, 7
        %v2524 = vsub.s32 %v2521, %v2523
        %v2525 = vrot.slane %v2517, %v2524
        %v2526 = vcombine.high %v2525, %v2525
        %v2528 = vunpack.c.l.s4 1966171168
        %v2529 = vunpack.c.0.s8 %v2528
        %v2530 = vlaneseq
        %v2531 = vshrl.u32 %v2530, 7
        %v2532 = vsub.s32 %v2529, %v2531
        %v2533 = vrot.slane %v2525, %v2532
        %v2535 = vunpack.c.l.s4 1966171168
        %v2536 = vunpack.c.0.s8 %v2535
        %v2537 = vlaneseq
        %v2538 = vshrl.u32 %v2537, 7
        %v2539 = vsub.s32 %v2536, %v2538
        %v2540 = vrot.slane %v2526, %v2539
        %v2541 = vld [vmem:[%s17] sm:$0xff]
        %v2542 = vld [vmem:[%s17 + $0x8] sm:$0xff]
        %v2543 = vsel %vm1771, %v2533, 0
        %2545 = vmatprep.subr.mxu0 0.0
        %2546 = vmatpush1.msra.mxu0 %v2541
        %2547 = vmatprep.subr.mxu0 0.0
        %2548 = vmatpush1.msra.mxu0 0.0
        %2549 = vmatprep.subr.mxu0 0.0
        %2550 = vmatpush1.msra.mxu0 0.0
        %2551 = vmatprep.subr.mxu0 0.0
        %2552 = vmatpush1.msra.mxu0 0.0
        %2553 = vmatprep.subr.mxu0 0.0
        %2554 = vmatpush1.msra.mxu0 0.0
        %2555 = vmatprep.subr.mxu0 0.0
        %2556 = vmatpush1.msra.mxu0 0.0
        %2557 = vmatprep.subr.mxu0 0.0
        %2558 = vmatpush1.msra.mxu0 0.0
        %2559 = vmatprep.subr.mxu0 0.0
        %2560 = vmatpush1.msra.mxu0 0.0
        %2561 = vmatprep.subr.mxu0 0.0
        %2562 = vmatpush1.msra.mxu0 0.0
        %2563 = vmatprep.subr.mxu0 0.0
        %2564 = vmatpush1.msra.mxu0 0.0
        %2565 = vmatprep.subr.mxu0 0.0
        %2566 = vmatpush1.msra.mxu0 0.0
        %2567 = vmatprep.subr.mxu0 0.0
        %2568 = vmatpush1.msra.mxu0 0.0
        %2569 = vmatprep.subr.mxu0 0.0
        %2570 = vmatpush1.msra.mxu0 0.0
        %2571 = vmatprep.subr.mxu0 0.0
        %2572 = vmatpush1.msra.mxu0 0.0
        %2573 = vmatprep.subr.mxu0 0.0
        %2574 = vmatpush1.msra.mxu0 0.0
        %2575 = vmatprep.subr.mxu0 0.0
        %2576 = vmatpush1.msra.mxu0 0.0
        %2577 = vmatprep.subr.mxu0 0.0
        %2578 = vmatpush1.msra.mxu0 0.0
        %2579 = vmatprep.subr.mxu0 0.0
        %2580 = vmatpush1.msra.mxu0 0.0
        %2581 = vmatprep.subr.mxu0 0.0
        %2582 = vmatpush1.msra.mxu0 0.0
        %2583 = vmatprep.subr.mxu0 0.0
        %2584 = vmatpush1.msra.mxu0 0.0
        %2585 = vmatprep.subr.mxu0 0.0
        %2586 = vmatpush1.msra.mxu0 0.0
        %2587 = vmatprep.subr.mxu0 0.0
        %2588 = vmatpush1.msra.mxu0 0.0
        %2589 = vmatprep.subr.mxu0 0.0
        %2590 = vmatpush1.msra.mxu0 0.0
        %2591 = vmatprep.subr.mxu0 0.0
        %2592 = vmatpush1.msra.mxu0 0.0
        %2593 = vmatprep.subr.mxu0 0.0
        %2594 = vmatpush1.msra.mxu0 0.0
        %2595 = vmatprep.subr.mxu0 0.0
        %2596 = vmatpush1.msra.mxu0 0.0
        %2597 = vmatprep.subr.mxu0 0.0
        %2598 = vmatpush1.msra.mxu0 0.0
        %2599 = vmatprep.subr.mxu0 0.0
        %2600 = vmatpush1.msra.mxu0 0.0
        %2601 = vmatprep.subr.mxu0 0.0
        %2602 = vmatpush1.msra.mxu0 0.0
        %2603 = vmatprep.subr.mxu0 0.0
        %2604 = vmatpush1.msra.mxu0 0.0
        %2605 = vmatprep.subr.mxu0 0.0
        %2606 = vmatpush1.msra.mxu0 0.0
        %2607 = vmatprep.subr.mxu0 0.0
        %2608 = vmatpush1.msra.mxu0 0.0
        %2609 = vmatprep.mubr.f32.mxu0 0.0
        %2610 = vmatmul.mubr.f32.gmra.mrb[0].mxu0 %v2543
        %v2611 = vpop.f32.mrb[0].mxu0
        %v2612 = vadd.f32 0.0, %v2611
        %v2613 = vpop.f32.mrb[0].mxu0
        %2614 = vdwg.mxu0
        %v2615 = vsel %vm1771, %v2540, 0
        %2617 = vmatprep.subr.mxu0 0.0
        %2618 = vmatpush1.msra.mxu0 %v2542
        %2619 = vmatprep.subr.mxu0 0.0
        %2620 = vmatpush1.msra.mxu0 0.0
        %2621 = vmatprep.subr.mxu0 0.0
        %2622 = vmatpush1.msra.mxu0 0.0
        %2623 = vmatprep.subr.mxu0 0.0
        %2624 = vmatpush1.msra.mxu0 0.0
        %2625 = vmatprep.subr.mxu0 0.0
        %2626 = vmatpush1.msra.mxu0 0.0
        %2627 = vmatprep.subr.mxu0 0.0
        %2628 = vmatpush1.msra.mxu0 0.0
        %2629 = vmatprep.subr.mxu0 0.0
        %2630 = vmatpush1.msra.mxu0 0.0
        %2631 = vmatprep.subr.mxu0 0.0
        %2632 = vmatpush1.msra.mxu0 0.0
        %2633 = vmatprep.subr.mxu0 0.0
        %2634 = vmatpush1.msra.mxu0 0.0
        %2635 = vmatprep.subr.mxu0 0.0
        %2636 = vmatpush1.msra.mxu0 0.0
        %2637 = vmatprep.subr.mxu0 0.0
        %2638 = vmatpush1.msra.mxu0 0.0
        %2639 = vmatprep.subr.mxu0 0.0
        %2640 = vmatpush1.msra.mxu0 0.0
        %2641 = vmatprep.subr.mxu0 0.0
        %2642 = vmatpush1.msra.mxu0 0.0
        %2643 = vmatprep.subr.mxu0 0.0
        %2644 = vmatpush1.msra.mxu0 0.0
        %2645 = vmatprep.subr.mxu0 0.0
        %2646 = vmatpush1.msra.mxu0 0.0
        %2647 = vmatprep.subr.mxu0 0.0
        %2648 = vmatpush1.msra.mxu0 0.0
        %2649 = vmatprep.subr.mxu0 0.0
        %2650 = vmatpush1.msra.mxu0 0.0
        %2651 = vmatprep.subr.mxu0 0.0
        %2652 = vmatpush1.msra.mxu0 0.0
        %2653 = vmatprep.subr.mxu0 0.0
        %2654 = vmatpush1.msra.mxu0 0.0
        %2655 = vmatprep.subr.mxu0 0.0
        %2656 = vmatpush1.msra.mxu0 0.0
        %2657 = vmatprep.subr.mxu0 0.0
        %2658 = vmatpush1.msra.mxu0 0.0
        %2659 = vmatprep.subr.mxu0 0.0
        %2660 = vmatpush1.msra.mxu0 0.0
        %2661 = vmatprep.subr.mxu0 0.0
        %2662 = vmatpush1.msra.mxu0 0.0
        %2663 = vmatprep.subr.mxu0 0.0
        %2664 = vmatpush1.msra.mxu0 0.0
        %2665 = vmatprep.subr.mxu0 0.0
        %2666 = vmatpush1.msra.mxu0 0.0
        %2667 = vmatprep.subr.mxu0 0.0
        %2668 = vmatpush1.msra.mxu0 0.0
        %2669 = vmatprep.subr.mxu0 0.0
        %2670 = vmatpush1.msra.mxu0 0.0
        %2671 = vmatprep.subr.mxu0 0.0
        %2672 = vmatpush1.msra.mxu0 0.0
        %2673 = vmatprep.subr.mxu0 0.0
        %2674 = vmatpush1.msra.mxu0 0.0
        %2675 = vmatprep.subr.mxu0 0.0
        %2676 = vmatpush1.msra.mxu0 0.0
        %2677 = vmatprep.subr.mxu0 0.0
        %2678 = vmatpush1.msra.mxu0 0.0
        %2679 = vmatprep.subr.mxu0 0.0
        %2680 = vmatpush1.msra.mxu0 0.0
        %2681 = vmatprep.mubr.f32.mxu0 0.0
        %2682 = vmatmul.mubr.f32.gmra.mrb[0].mxu0 %v2615
        %v2683 = vpop.f32.mrb[0].mxu0
        %v2684 = vadd.f32 0.0, %v2683
        %v2685 = vpop.f32.mrb[0].mxu0
        %2686 = vdwg.mxu0
        %v2688 = vrot.slane %v2510, 1
        %v2691 = vadd.f32 %v2612, %v2510
        %v2692 = vadd.f32 %v2684, %v2688
        %v2696 = vunpack.c.l.s4 1983009808
        %v2697 = vunpack.c.0.s8 %v2696
        %v2698 = vlaneseq
        %v2699 = vshrl.u32 %v2698, 7
        %v2700 = vsub.s32 %v2697, %v2699
        %v2701 = vrot.slane %v2691, %v2700
        %v2703 = vunpack.c.l.s4 1983009808
        %v2704 = vunpack.c.0.s8 %v2703
        %v2705 = vlaneseq
        %v2706 = vshrl.u32 %v2705, 7
        %v2707 = vsub.s32 %v2704, %v2706
        %v2708 = vrot.slane %v2692, %v2707
        %vm2709 = vcmask 1044484
        %v2710 = vsel %vm2709, %v2701, %v2701
        %vm2711 = vcmask 1046534
        %v2712 = vsel %vm2711, %v2701, %v2710
        %v2713 = vrot.slane %v2708, 7
        %v2714 = vsel %vm1682, %v2713, %v2712
        %vm2715 = vcmask 1043459
        %v2716 = vsel %vm2715, %v2713, %v2714
        %vm2717 = vcmask 1045509
        %v2718 = vsel %vm2717, %v2713, %v2716
        %vm2719 = vcmask 1047559
        %v2720 = vsel %vm2719, %v2713, %v2718
        %2722 = vst.msk [vmem:[%s951] sm:$0x3] %vm2493, %v2720
        %v2726 = vunpack.c.l.s4 1983009808
        %v2727 = vunpack.c.0.s8 %v2726
        %v2728 = vlaneseq
        %v2729 = vshrl.u32 %v2728, 7
        %v2730 = vsub.s32 %v2727, %v2729
        %v2731 = vrot.slane %v2612, %v2730
        %v2733 = vunpack.c.l.s4 1983009808
        %v2734 = vunpack.c.0.s8 %v2733
        %v2735 = vlaneseq
        %v2736 = vshrl.u32 %v2735, 7
        %v2737 = vsub.s32 %v2734, %v2736
        %v2738 = vrot.slane %v2684, %v2737
        %v2739 = vsel %vm2709, %v2731, %v2731
        %v2740 = vsel %vm2711, %v2731, %v2739
        %v2741 = vrot.slane %v2738, 7
        %v2742 = vsel %vm1682, %v2741, %v2740
        %v2743 = vsel %vm2715, %v2741, %v2742
        %v2744 = vsel %vm2717, %v2741, %v2743
        %v2745 = vsel %vm2719, %v2741, %v2744
        %vm2747 = vcmask 451984
        %2748 = vst.msk [vmem:[%s951] sm:$0x3] %vm2747, %v2745
        %v2750 = vunpack.c.l.s4 1983009808
        %v2751 = vunpack.c.0.s8 %v2750
        %v2752 = vlaneseq
        %v2753 = vshrl.u32 %v2752, 7
        %v2754 = vsub.s32 %v2751, %v2753
        %v2755 = vrot.slane %v1426, %v2754
        %2756 = vrot.lane.b32.xlu0 %v2755, 88
        %v2757 = vpop.permute.xlu0 %2756
        %vm2759 = vcmask 714176
        %2760 = vst.msk [vmem:[%s951] sm:$0x3] %vm2759, %v2757
        %v2762 = vunpack.c.l.s4 1983009808
        %v2763 = vunpack.c.0.s8 %v2762
        %v2764 = vlaneseq
        %v2765 = vshrl.u32 %v2764, 7
        %v2766 = vsub.s32 %v2763, %v2765
        %v2767 = vrot.slane %v1420, %v2766
        %2768 = vrot.lane.b32.xlu0 %v2767, 56
        %v2769 = vpop.permute.xlu0 %2768
        %vm2771 = vcmask 976576
        %2772 = vst.msk [vmem:[%s951] sm:$0x3] %vm2771, %v2769
        %v2774 = vunpack.c.l.s4 1983009808
        %v2775 = vunpack.c.0.s8 %v2774
        %v2776 = vlaneseq
        %v2777 = vshrl.u32 %v2776, 7
        %v2778 = vsub.s32 %v2775, %v2777
        %v2779 = vrot.slane %v1841, %v2778
        %v2781 = vunpack.c.l.s4 1983009808
        %v2782 = vunpack.c.0.s8 %v2781
        %v2783 = vlaneseq
        %v2784 = vshrl.u32 %v2783, 7
        %v2785 = vsub.s32 %v2782, %v2784
        %v2786 = vrot.slane %v1921, %v2785
        %v2787 = vsel %vm2709, %v2779, %v2779
        %v2788 = vsel %vm2711, %v2779, %v2787
        %v2789 = vrot.slane %v2786, 7
        %v2790 = vsel %vm1682, %v2789, %v2788
        %v2791 = vsel %vm2715, %v2789, %v2790
        %v2792 = vsel %vm2717, %v2789, %v2791
        %v2793 = vsel %vm2719, %v2789, %v2792
        %2794 = vrot.lane.b32.xlu0 %v2793, 120
        %v2795 = vpop.permute.xlu0 %2794
        %v2796 = vrot.slane %v2795, 6
        %vm2797 = vcmask 982016
        %v2798 = vsel %vm2797, %v2796, %v2795
        %vm2800 = vcmask 1042368
        %vm2801 = vcmask 453634
        %vm2802 = vmor %vm2801, %vm2800
        %2803 = vst.msk [vmem:[%s951] sm:$0xf] %vm2802, %v2798
        %v2804 = vcombine.high %v1759, %v1759
        %v2806 = vunpack.c.l.s4 1983009808
        %v2807 = vunpack.c.0.s8 %v2806
        %v2808 = vlaneseq
        %v2809 = vshrl.u32 %v2808, 7
        %v2810 = vsub.s32 %v2807, %v2809
        %v2811 = vrot.slane %v1759, %v2810
        %v2813 = vunpack.c.l.s4 1983009808
        %v2814 = vunpack.c.0.s8 %v2813
        %v2815 = vlaneseq
        %v2816 = vshrl.u32 %v2815, 7
        %v2817 = vsub.s32 %v2814, %v2816
        %v2818 = vrot.slane %v2804, %v2817
        %v2819 = vcombine.high %v2811, %v2811
        %v2820 = vcombine.high %v2818, %v2818
        %v2821 = vcombine.high %v1760, %v1760
        %v2823 = vunpack.c.l.s4 1983009808
        %v2824 = vunpack.c.0.s8 %v2823
        %v2825 = vlaneseq
        %v2826 = vshrl.u32 %v2825, 7
        %v2827 = vsub.s32 %v2824, %v2826
        %v2828 = vrot.slane %v1760, %v2827
        %v2830 = vunpack.c.l.s4 1983009808
        %v2831 = vunpack.c.0.s8 %v2830
        %v2832 = vlaneseq
        %v2833 = vshrl.u32 %v2832, 7
        %v2834 = vsub.s32 %v2831, %v2833
        %v2835 = vrot.slane %v2821, %v2834
        %v2836 = vcombine.high %v2828, %v2828
        %v2837 = vcombine.high %v2835, %v2835
        %v2838 = vcombine.low %v2811, %v2819
        %v2839 = vcombine.low %v2818, %v2820
        %v2841 = vunpack.c.l.s4 1983009808
        %v2842 = vunpack.c.0.s8 %v2841
        %v2843 = vlaneseq
        %v2844 = vshrl.u32 %v2843, 7
        %v2845 = vsub.s32 %v2842, %v2844
        %v2846 = vrot.slane %v2838, %v2845
        %v2848 = vunpack.c.l.s4 1983009808
        %v2849 = vunpack.c.0.s8 %v2848
        %v2850 = vlaneseq
        %v2851 = vshrl.u32 %v2850, 7
        %v2852 = vsub.s32 %v2849, %v2851
        %v2853 = vrot.slane %v2839, %v2852
        %v2854 = vcombine.low %v2846, %v2853
        %v2855 = vcombine.low %v2828, %v2836
        %v2856 = vcombine.low %v2835, %v2837
        %v2858 = vunpack.c.l.s4 1983009808
        %v2859 = vunpack.c.0.s8 %v2858
        %v2860 = vlaneseq
        %v2861 = vshrl.u32 %v2860, 7
        %v2862 = vsub.s32 %v2859, %v2861
        %v2863 = vrot.slane %v2855, %v2862
        %v2865 = vunpack.c.l.s4 1983009808
        %v2866 = vunpack.c.0.s8 %v2865
        %v2867 = vlaneseq
        %v2868 = vshrl.u32 %v2867, 7
        %v2869 = vsub.s32 %v2866, %v2868
        %v2870 = vrot.slane %v2856, %v2869
        %v2871 = vcombine.low %v2863, %v2870
        %2872 = vset.pattern.permute.xlu0 0
        %2873 = vperm.xlu0 %2872, %v2854
        %v2874 = vpop.permute.xlu0 %2873
        %2875 = vset.pattern.permute.xlu0 0
        %2876 = vperm.xlu0 %2875, %v2871
        %v2877 = vpop.permute.xlu0 %2876
        %v2878 = vadd.s32 %v977, 4294967240
        %v2879 = vlaneseq
        %v2880 = vshrl.u32 %v2879, 7
        %v2881 = vsub.s32 %v2878, %v2880
        %v2882 = vrot.slane %v2874, %v2881
        %v2883 = vlaneseq
        %v2884 = vshrl.u32 %v2883, 7
        %v2885 = vsub.s32 %v2878, %v2884
        %v2886 = vrot.slane %v2877, %v2885
        %v2887 = vsel %vm1682, %v2886, %v2882
        %v2889 = vunpack.c.l.s4 1983009808
        %v2890 = vunpack.c.0.s8 %v2889
        %v2891 = vlaneseq
        %v2892 = vshrl.u32 %v2891, 7
        %v2893 = vsub.s32 %v2890, %v2892
        %v2894 = vrot.slane %v2887, %v2893
        %vm2896 = vcmask 517568
        %2897 = vst.msk [vmem:[%s951 + $0x2] sm:$0x3] %vm2896, %v2894
        %v2899 = vunpack.c.l.s4 1983009808
        %v2900 = vunpack.c.0.s8 %v2899
        %v2901 = vlaneseq
        %v2902 = vshrl.u32 %v2901, 7
        %v2903 = vsub.s32 %v2900, %v2902
        %v2904 = vrot.slane %v2248, %v2903
        %2905 = vrot.lane.b32.xlu0 %v2904, 64
        %v2906 = vpop.permute.xlu0 %2905
        %vm2908 = vcmask 525824
        %2909 = vst.msk [vmem:[%s951 + $0x2] sm:$0x3] %vm2908, %v2906
        %v2912 = vunpack.c.l.s4 1983009808
        %v2913 = vunpack.c.0.s8 %v2912
        %v2914 = vlaneseq
        %v2915 = vshrl.u32 %v2914, 7
        %v2916 = vsub.s32 %v2913, %v2915
        %v2917 = vrot.slane %v1926, %v2916
        %2918 = vrot.lane.b32.xlu0 %v2917, 65
        %v2919 = vpop.permute.xlu0 %2918
        %vm2921 = vcmask 591368
        %2922 = vst.msk [vmem:[%s951 + $0x2] sm:$0x3] %vm2921, %v2919
        %vm2923 = vcmask 1041992
        %2924 = vst.msk [vmem:[%s951 + $0x2] sm:$0x3] %vm2923, 0.0
        %vm2926 = vcmask 254976
        %2927 = vst.msk [vmem:[#allocation2] sm:$0x3] %vm2926, %v1512
        %2929 = vst.msk [vmem:[#allocation3] sm:$0x3] %vm2926, %v1437
        %vm2931 = vcmask 517120
        %2932 = vst.msk [vmem:[#allocation4] sm:$0x3] %vm2931, %v2012
        %2933 = vst.msk [vmem:[#allocation5] sm:$0x3] %vm1685, %v1926
        %s2934 = sand.u32 %s743, 1
        %s2935 = scalar_lea.sflag [#allocation8], %s2934
        %s2936 = sand.u32 %s743, 1
        %s2937 = smul.addr %s2936, 4
        %s2938 = scalar_lea.vmem [#allocation7], %s2937
        // Predicated region
        $region149: #{tpu_custom_call.1} parent=143 // pred_check
          %p2939 = pneg %p753
        $region150: #{tpu_custom_call.1} parent=143 // pred_check_branch
          %2941 = sbr.rel (%p2939) target = $region152
        $region151: #{tpu_custom_call.1} parent=143 // pred_region
          %s2943 = ssub.s32 64, 64
          %2944 = vsyncadd %s2935, %s2943
          %s2945 = smul.addr %s79, 2
          %s2946 = smul.addr %s2945, 32
          %s2947 = scalar_lea.hbm %s63, %s2946
          %s2949 = sshll.u32 %s2938, 4
          %s2950 = int_to_ptr.vmem [resolvable:$true] %s2949
          %2952 = dma.vmem_to_hbm [thread:$0]  %s2950, 64, %s2947, %s2935
        $region152: #{tpu_custom_call.1} parent=143 // pred_fallthru
          _
      $region144: #{tpu_custom_call.1} parent=5 // pred_fallthru
        _
      %p2953 = scmp.le.s32.totalorder 2, %s74
      // Predicated region
      $region153: #{tpu_custom_call.1} parent=5 // pred_check
        %p2954 = pneg %p2953
      $region154: #{tpu_custom_call.1} parent=5 // pred_check_branch
        %2956 = sbr.rel (%p2954) target = $region156
      $region155: #{tpu_custom_call.1} parent=5 // pred_region
        %s2957 = ssub.s32 %s74, 2
        // Predicated region
        $region157: #{tpu_custom_call.1} parent=155 // pred_check
          %p2958 = pneg %p759
        $region158: #{tpu_custom_call.1} parent=155 // pred_check_branch
          %2960 = sbr.rel (%p2958) target = $region160
        $region159: #{tpu_custom_call.1} parent=155 // pred_region
          %s2961 = sand.u32 %s744, 1
          %s2962 = scalar_lea.sflag [#allocation8], %s2961
          %s2963 = sand.u32 %s744, 1
          %s2964 = smul.addr %s2963, 4
          %s2965 = scalar_lea.vmem [#allocation7], %s2964
          %2966 = dma.done %s2962, 64
        $region160: #{tpu_custom_call.1} parent=155 // pred_fallthru
          _
      $region156: #{tpu_custom_call.1} parent=5 // pred_fallthru
        _
    $region6: #{tpu_custom_call.1} parent=1 // loop_footer
      %s78 = sadd.s32 1, %s74
    $region7: #{tpu_custom_call.1} parent=1 // loop_footer_branch
      %73 = sbr.rel target = $region3
    $region8: #{tpu_custom_call.1} parent=1 // loop_exit
      _
    %2967 = vsyncpa [#allocation8], 1
    %s2968 = scalar_lea.sflag [#allocation8], 1
    %2969 = vsyncpa %s2968, 1

</llo_original>
